<compile_context>
chip_gen: v7x
topology: tpu7x:2x2x1
jax: 0.10.0
libtpu: 0.0.40
codegen_flags: <defaults>
</compile_context>

<pallas_src>
import functools
import numpy as np
import jax
import jax.numpy as jnp
from jax.experimental import pallas as pl
from jax.experimental.pallas import tpu as pltpu

VMEM_SPEC = pl.BlockSpec(memory_space=pltpu.MemorySpace.VMEM)


# --------------------------------------------------------------------------- #
# Fused Pallas kernel: 3x (banded conv+pool+ELU) + VAE head + reparameterize
# --------------------------------------------------------------------------- #
def _fused_encoder_kernel(x_ref, w1_ref, b1_ref, w2_ref, b2_ref, w3_ref, b3_ref,
                          wh_ref, bh_ref, eps_ref, out_ref, *, band_cfg, lat_dim):
    """Whole VariationalCNNEncoder forward in one kernel.

    x   : (N, H*W*Cin)            bf16  NHWC-flat input
    w_i : (nblk, band_rows, 4*g)  bf16  banded conv+pool weight; for block po
                                        the 4 contiguous column groups are the
                                        4 positions of the 2x2 pool window
    b_i : (1, Ho*Wo*Cout)         f32   bias tiled over (po, qo, cout) lanes
    wh  : (flat, 2*lat)           bf16  [w_mu | w_logvar], rows permuted to the
                                        kernel's NHWC-flat activation order
    bh  : (1, 2*lat)              f32
    eps : (N, lat)                f32   ~ N(0,1) for the reparameterization
    out : (N, 4*lat)              f32   [mu | logvar | z | pad] lane-dense slab
    """

    def conv_pool_elu(a_bf16, w_ref, b_ref, starts, band_rows):
        pieces = []
        for blk, start in enumerate(starts):          # static Python loop
            xb = a_bf16[:, start:start + band_rows]   # 128-aligned lane slice
            y = jnp.dot(xb, w_ref[blk], preferred_element_type=jnp.float32)
            g = y.shape[-1] // 4
            # 2x2 max-pool = elementwise max over the 4 contiguous lane groups.
            m = jnp.maximum(jnp.maximum(y[:, 0 * g:1 * g], y[:, 1 * g:2 * g]),
                            jnp.maximum(y[:, 2 * g:3 * g], y[:, 3 * g:4 * g]))
            pieces.append(m)
        m = pieces[0] if len(pieces) == 1 else jnp.concatenate(pieces, axis=-1)
        m = m + b_ref[...]                            # bias once, after the max
        # ELU(alpha=1); clamp so the unselected exp branch cannot overflow.
        act = jnp.where(m > 0, m, jnp.exp(jnp.minimum(m, 0.0)) - 1.0)
        return act.astype(jnp.bfloat16)

    a = x_ref[...]                                          # (N, 1024) bf16
    a = conv_pool_elu(a, w1_ref, b1_ref, *band_cfg[0])      # (N, 8*8*8  = 512)
    a = conv_pool_elu(a, w2_ref, b2_ref, *band_cfg[1])      # (N, 4*4*16 = 256)
    a = conv_pool_elu(a, w3_ref, b3_ref, *band_cfg[2])      # (N, 2*2*32 = 128)

    # Merged mu|logvar head: one matmul, then static lane slices.
    h = jnp.dot(a, wh_ref[...], preferred_element_type=jnp.float32) + bh_ref[...]
    mu = h[:, :lat_dim]
    lv = h[:, lat_dim:2 * lat_dim]
    z = mu + eps_ref[...] * jnp.exp(0.5 * lv)
    # Single lane-dense packed store: [mu | logvar | z | zero pad].
    out_ref[...] = jnp.concatenate([mu, lv, z, jnp.zeros_like(z)], axis=-1)


# --------------------------------------------------------------------------- #
# One-time parameter repacking (host side, amortized across forward calls)
# --------------------------------------------------------------------------- #
def _pool_onehot(size_out, size_in):
    """E[tap, r, p, h] = 1 iff h == 2*p + r + tap - 1 (conv pad=1, pool=2)."""
    tap = np.arange(3)[:, None, None, None]
    r = np.arange(2)[None, :, None, None]
    p = np.arange(size_out)[None, None, :, None]
    h = np.arange(size_in)[None, None, None, :]
    return (h == 2 * p + r + tap - 1).astype(np.float32)


def _dense_conv_pool_weight(w_hwio, h, w):
    """Fold conv(3x3, pad=1, stride=1) + 2x2-pool-window decomposition into one
    dense matrix.  Rows: NHWC-flat input (h, w, c).  Columns: (r, s, po, qo, f)
    with the 4 pool positions (r, s) as outermost contiguous groups.  Every
    nonzero entry is an exact copy of a conv weight, so bf16 casting commutes.
    """
    kh, kw, cin, cout = w_hwio.shape
    assert kh == 3 and kw == 3, "dense folding implemented for k=3 (pad=k-2=1)"
    ho, wo = h // 2, w // 2
    eh = _pool_onehot(ho, h)                         # (3, 2, Ho, H)
    ew = _pool_onehot(wo, w)                         # (3, 2, Wo, W)
    big = np.einsum('drph,esqw,decf->hwcrspqf', eh, ew,
                    np.asarray(w_hwio, np.float32))
    return big.reshape(h * w * cin, 4 * ho * wo * cout)


def init_params(key, in_shape, filters, kernel_size, lat_dim):
    """Synthetic parameters in PyTorch conventions (HWIO convs, heads acting on
    an NCHW flatten), PyTorch-default-like uniform fan-in init."""
    c, h, w = in_shape
    params = {"convs": []}
    last_c = c
    keys = jax.random.split(key, 2 * len(filters) + 4)
    ki = 0
    for f in filters:
        fan_in = kernel_size * kernel_size * last_c
        s = 1.0 / float(fan_in) ** 0.5
        wgt = jax.random.uniform(keys[ki], (kernel_size, kernel_size, last_c, f),
                                 jnp.float32, -s, s); ki += 1
        bias = jax.random.uniform(keys[ki], (f,), jnp.float32, -s, s); ki += 1
        params["convs"].append((wgt, bias))
        last_c = f
        h, w = h // 2, w // 2              # k=3, pad=1 keeps size; pool halves
    flat_dim = last_c * h * w
    s = 1.0 / float(flat_dim) ** 0.5
    params["w_mu"] = jax.random.uniform(keys[ki], (flat_dim, lat_dim), jnp.float32, -s, s); ki += 1
    params["b_mu"] = jax.random.uniform(keys[ki], (lat_dim,), jnp.float32, -s, s); ki += 1
    params["w_lv"] = jax.random.uniform(keys[ki], (flat_dim, lat_dim), jnp.float32, -s, s); ki += 1
    params["b_lv"] = jax.random.uniform(keys[ki], (lat_dim,), jnp.float32, -s, s); ki += 1
    params["last_conv_shape"] = (last_c, h, w)
    return params


def prepare_dense_params(params, in_shape):
    """Fold conv taps + zero padding + pool decomposition into BANDED bf16
    matmul blocks (one per pool-output row, 128-lane-aligned band starts),
    tile biases over spatial lanes, and merge & permute the mu/logvar heads
    (NCHW-flatten permutation folded into the weight rows)."""
    c, h, w = in_shape
    conv_layers, band_cfg = [], []
    for wgt, bias in params["convs"]:
        cout = int(wgt.shape[-1])
        ho, wo = h // 2, w // 2
        G = ho * wo * cout
        big = _dense_conv_pool_weight(np.asarray(wgt, np.float32), h, w)
        band_h = min(h, 6)                      # rows 2po-1..2po+2 fit; even-aligned
        band_rows = band_h * w * c
        starts, blocks = [], []
        for po in range(ho):
            sr = int(np.clip(2 * po - 2, 0, h - band_h))   # even spatial row
            r0 = sr * w * c                                 # 128-aligned lane offset
            cols = [big[:, rs * G + po * wo * cout: rs * G + (po + 1) * wo * cout]
                    for rs in range(4)]
            blk_full = np.concatenate(cols, axis=1)         # (h*w*c, 4*wo*cout)
            keep = np.zeros(blk_full.shape[0], dtype=bool)
            keep[r0:r0 + band_rows] = True
            assert not np.any(blk_full[~keep]), "banding dropped nonzero conv weights"
            starts.append(r0)
            blocks.append(blk_full[r0:r0 + band_rows])
        w_band = np.stack(blocks, axis=0)                   # (ho, band_rows, 4*wo*cout)
        b_tile = np.broadcast_to(np.asarray(bias, np.float32),
                                 (ho, wo, cout)).reshape(1, G)
        conv_layers.append((jnp.asarray(w_band, jnp.bfloat16),
                            jnp.asarray(b_tile, jnp.float32)))
        band_cfg.append((tuple(starts), band_rows))
        h, w, c = ho, wo, cout

    cl, hl, wl = params["last_conv_shape"]
    lat = int(params["w_mu"].shape[-1])

    def fold_head(w_head):
        # rows are NCHW-flat (c,h,w); permute to the kernel's NHWC-flat (h,w,c)
        return np.asarray(w_head, np.float32).reshape(cl, hl, wl, lat) \
                 .transpose(1, 2, 0, 3).reshape(hl * wl * cl, lat)

    wh = np.concatenate([fold_head(params["w_mu"]), fold_head(params["w_lv"])], axis=1)
    bh = np.concatenate([np.asarray(params["b_mu"], np.float32),
                         np.asarray(params["b_lv"], np.float32)]).reshape(1, 2 * lat)
    return {"convs": conv_layers, "band_cfg": tuple(band_cfg),
            "wh": jnp.asarray(wh, jnp.bfloat16), "bh": jnp.asarray(bh, jnp.float32),
            "lat_dim": lat}


# --------------------------------------------------------------------------- #
# Forward wrapper (single pallas_call) and a pure-JAX/XLA reference
# --------------------------------------------------------------------------- #
def _pick_row_tile(n):
    """Largest row tile (multiple of 8) that divides n with >= 2 grid steps."""
    for t in (512, 256, 128, 64, 32, 16, 8):
        if n > t and n % t == 0:
            return t
    return None


def variational_cnn_encoder_forward(dense, x_nchw, eps):
    """Returns (mu, logvar, z) exactly like VariationalCNNEncoder.forward."""
    n = x_nchw.shape[0]
    lat = dense["lat_dim"]
    # NHWC-flat bf16 input: band slices need spatially-contiguous lanes; bf16
    # halves input HBM->VMEM bytes and drops an in-kernel VPU cast.
    x_flat = jnp.transpose(x_nchw, (0, 2, 3, 1)).reshape(n, -1).astype(jnp.bfloat16)
    eps = eps.astype(jnp.float32)
    (w1, b1), (w2, b2), (w3, b3) = dense["convs"]
    weights = (w1, b1, w2, b2, w3, b3, dense["wh"], dense["bh"])
    kernel = functools.partial(_fused_encoder_kernel,
                               band_cfg=dense["band_cfg"], lat_dim=lat)
    out_shape = jax.ShapeDtypeStruct((n, 4 * lat), jnp.float32)
    # ~2.5 MiB resident weights (+ double-buffered tiles) fits comfortably; 32 MiB
    # also fits v7x's 64 MiB physical VMEM with headroom.
    cparams = dict(vmem_limit_bytes=32 * 1024 * 1024)

    tile = _pick_row_tile(n)
    if tile is None:
        # Tiny batch: single block, no grid.
        out = pl.pallas_call(
            kernel, out_shape=out_shape,
            in_specs=[VMEM_SPEC] * (len(weights) + 2),
            out_specs=VMEM_SPEC,
            compiler_params=pltpu.CompilerParams(**cparams),
        )(x_flat, *weights, eps)
    else:
        # 1-D batch grid: x/eps/out tiled over rows, weights resident
        # (constant index_map -> DMA'd once, not re-fetched per step).
        def _resident(a):
            nd = a.ndim
            return pl.BlockSpec(a.shape, lambda i, _nd=nd: (0,) * _nd)
        in_specs = ([pl.BlockSpec((tile, x_flat.shape[1]), lambda i: (i, 0))]
                    + [_resident(a) for a in weights]
                    + [pl.BlockSpec((tile, lat), lambda i: (i, 0))])
        out_specs = pl.BlockSpec((tile, 4 * lat), lambda i: (i, 0))
        out = pl.pallas_call(
            kernel, out_shape=out_shape,
            grid=(n // tile,), in_specs=in_specs, out_specs=out_specs,
            compiler_params=pltpu.CompilerParams(
                dimension_semantics=("parallel",), **cparams),
        )(x_flat, *weights, eps)

    return out[:, :lat], out[:, lat:2 * lat], out[:, 2 * lat:3 * lat]


def reference_forward(params, x_nchw, eps):
    """Pure-JAX reference (XLA convs), mirroring the kernel's bf16 operand casts."""
    t = jnp.transpose(x_nchw, (0, 2, 3, 1))
    for wgt, bias in params["convs"]:
        conv = jax.lax.conv_general_dilated(
            t.astype(jnp.bfloat16), wgt.astype(jnp.bfloat16),
            window_strides=(1, 1), padding=((1, 1), (1, 1)),
            dimension_numbers=("NHWC", "HWIO", "NHWC"),
            preferred_element_type=jnp.float32)
        pooled = jax.lax.reduce_window(conv, -jnp.inf, jax.lax.max,
                                       (1, 2, 2, 1), (1, 2, 2, 1), "VALID")
        m = pooled + bias
        t = jnp.where(m > 0, m, jnp.exp(jnp.minimum(m, 0.0)) - 1.0)
    n = t.shape[0]
    flat = jnp.transpose(t, (0, 3, 1, 2)).reshape(n, -1).astype(jnp.bfloat16)
    mu = jnp.dot(flat, params["w_mu"].astype(jnp.bfloat16),
                 preferred_element_type=jnp.float32) + params["b_mu"]
    lv = jnp.dot(flat, params["w_lv"].astype(jnp.bfloat16),
                 preferred_element_type=jnp.float32) + params["b_lv"]
    z = mu + eps * jnp.exp(0.5 * lv)
    return mu, lv, z


if __name__ == "__main__":
    key = jax.random.PRNGKey(0)
    k_param, k_x, k_eps, k_xb, k_epsb = jax.random.split(key, 5)

    in_shape = (4, 16, 16)     # (C, H, W)
    filters = [8, 16, 32]      # 3 ConvModules (class references self.conv3)
    lat_dim = 32
    batch = 2

    params = init_params(k_param, in_shape, filters, kernel_size=3, lat_dim=lat_dim)
    dense = prepare_dense_params(params, in_shape)   # one-time weight repacking

    x = jax.random.normal(k_x, (batch,) + in_shape, jnp.float32)    # NCHW input
    eps = jax.random.normal(k_eps, (batch, lat_dim), jnp.float32)   # torch.randn_like

    mu, logvar, z = variational_cnn_encoder_forward(dense, x, eps)
    jax.block_until_ready((mu, logvar, z))

    assert mu.shape == (batch, lat_dim)
    assert logvar.shape == (batch, lat_dim)
    assert z.shape == (batch, lat_dim)
    assert params["last_conv_shape"] == (32, 2, 2)   # flat dim 128, like conv3.shape

    # Cross-check against a pure-JAX reference using the same bf16 operand casts.
    mu_r, lv_r, z_r = reference_forward(params, x, eps)
    np.testing.assert_allclose(np.asarray(mu), np.asarray(mu_r), rtol=1e-2, atol=1e-2)
    np.testing.assert_allclose(np.asarray(logvar), np.asarray(lv_r), rtol=1e-2, atol=1e-2)
    np.testing.assert_allclose(np.asarray(z), np.asarray(z_r), rtol=1e-2, atol=1e-2)

    # Larger batch exercises the 1-D batch grid (pipelined, "parallel" semantics).
    nb = 256
    xb = jax.random.normal(k_xb, (nb,) + in_shape, jnp.float32)
    epsb = jax.random.normal(k_epsb, (nb, lat_dim), jnp.float32)
    mu_b, lv_b, z_b = variational_cnn_encoder_forward(dense, xb, epsb)
    jax.block_until_ready((mu_b, lv_b, z_b))
    mu_br, lv_br, z_br = reference_forward(params, xb, epsb)
    np.testing.assert_allclose(np.asarray(mu_b), np.asarray(mu_br), rtol=1e-2, atol=1e-2)
    np.testing.assert_allclose(np.asarray(lv_b), np.asarray(lv_br), rtol=1e-2, atol=1e-2)
    np.testing.assert_allclose(np.asarray(z_b), np.asarray(z_br), rtol=1e-2, atol=1e-2)

    print("KERNEL_OK")
</pallas_src>

<mosaic_0001>
module attributes {stable_mosaic.version = 11 : i64} {
  func.func @_fused_encoder_kernel(%arg0: memref<2x1024xbf16, #tpu.memory_space<vmem>>, %arg1: memref<8x384x256xbf16, #tpu.memory_space<vmem>>, %arg2: memref<1x512xf32, #tpu.memory_space<vmem>>, %arg3: memref<4x384x256xbf16, #tpu.memory_space<vmem>>, %arg4: memref<1x256xf32, #tpu.memory_space<vmem>>, %arg5: memref<2x256x256xbf16, #tpu.memory_space<vmem>>, %arg6: memref<1x128xf32, #tpu.memory_space<vmem>>, %arg7: memref<128x64xbf16, #tpu.memory_space<vmem>>, %arg8: memref<1x64xf32, #tpu.memory_space<vmem>>, %arg9: memref<2x32xf32, #tpu.memory_space<vmem>>, %arg10: memref<2x128xf32, #tpu.memory_space<vmem>>) attributes {dimension_semantics = [], scalar_prefetch = 0 : i64, scratch_operands = 0 : i64, tpu.core_type = #tpu.core_type<tc>} {
    %c0 = arith.constant 0 : index
    %c0_0 = arith.constant 0 : index
    %0 = vector.load %arg0[%c0, %c0_0] : memref<2x1024xbf16, #tpu.memory_space<vmem>>, vector<2x1024xbf16>
    %1 = vector.extract_strided_slice %0 {offsets = [0, 0], sizes = [2, 384], strides = [1, 1]} : vector<2x1024xbf16> to vector<2x384xbf16>
    %c0_1 = arith.constant 0 : index
    %c0_2 = arith.constant 0 : index
    %c0_3 = arith.constant 0 : index
    %2 = vector.load %arg1[%c0_1, %c0_2, %c0_3] : memref<8x384x256xbf16, #tpu.memory_space<vmem>>, vector<1x384x256xbf16>
    %3 = vector.shape_cast %2 : vector<1x384x256xbf16> to vector<384x256xbf16>
    %cst = arith.constant dense<0.000000e+00> : vector<2x256xf32>
    %4 = tpu.matmul %1, %3, %cst {dimension_numbers = #tpu.dot_dimension_numbers<[1], [0], [0], [1], [0, 0, 1, 1], [], []>} : vector<2x384xbf16>, vector<384x256xbf16>, vector<2x256xf32> -> vector<2x256xf32>
    %5 = vector.extract_strided_slice %4 {offsets = [0, 0], sizes = [2, 64], strides = [1, 1]} : vector<2x256xf32> to vector<2x64xf32>
    %6 = vector.extract_strided_slice %4 {offsets = [0, 64], sizes = [2, 64], strides = [1, 1]} : vector<2x256xf32> to vector<2x64xf32>
    %7 = arith.maximumf %5, %6 : vector<2x64xf32>
    %8 = vector.extract_strided_slice %4 {offsets = [0, 128], sizes = [2, 64], strides = [1, 1]} : vector<2x256xf32> to vector<2x64xf32>
    %9 = vector.extract_strided_slice %4 {offsets = [0, 192], sizes = [2, 64], strides = [1, 1]} : vector<2x256xf32> to vector<2x64xf32>
    %10 = arith.maximumf %8, %9 : vector<2x64xf32>
    %11 = arith.maximumf %7, %10 : vector<2x64xf32>
    %12 = vector.extract_strided_slice %0 {offsets = [0, 0], sizes = [2, 384], strides = [1, 1]} : vector<2x1024xbf16> to vector<2x384xbf16>
    %c1 = arith.constant 1 : index
    %c0_4 = arith.constant 0 : index
    %c0_5 = arith.constant 0 : index
    %13 = vector.load %arg1[%c1, %c0_4, %c0_5] : memref<8x384x256xbf16, #tpu.memory_space<vmem>>, vector<1x384x256xbf16>
    %14 = vector.shape_cast %13 : vector<1x384x256xbf16> to vector<384x256xbf16>
    %cst_6 = arith.constant dense<0.000000e+00> : vector<2x256xf32>
    %15 = tpu.matmul %12, %14, %cst_6 {dimension_numbers = #tpu.dot_dimension_numbers<[1], [0], [0], [1], [0, 0, 1, 1], [], []>} : vector<2x384xbf16>, vector<384x256xbf16>, vector<2x256xf32> -> vector<2x256xf32>
    %16 = vector.extract_strided_slice %15 {offsets = [0, 0], sizes = [2, 64], strides = [1, 1]} : vector<2x256xf32> to vector<2x64xf32>
    %17 = vector.extract_strided_slice %15 {offsets = [0, 64], sizes = [2, 64], strides = [1, 1]} : vector<2x256xf32> to vector<2x64xf32>
    %18 = arith.maximumf %16, %17 : vector<2x64xf32>
    %19 = vector.extract_strided_slice %15 {offsets = [0, 128], sizes = [2, 64], strides = [1, 1]} : vector<2x256xf32> to vector<2x64xf32>
    %20 = vector.extract_strided_slice %15 {offsets = [0, 192], sizes = [2, 64], strides = [1, 1]} : vector<2x256xf32> to vector<2x64xf32>
    %21 = arith.maximumf %19, %20 : vector<2x64xf32>
    %22 = arith.maximumf %18, %21 : vector<2x64xf32>
    %23 = vector.extract_strided_slice %0 {offsets = [0, 128], sizes = [2, 384], strides = [1, 1]} : vector<2x1024xbf16> to vector<2x384xbf16>
    %c2 = arith.constant 2 : index
    %c0_7 = arith.constant 0 : index
    %c0_8 = arith.constant 0 : index
    %24 = vector.load %arg1[%c2, %c0_7, %c0_8] : memref<8x384x256xbf16, #tpu.memory_space<vmem>>, vector<1x384x256xbf16>
    %25 = vector.shape_cast %24 : vector<1x384x256xbf16> to vector<384x256xbf16>
    %cst_9 = arith.constant dense<0.000000e+00> : vector<2x256xf32>
    %26 = tpu.matmul %23, %25, %cst_9 {dimension_numbers = #tpu.dot_dimension_numbers<[1], [0], [0], [1], [0, 0, 1, 1], [], []>} : vector<2x384xbf16>, vector<384x256xbf16>, vector<2x256xf32> -> vector<2x256xf32>
    %27 = vector.extract_strided_slice %26 {offsets = [0, 0], sizes = [2, 64], strides = [1, 1]} : vector<2x256xf32> to vector<2x64xf32>
    %28 = vector.extract_strided_slice %26 {offsets = [0, 64], sizes = [2, 64], strides = [1, 1]} : vector<2x256xf32> to vector<2x64xf32>
    %29 = arith.maximumf %27, %28 : vector<2x64xf32>
    %30 = vector.extract_strided_slice %26 {offsets = [0, 128], sizes = [2, 64], strides = [1, 1]} : vector<2x256xf32> to vector<2x64xf32>
    %31 = vector.extract_strided_slice %26 {offsets = [0, 192], sizes = [2, 64], strides = [1, 1]} : vector<2x256xf32> to vector<2x64xf32>
    %32 = arith.maximumf %30, %31 : vector<2x64xf32>
    %33 = arith.maximumf %29, %32 : vector<2x64xf32>
    %34 = vector.extract_strided_slice %0 {offsets = [0, 256], sizes = [2, 384], strides = [1, 1]} : vector<2x1024xbf16> to vector<2x384xbf16>
    %c3 = arith.constant 3 : index
    %c0_10 = arith.constant 0 : index
    %c0_11 = arith.constant 0 : index
    %35 = vector.load %arg1[%c3, %c0_10, %c0_11] : memref<8x384x256xbf16, #tpu.memory_space<vmem>>, vector<1x384x256xbf16>
    %36 = vector.shape_cast %35 : vector<1x384x256xbf16> to vector<384x256xbf16>
    %cst_12 = arith.constant dense<0.000000e+00> : vector<2x256xf32>
    %37 = tpu.matmul %34, %36, %cst_12 {dimension_numbers = #tpu.dot_dimension_numbers<[1], [0], [0], [1], [0, 0, 1, 1], [], []>} : vector<2x384xbf16>, vector<384x256xbf16>, vector<2x256xf32> -> vector<2x256xf32>
    %38 = vector.extract_strided_slice %37 {offsets = [0, 0], sizes = [2, 64], strides = [1, 1]} : vector<2x256xf32> to vector<2x64xf32>
    %39 = vector.extract_strided_slice %37 {offsets = [0, 64], sizes = [2, 64], strides = [1, 1]} : vector<2x256xf32> to vector<2x64xf32>
    %40 = arith.maximumf %38, %39 : vector<2x64xf32>
    %41 = vector.extract_strided_slice %37 {offsets = [0, 128], sizes = [2, 64], strides = [1, 1]} : vector<2x256xf32> to vector<2x64xf32>
    %42 = vector.extract_strided_slice %37 {offsets = [0, 192], sizes = [2, 64], strides = [1, 1]} : vector<2x256xf32> to vector<2x64xf32>
    %43 = arith.maximumf %41, %42 : vector<2x64xf32>
    %44 = arith.maximumf %40, %43 : vector<2x64xf32>
    %45 = vector.extract_strided_slice %0 {offsets = [0, 384], sizes = [2, 384], strides = [1, 1]} : vector<2x1024xbf16> to vector<2x384xbf16>
    %c4 = arith.constant 4 : index
    %c0_13 = arith.constant 0 : index
    %c0_14 = arith.constant 0 : index
    %46 = vector.load %arg1[%c4, %c0_13, %c0_14] : memref<8x384x256xbf16, #tpu.memory_space<vmem>>, vector<1x384x256xbf16>
    %47 = vector.shape_cast %46 : vector<1x384x256xbf16> to vector<384x256xbf16>
    %cst_15 = arith.constant dense<0.000000e+00> : vector<2x256xf32>
    %48 = tpu.matmul %45, %47, %cst_15 {dimension_numbers = #tpu.dot_dimension_numbers<[1], [0], [0], [1], [0, 0, 1, 1], [], []>} : vector<2x384xbf16>, vector<384x256xbf16>, vector<2x256xf32> -> vector<2x256xf32>
    %49 = vector.extract_strided_slice %48 {offsets = [0, 0], sizes = [2, 64], strides = [1, 1]} : vector<2x256xf32> to vector<2x64xf32>
    %50 = vector.extract_strided_slice %48 {offsets = [0, 64], sizes = [2, 64], strides = [1, 1]} : vector<2x256xf32> to vector<2x64xf32>
    %51 = arith.maximumf %49, %50 : vector<2x64xf32>
    %52 = vector.extract_strided_slice %48 {offsets = [0, 128], sizes = [2, 64], strides = [1, 1]} : vector<2x256xf32> to vector<2x64xf32>
    %53 = vector.extract_strided_slice %48 {offsets = [0, 192], sizes = [2, 64], strides = [1, 1]} : vector<2x256xf32> to vector<2x64xf32>
    %54 = arith.maximumf %52, %53 : vector<2x64xf32>
    %55 = arith.maximumf %51, %54 : vector<2x64xf32>
    %56 = vector.extract_strided_slice %0 {offsets = [0, 512], sizes = [2, 384], strides = [1, 1]} : vector<2x1024xbf16> to vector<2x384xbf16>
    %c5 = arith.constant 5 : index
    %c0_16 = arith.constant 0 : index
    %c0_17 = arith.constant 0 : index
    %57 = vector.load %arg1[%c5, %c0_16, %c0_17] : memref<8x384x256xbf16, #tpu.memory_space<vmem>>, vector<1x384x256xbf16>
    %58 = vector.shape_cast %57 : vector<1x384x256xbf16> to vector<384x256xbf16>
    %cst_18 = arith.constant dense<0.000000e+00> : vector<2x256xf32>
    %59 = tpu.matmul %56, %58, %cst_18 {dimension_numbers = #tpu.dot_dimension_numbers<[1], [0], [0], [1], [0, 0, 1, 1], [], []>} : vector<2x384xbf16>, vector<384x256xbf16>, vector<2x256xf32> -> vector<2x256xf32>
    %60 = vector.extract_strided_slice %59 {offsets = [0, 0], sizes = [2, 64], strides = [1, 1]} : vector<2x256xf32> to vector<2x64xf32>
    %61 = vector.extract_strided_slice %59 {offsets = [0, 64], sizes = [2, 64], strides = [1, 1]} : vector<2x256xf32> to vector<2x64xf32>
    %62 = arith.maximumf %60, %61 : vector<2x64xf32>
    %63 = vector.extract_strided_slice %59 {offsets = [0, 128], sizes = [2, 64], strides = [1, 1]} : vector<2x256xf32> to vector<2x64xf32>
    %64 = vector.extract_strided_slice %59 {offsets = [0, 192], sizes = [2, 64], strides = [1, 1]} : vector<2x256xf32> to vector<2x64xf32>
    %65 = arith.maximumf %63, %64 : vector<2x64xf32>
    %66 = arith.maximumf %62, %65 : vector<2x64xf32>
    %67 = vector.extract_strided_slice %0 {offsets = [0, 640], sizes = [2, 384], strides = [1, 1]} : vector<2x1024xbf16> to vector<2x384xbf16>
    %c6 = arith.constant 6 : index
    %c0_19 = arith.constant 0 : index
    %c0_20 = arith.constant 0 : index
    %68 = vector.load %arg1[%c6, %c0_19, %c0_20] : memref<8x384x256xbf16, #tpu.memory_space<vmem>>, vector<1x384x256xbf16>
    %69 = vector.shape_cast %68 : vector<1x384x256xbf16> to vector<384x256xbf16>
    %cst_21 = arith.constant dense<0.000000e+00> : vector<2x256xf32>
    %70 = tpu.matmul %67, %69, %cst_21 {dimension_numbers = #tpu.dot_dimension_numbers<[1], [0], [0], [1], [0, 0, 1, 1], [], []>} : vector<2x384xbf16>, vector<384x256xbf16>, vector<2x256xf32> -> vector<2x256xf32>
    %71 = vector.extract_strided_slice %70 {offsets = [0, 0], sizes = [2, 64], strides = [1, 1]} : vector<2x256xf32> to vector<2x64xf32>
    %72 = vector.extract_strided_slice %70 {offsets = [0, 64], sizes = [2, 64], strides = [1, 1]} : vector<2x256xf32> to vector<2x64xf32>
    %73 = arith.maximumf %71, %72 : vector<2x64xf32>
    %74 = vector.extract_strided_slice %70 {offsets = [0, 128], sizes = [2, 64], strides = [1, 1]} : vector<2x256xf32> to vector<2x64xf32>
    %75 = vector.extract_strided_slice %70 {offsets = [0, 192], sizes = [2, 64], strides = [1, 1]} : vector<2x256xf32> to vector<2x64xf32>
    %76 = arith.maximumf %74, %75 : vector<2x64xf32>
    %77 = arith.maximumf %73, %76 : vector<2x64xf32>
    %78 = vector.extract_strided_slice %0 {offsets = [0, 640], sizes = [2, 384], strides = [1, 1]} : vector<2x1024xbf16> to vector<2x384xbf16>
    %c7 = arith.constant 7 : index
    %c0_22 = arith.constant 0 : index
    %c0_23 = arith.constant 0 : index
    %79 = vector.load %arg1[%c7, %c0_22, %c0_23] : memref<8x384x256xbf16, #tpu.memory_space<vmem>>, vector<1x384x256xbf16>
    %80 = vector.shape_cast %79 : vector<1x384x256xbf16> to vector<384x256xbf16>
    %cst_24 = arith.constant dense<0.000000e+00> : vector<2x256xf32>
    %81 = tpu.matmul %78, %80, %cst_24 {dimension_numbers = #tpu.dot_dimension_numbers<[1], [0], [0], [1], [0, 0, 1, 1], [], []>} : vector<2x384xbf16>, vector<384x256xbf16>, vector<2x256xf32> -> vector<2x256xf32>
    %82 = vector.extract_strided_slice %81 {offsets = [0, 0], sizes = [2, 64], strides = [1, 1]} : vector<2x256xf32> to vector<2x64xf32>
    %83 = vector.extract_strided_slice %81 {offsets = [0, 64], sizes = [2, 64], strides = [1, 1]} : vector<2x256xf32> to vector<2x64xf32>
    %84 = arith.maximumf %82, %83 : vector<2x64xf32>
    %85 = vector.extract_strided_slice %81 {offsets = [0, 128], sizes = [2, 64], strides = [1, 1]} : vector<2x256xf32> to vector<2x64xf32>
    %86 = vector.extract_strided_slice %81 {offsets = [0, 192], sizes = [2, 64], strides = [1, 1]} : vector<2x256xf32> to vector<2x64xf32>
    %87 = arith.maximumf %85, %86 : vector<2x64xf32>
    %88 = arith.maximumf %84, %87 : vector<2x64xf32>
    %89 = tpu.concatenate %11, %22, %33, %44, %55, %66, %77, %88 in 1 : vector<2x64xf32>, vector<2x64xf32>, vector<2x64xf32>, vector<2x64xf32>, vector<2x64xf32>, vector<2x64xf32>, vector<2x64xf32>, vector<2x64xf32> -> vector<2x512xf32>
    %c0_25 = arith.constant 0 : index
    %c0_26 = arith.constant 0 : index
    %90 = vector.load %arg2[%c0_25, %c0_26] : memref<1x512xf32, #tpu.memory_space<vmem>>, vector<1x512xf32>
    %91 = vector.broadcast %90 : vector<1x512xf32> to vector<2x512xf32>
    %92 = arith.addf %89, %91 : vector<2x512xf32>
    %cst_27 = arith.constant 0.000000e+00 : f32
    %93 = vector.broadcast %cst_27 : f32 to vector<2x512xf32>
    %94 = arith.cmpf ogt, %92, %93 : vector<2x512xf32>
    %cst_28 = arith.constant 0.000000e+00 : f32
    %95 = vector.broadcast %cst_28 : f32 to vector<2x512xf32>
    %96 = arith.minimumf %92, %95 : vector<2x512xf32>
    %97 = math.exp %96 : vector<2x512xf32>
    %cst_29 = arith.constant 1.000000e+00 : f32
    %98 = vector.broadcast %cst_29 : f32 to vector<2x512xf32>
    %99 = arith.subf %97, %98 : vector<2x512xf32>
    %100 = arith.select %94, %92, %99 : vector<2x512xi1>, vector<2x512xf32>
    %101 = arith.truncf %100 : vector<2x512xf32> to vector<2x512xbf16>
    %102 = vector.extract_strided_slice %101 {offsets = [0, 0], sizes = [2, 384], strides = [1, 1]} : vector<2x512xbf16> to vector<2x384xbf16>
    %c0_30 = arith.constant 0 : index
    %c0_31 = arith.constant 0 : index
    %c0_32 = arith.constant 0 : index
    %103 = vector.load %arg3[%c0_30, %c0_31, %c0_32] : memref<4x384x256xbf16, #tpu.memory_space<vmem>>, vector<1x384x256xbf16>
    %104 = vector.shape_cast %103 : vector<1x384x256xbf16> to vector<384x256xbf16>
    %cst_33 = arith.constant dense<0.000000e+00> : vector<2x256xf32>
    %105 = tpu.matmul %102, %104, %cst_33 {dimension_numbers = #tpu.dot_dimension_numbers<[1], [0], [0], [1], [0, 0, 1, 1], [], []>} : vector<2x384xbf16>, vector<384x256xbf16>, vector<2x256xf32> -> vector<2x256xf32>
    %106 = vector.extract_strided_slice %105 {offsets = [0, 0], sizes = [2, 64], strides = [1, 1]} : vector<2x256xf32> to vector<2x64xf32>
    %107 = vector.extract_strided_slice %105 {offsets = [0, 64], sizes = [2, 64], strides = [1, 1]} : vector<2x256xf32> to vector<2x64xf32>
    %108 = arith.maximumf %106, %107 : vector<2x64xf32>
    %109 = vector.extract_strided_slice %105 {offsets = [0, 128], sizes = [2, 64], strides = [1, 1]} : vector<2x256xf32> to vector<2x64xf32>
    %110 = vector.extract_strided_slice %105 {offsets = [0, 192], sizes = [2, 64], strides = [1, 1]} : vector<2x256xf32> to vector<2x64xf32>
    %111 = arith.maximumf %109, %110 : vector<2x64xf32>
    %112 = arith.maximumf %108, %111 : vector<2x64xf32>
    %113 = vector.extract_strided_slice %101 {offsets = [0, 0], sizes = [2, 384], strides = [1, 1]} : vector<2x512xbf16> to vector<2x384xbf16>
    %c1_34 = arith.constant 1 : index
    %c0_35 = arith.constant 0 : index
    %c0_36 = arith.constant 0 : index
    %114 = vector.load %arg3[%c1_34, %c0_35, %c0_36] : memref<4x384x256xbf16, #tpu.memory_space<vmem>>, vector<1x384x256xbf16>
    %115 = vector.shape_cast %114 : vector<1x384x256xbf16> to vector<384x256xbf16>
    %cst_37 = arith.constant dense<0.000000e+00> : vector<2x256xf32>
    %116 = tpu.matmul %113, %115, %cst_37 {dimension_numbers = #tpu.dot_dimension_numbers<[1], [0], [0], [1], [0, 0, 1, 1], [], []>} : vector<2x384xbf16>, vector<384x256xbf16>, vector<2x256xf32> -> vector<2x256xf32>
    %117 = vector.extract_strided_slice %116 {offsets = [0, 0], sizes = [2, 64], strides = [1, 1]} : vector<2x256xf32> to vector<2x64xf32>
    %118 = vector.extract_strided_slice %116 {offsets = [0, 64], sizes = [2, 64], strides = [1, 1]} : vector<2x256xf32> to vector<2x64xf32>
    %119 = arith.maximumf %117, %118 : vector<2x64xf32>
    %120 = vector.extract_strided_slice %116 {offsets = [0, 128], sizes = [2, 64], strides = [1, 1]} : vector<2x256xf32> to vector<2x64xf32>
    %121 = vector.extract_strided_slice %116 {offsets = [0, 192], sizes = [2, 64], strides = [1, 1]} : vector<2x256xf32> to vector<2x64xf32>
    %122 = arith.maximumf %120, %121 : vector<2x64xf32>
    %123 = arith.maximumf %119, %122 : vector<2x64xf32>
    %124 = vector.extract_strided_slice %101 {offsets = [0, 128], sizes = [2, 384], strides = [1, 1]} : vector<2x512xbf16> to vector<2x384xbf16>
    %c2_38 = arith.constant 2 : index
    %c0_39 = arith.constant 0 : index
    %c0_40 = arith.constant 0 : index
    %125 = vector.load %arg3[%c2_38, %c0_39, %c0_40] : memref<4x384x256xbf16, #tpu.memory_space<vmem>>, vector<1x384x256xbf16>
    %126 = vector.shape_cast %125 : vector<1x384x256xbf16> to vector<384x256xbf16>
    %cst_41 = arith.constant dense<0.000000e+00> : vector<2x256xf32>
    %127 = tpu.matmul %124, %126, %cst_41 {dimension_numbers = #tpu.dot_dimension_numbers<[1], [0], [0], [1], [0, 0, 1, 1], [], []>} : vector<2x384xbf16>, vector<384x256xbf16>, vector<2x256xf32> -> vector<2x256xf32>
    %128 = vector.extract_strided_slice %127 {offsets = [0, 0], sizes = [2, 64], strides = [1, 1]} : vector<2x256xf32> to vector<2x64xf32>
    %129 = vector.extract_strided_slice %127 {offsets = [0, 64], sizes = [2, 64], strides = [1, 1]} : vector<2x256xf32> to vector<2x64xf32>
    %130 = arith.maximumf %128, %129 : vector<2x64xf32>
    %131 = vector.extract_strided_slice %127 {offsets = [0, 128], sizes = [2, 64], strides = [1, 1]} : vector<2x256xf32> to vector<2x64xf32>
    %132 = vector.extract_strided_slice %127 {offsets = [0, 192], sizes = [2, 64], strides = [1, 1]} : vector<2x256xf32> to vector<2x64xf32>
    %133 = arith.maximumf %131, %132 : vector<2x64xf32>
    %134 = arith.maximumf %130, %133 : vector<2x64xf32>
    %135 = vector.extract_strided_slice %101 {offsets = [0, 128], sizes = [2, 384], strides = [1, 1]} : vector<2x512xbf16> to vector<2x384xbf16>
    %c3_42 = arith.constant 3 : index
    %c0_43 = arith.constant 0 : index
    %c0_44 = arith.constant 0 : index
    %136 = vector.load %arg3[%c3_42, %c0_43, %c0_44] : memref<4x384x256xbf16, #tpu.memory_space<vmem>>, vector<1x384x256xbf16>
    %137 = vector.shape_cast %136 : vector<1x384x256xbf16> to vector<384x256xbf16>
    %cst_45 = arith.constant dense<0.000000e+00> : vector<2x256xf32>
    %138 = tpu.matmul %135, %137, %cst_45 {dimension_numbers = #tpu.dot_dimension_numbers<[1], [0], [0], [1], [0, 0, 1, 1], [], []>} : vector<2x384xbf16>, vector<384x256xbf16>, vector<2x256xf32> -> vector<2x256xf32>
    %139 = vector.extract_strided_slice %138 {offsets = [0, 0], sizes = [2, 64], strides = [1, 1]} : vector<2x256xf32> to vector<2x64xf32>
    %140 = vector.extract_strided_slice %138 {offsets = [0, 64], sizes = [2, 64], strides = [1, 1]} : vector<2x256xf32> to vector<2x64xf32>
    %141 = arith.maximumf %139, %140 : vector<2x64xf32>
    %142 = vector.extract_strided_slice %138 {offsets = [0, 128], sizes = [2, 64], strides = [1, 1]} : vector<2x256xf32> to vector<2x64xf32>
    %143 = vector.extract_strided_slice %138 {offsets = [0, 192], sizes = [2, 64], strides = [1, 1]} : vector<2x256xf32> to vector<2x64xf32>
    %144 = arith.maximumf %142, %143 : vector<2x64xf32>
    %145 = arith.maximumf %141, %144 : vector<2x64xf32>
    %146 = tpu.concatenate %112, %123, %134, %145 in 1 : vector<2x64xf32>, vector<2x64xf32>, vector<2x64xf32>, vector<2x64xf32> -> vector<2x256xf32>
    %c0_46 = arith.constant 0 : index
    %c0_47 = arith.constant 0 : index
    %147 = vector.load %arg4[%c0_46, %c0_47] : memref<1x256xf32, #tpu.memory_space<vmem>>, vector<1x256xf32>
    %148 = vector.broadcast %147 : vector<1x256xf32> to vector<2x256xf32>
    %149 = arith.addf %146, %148 : vector<2x256xf32>
    %cst_48 = arith.constant 0.000000e+00 : f32
    %150 = vector.broadcast %cst_48 : f32 to vector<2x256xf32>
    %151 = arith.cmpf ogt, %149, %150 : vector<2x256xf32>
    %cst_49 = arith.constant 0.000000e+00 : f32
    %152 = vector.broadcast %cst_49 : f32 to vector<2x256xf32>
    %153 = arith.minimumf %149, %152 : vector<2x256xf32>
    %154 = math.exp %153 : vector<2x256xf32>
    %cst_50 = arith.constant 1.000000e+00 : f32
    %155 = vector.broadcast %cst_50 : f32 to vector<2x256xf32>
    %156 = arith.subf %154, %155 : vector<2x256xf32>
    %157 = arith.select %151, %149, %156 : vector<2x256xi1>, vector<2x256xf32>
    %158 = arith.truncf %157 : vector<2x256xf32> to vector<2x256xbf16>
    %c0_51 = arith.constant 0 : index
    %c0_52 = arith.constant 0 : index
    %c0_53 = arith.constant 0 : index
    %159 = vector.load %arg5[%c0_51, %c0_52, %c0_53] : memref<2x256x256xbf16, #tpu.memory_space<vmem>>, vector<1x256x256xbf16>
    %160 = vector.shape_cast %159 : vector<1x256x256xbf16> to vector<256x256xbf16>
    %cst_54 = arith.constant dense<0.000000e+00> : vector<2x256xf32>
    %161 = tpu.matmul %158, %160, %cst_54 {dimension_numbers = #tpu.dot_dimension_numbers<[1], [0], [0], [1], [0, 0, 1, 1], [], []>} : vector<2x256xbf16>, vector<256x256xbf16>, vector<2x256xf32> -> vector<2x256xf32>
    %162 = vector.extract_strided_slice %161 {offsets = [0, 0], sizes = [2, 64], strides = [1, 1]} : vector<2x256xf32> to vector<2x64xf32>
    %163 = vector.extract_strided_slice %161 {offsets = [0, 64], sizes = [2, 64], strides = [1, 1]} : vector<2x256xf32> to vector<2x64xf32>
    %164 = arith.maximumf %162, %163 : vector<2x64xf32>
    %165 = vector.extract_strided_slice %161 {offsets = [0, 128], sizes = [2, 64], strides = [1, 1]} : vector<2x256xf32> to vector<2x64xf32>
    %166 = vector.extract_strided_slice %161 {offsets = [0, 192], sizes = [2, 64], strides = [1, 1]} : vector<2x256xf32> to vector<2x64xf32>
    %167 = arith.maximumf %165, %166 : vector<2x64xf32>
    %168 = arith.maximumf %164, %167 : vector<2x64xf32>
    %c1_55 = arith.constant 1 : index
    %c0_56 = arith.constant 0 : index
    %c0_57 = arith.constant 0 : index
    %169 = vector.load %arg5[%c1_55, %c0_56, %c0_57] : memref<2x256x256xbf16, #tpu.memory_space<vmem>>, vector<1x256x256xbf16>
    %170 = vector.shape_cast %169 : vector<1x256x256xbf16> to vector<256x256xbf16>
    %cst_58 = arith.constant dense<0.000000e+00> : vector<2x256xf32>
    %171 = tpu.matmul %158, %170, %cst_58 {dimension_numbers = #tpu.dot_dimension_numbers<[1], [0], [0], [1], [0, 0, 1, 1], [], []>} : vector<2x256xbf16>, vector<256x256xbf16>, vector<2x256xf32> -> vector<2x256xf32>
    %172 = vector.extract_strided_slice %171 {offsets = [0, 0], sizes = [2, 64], strides = [1, 1]} : vector<2x256xf32> to vector<2x64xf32>
    %173 = vector.extract_strided_slice %171 {offsets = [0, 64], sizes = [2, 64], strides = [1, 1]} : vector<2x256xf32> to vector<2x64xf32>
    %174 = arith.maximumf %172, %173 : vector<2x64xf32>
    %175 = vector.extract_strided_slice %171 {offsets = [0, 128], sizes = [2, 64], strides = [1, 1]} : vector<2x256xf32> to vector<2x64xf32>
    %176 = vector.extract_strided_slice %171 {offsets = [0, 192], sizes = [2, 64], strides = [1, 1]} : vector<2x256xf32> to vector<2x64xf32>
    %177 = arith.maximumf %175, %176 : vector<2x64xf32>
    %178 = arith.maximumf %174, %177 : vector<2x64xf32>
    %179 = tpu.concatenate %168, %178 in 1 : vector<2x64xf32>, vector<2x64xf32> -> vector<2x128xf32>
    %c0_59 = arith.constant 0 : index
    %c0_60 = arith.constant 0 : index
    %180 = vector.load %arg6[%c0_59, %c0_60] : memref<1x128xf32, #tpu.memory_space<vmem>>, vector<1x128xf32>
    %181 = vector.broadcast %180 : vector<1x128xf32> to vector<2x128xf32>
    %182 = arith.addf %179, %181 : vector<2x128xf32>
    %cst_61 = arith.constant 0.000000e+00 : f32
    %183 = vector.broadcast %cst_61 : f32 to vector<2x128xf32>
    %184 = arith.cmpf ogt, %182, %183 : vector<2x128xf32>
    %cst_62 = arith.constant 0.000000e+00 : f32
    %185 = vector.broadcast %cst_62 : f32 to vector<2x128xf32>
    %186 = arith.minimumf %182, %185 : vector<2x128xf32>
    %187 = math.exp %186 : vector<2x128xf32>
    %cst_63 = arith.constant 1.000000e+00 : f32
    %188 = vector.broadcast %cst_63 : f32 to vector<2x128xf32>
    %189 = arith.subf %187, %188 : vector<2x128xf32>
    %190 = arith.select %184, %182, %189 : vector<2x128xi1>, vector<2x128xf32>
    %191 = arith.truncf %190 : vector<2x128xf32> to vector<2x128xbf16>
    %c0_64 = arith.constant 0 : index
    %c0_65 = arith.constant 0 : index
    %192 = vector.load %arg7[%c0_64, %c0_65] : memref<128x64xbf16, #tpu.memory_space<vmem>>, vector<128x64xbf16>
    %cst_66 = arith.constant dense<0.000000e+00> : vector<2x64xf32>
    %193 = tpu.matmul %191, %192, %cst_66 {dimension_numbers = #tpu.dot_dimension_numbers<[1], [0], [0], [1], [0, 0, 1, 1], [], []>} : vector<2x128xbf16>, vector<128x64xbf16>, vector<2x64xf32> -> vector<2x64xf32>
    %c0_67 = arith.constant 0 : index
    %c0_68 = arith.constant 0 : index
    %194 = vector.load %arg8[%c0_67, %c0_68] : memref<1x64xf32, #tpu.memory_space<vmem>>, vector<1x64xf32>
    %195 = vector.broadcast %194 : vector<1x64xf32> to vector<2x64xf32>
    %196 = arith.addf %193, %195 : vector<2x64xf32>
    %197 = vector.extract_strided_slice %196 {offsets = [0, 0], sizes = [2, 32], strides = [1, 1]} : vector<2x64xf32> to vector<2x32xf32>
    %198 = vector.extract_strided_slice %196 {offsets = [0, 32], sizes = [2, 32], strides = [1, 1]} : vector<2x64xf32> to vector<2x32xf32>
    %c0_69 = arith.constant 0 : index
    %c0_70 = arith.constant 0 : index
    %199 = vector.load %arg9[%c0_69, %c0_70] : memref<2x32xf32, #tpu.memory_space<vmem>>, vector<2x32xf32>
    %cst_71 = arith.constant 5.000000e-01 : f32
    %200 = vector.broadcast %cst_71 : f32 to vector<2x32xf32>
    %201 = arith.mulf %200, %198 : vector<2x32xf32>
    %202 = math.exp %201 : vector<2x32xf32>
    %203 = arith.mulf %199, %202 : vector<2x32xf32>
    %204 = arith.addf %197, %203 : vector<2x32xf32>
    %cst_72 = arith.constant 0.000000e+00 : f32
    %205 = vector.broadcast %cst_72 : f32 to vector<2x32xf32>
    %206 = tpu.concatenate %197, %198, %204, %205 in 1 : vector<2x32xf32>, vector<2x32xf32>, vector<2x32xf32>, vector<2x32xf32> -> vector<2x128xf32>
    %c0_73 = arith.constant 0 : index
    %c0_74 = arith.constant 0 : index
    %207 = vector.load %arg10[%c0_73, %c0_74] : memref<2x128xf32, #tpu.memory_space<vmem>>, vector<2x128xf32>
    tpu.vector_store %arg10[%c0_73, %c0_74], %206 {strides = array<i32>} : memref<2x128xf32, #tpu.memory_space<vmem>>, vector<2x128xf32>,
    return
  }
}

</mosaic_0001>

<llo_original>
// kernel: tpu_custom_call.1
$region0: #{tpu_custom_call.1}
  #allocation0 [shape = 'u32[]', space=smem, size = 0x4, offset = 0x4, fixed_abs, tag = 'smem constant byte address 0x4 - core index']
  #allocation1 [shape = 'u32[144,128]{1,0:T(1,128)}', space=vmem, size = 0x12000, scoped, tag = 'internal scratch']
  %s0 = inlined_call_operand.hbm [shape: bf16[2,1024], index: 0, kind: input, shape index: {}]
  %s1 = inlined_call_operand.hbm [shape: bf16[8,384,256], index: 1, kind: input, shape index: {}]
  %s2 = inlined_call_operand.hbm [shape: f32[1,512], index: 2, kind: input, shape index: {}]
  %s3 = inlined_call_operand.hbm [shape: bf16[4,384,256], index: 3, kind: input, shape index: {}]
  %s4 = inlined_call_operand.hbm [shape: f32[1,256], index: 4, kind: input, shape index: {}]
  %s5 = inlined_call_operand.hbm [shape: bf16[2,256,256], index: 5, kind: input, shape index: {}]
  %s6 = inlined_call_operand.hbm [shape: f32[1,128], index: 6, kind: input, shape index: {}]
  %s7 = inlined_call_operand.vmem [shape: bf16[128,64], index: 7, kind: input, shape index: {}]
  %s8 = inlined_call_operand.hbm [shape: f32[1,64], index: 8, kind: input, shape index: {}]
  %s9 = inlined_call_operand.hbm [shape: f32[2,32], index: 9, kind: input, shape index: {}]
  %s10 = inlined_call_operand.hbm [shape: f32[2,128], index: 10, kind: output, shape index: {}]
  %s11 = sld [smem:[#allocation0]]
  $region86: #{tpu_custom_call.1} parent=0
    _
  %s13 = ssub.s32 1, %s11
  %s14 = scalar_select 0, %s13, %s11
  $region1: #{tpu_custom_call.1} parent=0
    #allocation2 [shape = 'u8[4096]{0}', space=vmem, size = 0x1000, scoped, tag = 'input window, operand 0, single buffered']
    #allocation3 [shape = 's32[1]{0}', space=sflag, size = 0x4, scoped, tag = 'scoped memory for tpu_custom_call.1']
    #allocation4 [shape = 's32[1]{0}', space=sflag, size = 0x4, scoped, tag = 'scoped memory for tpu_custom_call.1']
    #allocation5 [shape = 'u8[1572864]{0}', space=vmem, size = 0x180000, scoped, tag = 'input window, operand 1, single buffered']
    #allocation6 [shape = 's32[1]{0}', space=sflag, size = 0x4, scoped, tag = 'scoped memory for tpu_custom_call.1']
    #allocation7 [shape = 'u8[2048]{0}', space=vmem, size = 0x800, scoped, tag = 'input window, operand 2, single buffered']
    #allocation8 [shape = 'u8[786432]{0}', space=vmem, size = 0xc0000, scoped, tag = 'input window, operand 3, single buffered']
    #allocation9 [shape = 's32[1]{0}', space=sflag, size = 0x4, scoped, tag = 'scoped memory for tpu_custom_call.1']
    #allocation10 [shape = 'u8[1024]{0}', space=vmem, size = 0x400, scoped, tag = 'input window, operand 4, single buffered']
    #allocation11 [shape = 'u8[262144]{0}', space=vmem, size = 0x40000, scoped, tag = 'input window, operand 5, single buffered']
    #allocation12 [shape = 's32[1]{0}', space=sflag, size = 0x4, scoped, tag = 'scoped memory for tpu_custom_call.1']
    #allocation13 [shape = 'u8[512]{0}', space=vmem, size = 0x400, scoped, tag = 'input window, operand 6, single buffered']
    #allocation14 [shape = 'u8[512]{0}', space=vmem, size = 0x400, scoped, tag = 'input window, operand 8, single buffered']
    #allocation15 [shape = 's32[1]{0}', space=sflag, size = 0x4, scoped, tag = 'scoped memory for tpu_custom_call.1']
    #allocation16 [shape = 'u8[1024]{0}', space=vmem, size = 0x400, scoped, tag = 'input window, operand 9, single buffered']
    #allocation17 [shape = 'u8[1024]{0}', space=vmem, size = 0x400, scoped, tag = 'output window, operand 0, single buffered']
    %15 = vsyncpa [#allocation3], 0
    %16 = vsyncpa [#allocation6], 0
    %17 = vsyncpa [#allocation9], 0
    %18 = vsyncpa [#allocation12], 0
    %19 = vsyncpa [#allocation15], 0
    %20 = vsyncpa [#allocation4], 0
    // Predicated region
    $region2: #{tpu_custom_call.1} parent=1 // pred_check
      _
    $region3: #{tpu_custom_call.1} parent=1 // pred_check_branch
      %22 = sbr.rel (0) target = $region5
    $region4: #{tpu_custom_call.1} parent=1 // pred_region
      %s24 = ssub.s32 128, 128
      %25 = vsyncadd [#allocation3], %s24
      %s27 = sshll.u32 [#allocation2], 4
      %s28 = int_to_ptr.vmem [resolvable:$true] %s27
      %30 = dma.hbm_to_vmem [thread:$0]  %s0, 128, %s28, [#allocation3]
    $region5: #{tpu_custom_call.1} parent=1 // pred_fallthru
      _
    // Predicated region
    $region6: #{tpu_custom_call.1} parent=1 // pred_check
      _
    $region7: #{tpu_custom_call.1} parent=1 // pred_check_branch
      %32 = sbr.rel (0) target = $region9
    $region8: #{tpu_custom_call.1} parent=1 // pred_region
      %s34 = ssub.s32 49152, 49152
      %35 = vsyncadd [#allocation6], %s34
      %s36 = sshll.u32 [#allocation5], 4
      %s37 = int_to_ptr.vmem [resolvable:$true] %s36
      %42 = dma.hbm_to_vmem [thread:$0]  %s1, 49152, %s37, [#allocation6], 128, 128, 8
    $region9: #{tpu_custom_call.1} parent=1 // pred_fallthru
      _
    // Predicated region
    $region10: #{tpu_custom_call.1} parent=1 // pred_check
      _
    $region11: #{tpu_custom_call.1} parent=1 // pred_check_branch
      %44 = sbr.rel (0) target = $region13
    $region12: #{tpu_custom_call.1} parent=1 // pred_region
      %s46 = ssub.s32 64, 64
      %47 = vsyncadd [#allocation6], %s46
      %s49 = sshll.u32 [#allocation7], 4
      %s50 = int_to_ptr.vmem [resolvable:$true] %s49
      %52 = dma.hbm_to_vmem [thread:$0]  %s2, 64, %s50, [#allocation6]
    $region13: #{tpu_custom_call.1} parent=1 // pred_fallthru
      _
    // Predicated region
    $region14: #{tpu_custom_call.1} parent=1 // pred_check
      _
    $region15: #{tpu_custom_call.1} parent=1 // pred_check_branch
      %54 = sbr.rel (0) target = $region17
    $region16: #{tpu_custom_call.1} parent=1 // pred_region
      %s56 = ssub.s32 24576, 24576
      %57 = vsyncadd [#allocation9], %s56
      %s58 = sshll.u32 [#allocation8], 4
      %s59 = int_to_ptr.vmem [resolvable:$true] %s58
      %64 = dma.hbm_to_vmem [thread:$0]  %s3, 24576, %s59, [#allocation9], 128, 128, 8
    $region17: #{tpu_custom_call.1} parent=1 // pred_fallthru
      _
    // Predicated region
    $region18: #{tpu_custom_call.1} parent=1 // pred_check
      _
    $region19: #{tpu_custom_call.1} parent=1 // pred_check_branch
      %66 = sbr.rel (0) target = $region21
    $region20: #{tpu_custom_call.1} parent=1 // pred_region
      %s68 = ssub.s32 32, 32
      %69 = vsyncadd [#allocation9], %s68
      %s71 = sshll.u32 [#allocation10], 4
      %s72 = int_to_ptr.vmem [resolvable:$true] %s71
      %74 = dma.hbm_to_vmem [thread:$0]  %s4, 32, %s72, [#allocation9]
    $region21: #{tpu_custom_call.1} parent=1 // pred_fallthru
      _
    // Predicated region
    $region22: #{tpu_custom_call.1} parent=1 // pred_check
      _
    $region23: #{tpu_custom_call.1} parent=1 // pred_check_branch
      %76 = sbr.rel (0) target = $region25
    $region24: #{tpu_custom_call.1} parent=1 // pred_region
      %s78 = ssub.s32 8192, 8192
      %79 = vsyncadd [#allocation12], %s78
      %s80 = sshll.u32 [#allocation11], 4
      %s81 = int_to_ptr.vmem [resolvable:$true] %s80
      %86 = dma.hbm_to_vmem [thread:$0]  %s5, 8192, %s81, [#allocation12], 128, 128, 8
    $region25: #{tpu_custom_call.1} parent=1 // pred_fallthru
      _
    // Predicated region
    $region26: #{tpu_custom_call.1} parent=1 // pred_check
      _
    $region27: #{tpu_custom_call.1} parent=1 // pred_check_branch
      %88 = sbr.rel (0) target = $region29
    $region28: #{tpu_custom_call.1} parent=1 // pred_region
      %s90 = ssub.s32 16, 16
      %91 = vsyncadd [#allocation12], %s90
      %s93 = sshll.u32 [#allocation13], 4
      %s94 = int_to_ptr.vmem [resolvable:$true] %s93
      %96 = dma.hbm_to_vmem [thread:$0]  %s6, 16, %s94, [#allocation12]
    $region29: #{tpu_custom_call.1} parent=1 // pred_fallthru
      _
    // Predicated region
    $region30: #{tpu_custom_call.1} parent=1 // pred_check
      _
    $region31: #{tpu_custom_call.1} parent=1 // pred_check_branch
      %98 = sbr.rel (0) target = $region33
    $region32: #{tpu_custom_call.1} parent=1 // pred_region
      _
    $region33: #{tpu_custom_call.1} parent=1 // pred_fallthru
      _
    // Predicated region
    $region34: #{tpu_custom_call.1} parent=1 // pred_check
      _
    $region35: #{tpu_custom_call.1} parent=1 // pred_check_branch
      %100 = sbr.rel (0) target = $region37
    $region36: #{tpu_custom_call.1} parent=1 // pred_region
      %s102 = ssub.s32 16, 16
      %103 = vsyncadd [#allocation15], %s102
      %s105 = sshll.u32 [#allocation14], 4
      %s106 = int_to_ptr.vmem [resolvable:$true] %s105
      %108 = dma.hbm_to_vmem [thread:$0]  %s8, 16, %s106, [#allocation15]
    $region37: #{tpu_custom_call.1} parent=1 // pred_fallthru
      _
    // Predicated region
    $region38: #{tpu_custom_call.1} parent=1 // pred_check
      _
    $region39: #{tpu_custom_call.1} parent=1 // pred_check_branch
      %110 = sbr.rel (0) target = $region41
    $region40: #{tpu_custom_call.1} parent=1 // pred_region
      %s112 = ssub.s32 32, 32
      %113 = vsyncadd [#allocation15], %s112
      %s115 = sshll.u32 [#allocation16], 4
      %s116 = int_to_ptr.vmem [resolvable:$true] %s115
      %118 = dma.hbm_to_vmem [thread:$0]  %s9, 32, %s116, [#allocation15]
    $region41: #{tpu_custom_call.1} parent=1 // pred_fallthru
      _
    // Predicated region
    $region42: #{tpu_custom_call.1} parent=1 // pred_check
      _
    $region43: #{tpu_custom_call.1} parent=1 // pred_check_branch
      %120 = sbr.rel (0) target = $region45
    $region44: #{tpu_custom_call.1} parent=1 // pred_region
      %121 = dma.done [#allocation3], 128
    $region45: #{tpu_custom_call.1} parent=1 // pred_fallthru
      _
    // Predicated region
    $region46: #{tpu_custom_call.1} parent=1 // pred_check
      _
    $region47: #{tpu_custom_call.1} parent=1 // pred_check_branch
      %123 = sbr.rel (0) target = $region49
    $region48: #{tpu_custom_call.1} parent=1 // pred_region
      %124 = dma.done [#allocation6], 49152
    $region49: #{tpu_custom_call.1} parent=1 // pred_fallthru
      _
    // Predicated region
    $region50: #{tpu_custom_call.1} parent=1 // pred_check
      _
    $region51: #{tpu_custom_call.1} parent=1 // pred_check_branch
      %126 = sbr.rel (0) target = $region53
    $region52: #{tpu_custom_call.1} parent=1 // pred_region
      %127 = dma.done [#allocation6], 64
    $region53: #{tpu_custom_call.1} parent=1 // pred_fallthru
      _
    // Predicated region
    $region54: #{tpu_custom_call.1} parent=1 // pred_check
      _
    $region55: #{tpu_custom_call.1} parent=1 // pred_check_branch
      %129 = sbr.rel (0) target = $region57
    $region56: #{tpu_custom_call.1} parent=1 // pred_region
      %130 = dma.done [#allocation9], 24576
    $region57: #{tpu_custom_call.1} parent=1 // pred_fallthru
      _
    // Predicated region
    $region58: #{tpu_custom_call.1} parent=1 // pred_check
      _
    $region59: #{tpu_custom_call.1} parent=1 // pred_check_branch
      %132 = sbr.rel (0) target = $region61
    $region60: #{tpu_custom_call.1} parent=1 // pred_region
      %133 = dma.done [#allocation9], 32
    $region61: #{tpu_custom_call.1} parent=1 // pred_fallthru
      _
    // Predicated region
    $region62: #{tpu_custom_call.1} parent=1 // pred_check
      _
    $region63: #{tpu_custom_call.1} parent=1 // pred_check_branch
      %135 = sbr.rel (0) target = $region65
    $region64: #{tpu_custom_call.1} parent=1 // pred_region
      %136 = dma.done [#allocation12], 8192
    $region65: #{tpu_custom_call.1} parent=1 // pred_fallthru
      _
    // Predicated region
    $region66: #{tpu_custom_call.1} parent=1 // pred_check
      _
    $region67: #{tpu_custom_call.1} parent=1 // pred_check_branch
      %138 = sbr.rel (0) target = $region69
    $region68: #{tpu_custom_call.1} parent=1 // pred_region
      %139 = dma.done [#allocation12], 16
    $region69: #{tpu_custom_call.1} parent=1 // pred_fallthru
      _
    // Predicated region
    $region70: #{tpu_custom_call.1} parent=1 // pred_check
      _
    $region71: #{tpu_custom_call.1} parent=1 // pred_check_branch
      %141 = sbr.rel (0) target = $region73
    $region72: #{tpu_custom_call.1} parent=1 // pred_region
      %142 = dma.done [#allocation15], 16
    $region73: #{tpu_custom_call.1} parent=1 // pred_fallthru
      _
    // Predicated region
    $region74: #{tpu_custom_call.1} parent=1 // pred_check
      _
    $region75: #{tpu_custom_call.1} parent=1 // pred_check_branch
      %144 = sbr.rel (0) target = $region77
    $region76: #{tpu_custom_call.1} parent=1 // pred_region
      %145 = dma.done [#allocation15], 32
    $region77: #{tpu_custom_call.1} parent=1 // pred_fallthru
      _
    %v147 = vld [vmem:[#allocation2] sm:$0xff]
    %v148 = vld [vmem:[#allocation5] sm:$0xff]
    %v149 = vld [vmem:[#allocation5 + $0x8] sm:$0xff]
    %v150 = vld [vmem:[#allocation5 + $0x10] sm:$0xff]
    %v151 = vld [vmem:[#allocation5 + $0x18] sm:$0xff]
    %v152 = vld [vmem:[#allocation5 + $0x20] sm:$0xff]
    %v153 = vld [vmem:[#allocation5 + $0x28] sm:$0xff]
    %v154 = vld [vmem:[#allocation5 + $0x30] sm:$0xff]
    %v155 = vld [vmem:[#allocation5 + $0x38] sm:$0xff]
    %v156 = vld [vmem:[#allocation5 + $0x40] sm:$0xff]
    %v157 = vld [vmem:[#allocation5 + $0x48] sm:$0xff]
    %v158 = vld [vmem:[#allocation5 + $0x50] sm:$0xff]
    %v159 = vld [vmem:[#allocation5 + $0x58] sm:$0xff]
    %v160 = vld [vmem:[#allocation5 + $0x60] sm:$0xff]
    %v161 = vld [vmem:[#allocation5 + $0x68] sm:$0xff]
    %v162 = vld [vmem:[#allocation5 + $0x70] sm:$0xff]
    %v163 = vld [vmem:[#allocation5 + $0x78] sm:$0xff]
    %v164 = vld [vmem:[#allocation5 + $0x80] sm:$0xff]
    %v165 = vld [vmem:[#allocation5 + $0x88] sm:$0xff]
    %v166 = vld [vmem:[#allocation5 + $0x90] sm:$0xff]
    %v167 = vld [vmem:[#allocation5 + $0x98] sm:$0xff]
    %v168 = vld [vmem:[#allocation5 + $0xa0] sm:$0xff]
    %v169 = vld [vmem:[#allocation5 + $0xa8] sm:$0xff]
    %v170 = vld [vmem:[#allocation5 + $0xb0] sm:$0xff]
    %v171 = vld [vmem:[#allocation5 + $0xb8] sm:$0xff]
    %v172 = vld [vmem:[#allocation5 + $0xc0] sm:$0xff]
    %v173 = vld [vmem:[#allocation5 + $0xc8] sm:$0xff]
    %v174 = vld [vmem:[#allocation5 + $0xd0] sm:$0xff]
    %v175 = vld [vmem:[#allocation5 + $0xd8] sm:$0xff]
    %v176 = vld [vmem:[#allocation5 + $0xe0] sm:$0xff]
    %v177 = vld [vmem:[#allocation5 + $0xe8] sm:$0xff]
    %v178 = vld [vmem:[#allocation5 + $0xf0] sm:$0xff]
    %v179 = vld [vmem:[#allocation5 + $0xf8] sm:$0xff]
    %v180 = vld [vmem:[#allocation5 + $0x100] sm:$0xff]
    %v181 = vld [vmem:[#allocation5 + $0x108] sm:$0xff]
    %v182 = vld [vmem:[#allocation5 + $0x110] sm:$0xff]
    %v183 = vld [vmem:[#allocation5 + $0x118] sm:$0xff]
    %v184 = vld [vmem:[#allocation5 + $0x120] sm:$0xff]
    %v185 = vld [vmem:[#allocation5 + $0x128] sm:$0xff]
    %v186 = vld [vmem:[#allocation5 + $0x130] sm:$0xff]
    %v187 = vld [vmem:[#allocation5 + $0x138] sm:$0xff]
    %v188 = vld [vmem:[#allocation5 + $0x140] sm:$0xff]
    %v189 = vld [vmem:[#allocation5 + $0x148] sm:$0xff]
    %v190 = vld [vmem:[#allocation5 + $0x150] sm:$0xff]
    %v191 = vld [vmem:[#allocation5 + $0x158] sm:$0xff]
    %v192 = vld [vmem:[#allocation5 + $0x160] sm:$0xff]
    %v193 = vld [vmem:[#allocation5 + $0x168] sm:$0xff]
    %v194 = vld [vmem:[#allocation5 + $0x170] sm:$0xff]
    %v195 = vld [vmem:[#allocation5 + $0x178] sm:$0xff]
    %v198 = vunpack.c.l.s4 1966171168
    %v199 = vunpack.c.0.s8 %v198
    %v200 = vlaneseq
    %v201 = vshrl.u32 %v200, 7
    %v202 = vsub.s32 %v199, %v201
    %v203 = vrot.slane %v147, %v202
    %v204 = vcombine.high %v203, %v203
    %v206 = vunpack.c.l.s4 1966171168
    %v207 = vunpack.c.0.s8 %v206
    %v208 = vlaneseq
    %v209 = vshrl.u32 %v208, 7
    %v210 = vsub.s32 %v207, %v209
    %v211 = vrot.slane %v203, %v210
    %v213 = vunpack.c.l.s4 1966171168
    %v214 = vunpack.c.0.s8 %v213
    %v215 = vlaneseq
    %v216 = vshrl.u32 %v215, 7
    %v217 = vsub.s32 %v214, %v216
    %v218 = vrot.slane %v204, %v217
    %v219 = vcombine.high %v211, %v211
    %v271 = vunpack.c.l.b16 %v148
    %v272 = vunpack.c.h.b16 %v148
    %v273 = vunpack.c.l.b16 %v149
    %v274 = vunpack.c.h.b16 %v149
    %v275 = vunpack.c.l.b16 %v150
    %v276 = vunpack.c.h.b16 %v150
    %v277 = vunpack.c.l.b16 %v151
    %v278 = vunpack.c.h.b16 %v151
    %v279 = vunpack.c.l.b16 %v152
    %v280 = vunpack.c.h.b16 %v152
    %v281 = vunpack.c.l.b16 %v153
    %v282 = vunpack.c.h.b16 %v153
    %v283 = vunpack.c.l.b16 %v154
    %v284 = vunpack.c.h.b16 %v154
    %v285 = vunpack.c.l.b16 %v155
    %v286 = vunpack.c.h.b16 %v155
    %v287 = vunpack.c.l.b16 %v156
    %v288 = vunpack.c.h.b16 %v156
    %v289 = vunpack.c.l.b16 %v157
    %v290 = vunpack.c.h.b16 %v157
    %v291 = vunpack.c.l.b16 %v158
    %v292 = vunpack.c.h.b16 %v158
    %v293 = vunpack.c.l.b16 %v159
    %v294 = vunpack.c.h.b16 %v159
    %v295 = vunpack.c.l.b16 %v160
    %v296 = vunpack.c.h.b16 %v160
    %v297 = vunpack.c.l.b16 %v161
    %v298 = vunpack.c.h.b16 %v161
    %v299 = vunpack.c.l.b16 %v162
    %v300 = vunpack.c.h.b16 %v162
    %v301 = vunpack.c.l.b16 %v163
    %v302 = vunpack.c.h.b16 %v163
    %v303 = vunpack.c.l.b16 %v164
    %v304 = vunpack.c.h.b16 %v164
    %v305 = vunpack.c.l.b16 %v165
    %v306 = vunpack.c.h.b16 %v165
    %v307 = vunpack.c.l.b16 %v166
    %v308 = vunpack.c.h.b16 %v166
    %v309 = vunpack.c.l.b16 %v167
    %v310 = vunpack.c.h.b16 %v167
    %v311 = vunpack.c.l.b16 %v168
    %v312 = vunpack.c.h.b16 %v168
    %v313 = vunpack.c.l.b16 %v169
    %v314 = vunpack.c.h.b16 %v169
    %v315 = vunpack.c.l.b16 %v170
    %v316 = vunpack.c.h.b16 %v170
    %v317 = vunpack.c.l.b16 %v171
    %v318 = vunpack.c.h.b16 %v171
    %v319 = vunpack.c.l.b16 %v172
    %v320 = vunpack.c.h.b16 %v172
    %v321 = vunpack.c.l.b16 %v173
    %v322 = vunpack.c.h.b16 %v173
    %v323 = vunpack.c.l.b16 %v174
    %v324 = vunpack.c.h.b16 %v174
    %v325 = vunpack.c.l.b16 %v175
    %v326 = vunpack.c.h.b16 %v175
    %v327 = vunpack.c.l.b16 %v176
    %v328 = vunpack.c.h.b16 %v176
    %v329 = vunpack.c.l.b16 %v177
    %v330 = vunpack.c.h.b16 %v177
    %v331 = vunpack.c.l.b16 %v178
    %v332 = vunpack.c.h.b16 %v178
    %v333 = vunpack.c.l.b16 %v179
    %v334 = vunpack.c.h.b16 %v179
    %v335 = vunpack.c.l.b16 %v180
    %v336 = vunpack.c.h.b16 %v180
    %v337 = vunpack.c.l.b16 %v181
    %v338 = vunpack.c.h.b16 %v181
    %v339 = vunpack.c.l.b16 %v182
    %v340 = vunpack.c.h.b16 %v182
    %v341 = vunpack.c.l.b16 %v183
    %v342 = vunpack.c.h.b16 %v183
    %v343 = vunpack.c.l.b16 %v184
    %v344 = vunpack.c.h.b16 %v184
    %v345 = vunpack.c.l.b16 %v185
    %v346 = vunpack.c.h.b16 %v185
    %v347 = vunpack.c.l.b16 %v186
    %v348 = vunpack.c.h.b16 %v186
    %v349 = vunpack.c.l.b16 %v187
    %v350 = vunpack.c.h.b16 %v187
    %v351 = vunpack.c.l.b16 %v188
    %v352 = vunpack.c.h.b16 %v188
    %v353 = vunpack.c.l.b16 %v189
    %v354 = vunpack.c.h.b16 %v189
    %v355 = vunpack.c.l.b16 %v190
    %v356 = vunpack.c.h.b16 %v190
    %v357 = vunpack.c.l.b16 %v191
    %v358 = vunpack.c.h.b16 %v191
    %v359 = vunpack.c.l.b16 %v192
    %v360 = vunpack.c.h.b16 %v192
    %v361 = vunpack.c.l.b16 %v193
    %v362 = vunpack.c.h.b16 %v193
    %v363 = vunpack.c.l.b16 %v194
    %v364 = vunpack.c.h.b16 %v194
    %v365 = vunpack.c.l.b16 %v195
    %v366 = vunpack.c.h.b16 %v195
    %v367 = vpack.c.b16 %v273, %v271
    %v368 = vpack.c.b16 %v274, %v272
    %v369 = vpack.c.b16 %v277, %v275
    %v370 = vpack.c.b16 %v278, %v276
    %v371 = vpack.c.b16 %v281, %v279
    %v372 = vpack.c.b16 %v282, %v280
    %v373 = vpack.c.b16 %v285, %v283
    %v374 = vpack.c.b16 %v286, %v284
    %v375 = vpack.c.b16 %v289, %v287
    %v376 = vpack.c.b16 %v290, %v288
    %v377 = vpack.c.b16 %v293, %v291
    %v378 = vpack.c.b16 %v294, %v292
    %v379 = vpack.c.b16 %v297, %v295
    %v380 = vpack.c.b16 %v298, %v296
    %v381 = vpack.c.b16 %v301, %v299
    %v382 = vpack.c.b16 %v302, %v300
    %v383 = vpack.c.b16 %v305, %v303
    %v384 = vpack.c.b16 %v306, %v304
    %v385 = vpack.c.b16 %v309, %v307
    %v386 = vpack.c.b16 %v310, %v308
    %v387 = vpack.c.b16 %v313, %v311
    %v388 = vpack.c.b16 %v314, %v312
    %v389 = vpack.c.b16 %v317, %v315
    %v390 = vpack.c.b16 %v318, %v316
    %v391 = vpack.c.b16 %v321, %v319
    %v392 = vpack.c.b16 %v322, %v320
    %v393 = vpack.c.b16 %v325, %v323
    %v394 = vpack.c.b16 %v326, %v324
    %v395 = vpack.c.b16 %v329, %v327
    %v396 = vpack.c.b16 %v330, %v328
    %v397 = vpack.c.b16 %v333, %v331
    %v398 = vpack.c.b16 %v334, %v332
    %v399 = vpack.c.b16 %v337, %v335
    %v400 = vpack.c.b16 %v338, %v336
    %v401 = vpack.c.b16 %v341, %v339
    %v402 = vpack.c.b16 %v342, %v340
    %v403 = vpack.c.b16 %v345, %v343
    %v404 = vpack.c.b16 %v346, %v344
    %v405 = vpack.c.b16 %v349, %v347
    %v406 = vpack.c.b16 %v350, %v348
    %v407 = vpack.c.b16 %v353, %v351
    %v408 = vpack.c.b16 %v354, %v352
    %v409 = vpack.c.b16 %v357, %v355
    %v410 = vpack.c.b16 %v358, %v356
    %v411 = vpack.c.b16 %v361, %v359
    %v412 = vpack.c.b16 %v362, %v360
    %v413 = vpack.c.b16 %v365, %v363
    %v414 = vpack.c.b16 %v366, %v364
    %463 = vmatprep.subr.bf16.mxu0 %v368
    %464 = vmatpush1.bf16.msra.mxu0 %v367
    %465 = vmatprep.subr.bf16.mxu0 %v370
    %466 = vmatpush1.bf16.msra.mxu0 %v369
    %467 = vmatprep.subr.bf16.mxu0 %v372
    %468 = vmatpush1.bf16.msra.mxu0 %v371
    %469 = vmatprep.subr.bf16.mxu0 %v374
    %470 = vmatpush1.bf16.msra.mxu0 %v373
    %471 = vmatprep.subr.bf16.mxu0 %v376
    %472 = vmatpush1.bf16.msra.mxu0 %v375
    %473 = vmatprep.subr.bf16.mxu0 %v378
    %474 = vmatpush1.bf16.msra.mxu0 %v377
    %475 = vmatprep.subr.bf16.mxu0 %v380
    %476 = vmatpush1.bf16.msra.mxu0 %v379
    %477 = vmatprep.subr.bf16.mxu0 %v382
    %478 = vmatpush1.bf16.msra.mxu0 %v381
    %479 = vmatprep.subr.bf16.mxu0 %v384
    %480 = vmatpush1.bf16.msra.mxu0 %v383
    %481 = vmatprep.subr.bf16.mxu0 %v386
    %482 = vmatpush1.bf16.msra.mxu0 %v385
    %483 = vmatprep.subr.bf16.mxu0 %v388
    %484 = vmatpush1.bf16.msra.mxu0 %v387
    %485 = vmatprep.subr.bf16.mxu0 %v390
    %486 = vmatpush1.bf16.msra.mxu0 %v389
    %487 = vmatprep.subr.bf16.mxu0 %v392
    %488 = vmatpush1.bf16.msra.mxu0 %v391
    %489 = vmatprep.subr.bf16.mxu0 %v394
    %490 = vmatpush1.bf16.msra.mxu0 %v393
    %491 = vmatprep.subr.bf16.mxu0 %v396
    %492 = vmatpush1.bf16.msra.mxu0 %v395
    %493 = vmatprep.subr.bf16.mxu0 %v398
    %494 = vmatpush1.bf16.msra.mxu0 %v397
    %495 = vmatprep.mubr.bf16.mxu0 %v218
    %496 = vmatmul.mubr.bf16.gmra.mrb[0].mxu0 %v211
    %v497 = vpop.f32.mrb[0].mxu0
    %v498 = vadd.f32 0.0, %v497
    %v499 = vpop.f32.mrb[0].mxu0
    %v500 = vadd.f32 0.0, %v499
    %v501 = vpop.f32.mrb[0].mxu0
    %v502 = vpop.f32.mrb[0].mxu0
    %503 = vdwg.mxu0
    %504 = vmatprep.subr.bf16.mxu0 %v400
    %505 = vmatpush1.bf16.msra.mxu0 %v399
    %506 = vmatprep.subr.bf16.mxu0 %v402
    %507 = vmatpush1.bf16.msra.mxu0 %v401
    %508 = vmatprep.subr.bf16.mxu0 %v404
    %509 = vmatpush1.bf16.msra.mxu0 %v403
    %510 = vmatprep.subr.bf16.mxu0 %v406
    %511 = vmatpush1.bf16.msra.mxu0 %v405
    %512 = vmatprep.subr.bf16.mxu0 %v408
    %513 = vmatpush1.bf16.msra.mxu0 %v407
    %514 = vmatprep.subr.bf16.mxu0 %v410
    %515 = vmatpush1.bf16.msra.mxu0 %v409
    %516 = vmatprep.subr.bf16.mxu0 %v412
    %517 = vmatpush1.bf16.msra.mxu0 %v411
    %518 = vmatprep.subr.bf16.mxu0 %v414
    %519 = vmatpush1.bf16.msra.mxu0 %v413
    %520 = vmatprep.subr.bf16.mxu0 0
    %521 = vmatpush1.bf16.msra.mxu0 0
    %522 = vmatprep.subr.bf16.mxu0 0
    %523 = vmatpush1.bf16.msra.mxu0 0
    %524 = vmatprep.subr.bf16.mxu0 0
    %525 = vmatpush1.bf16.msra.mxu0 0
    %526 = vmatprep.subr.bf16.mxu0 0
    %527 = vmatpush1.bf16.msra.mxu0 0
    %528 = vmatprep.subr.bf16.mxu0 0
    %529 = vmatpush1.bf16.msra.mxu0 0
    %530 = vmatprep.subr.bf16.mxu0 0
    %531 = vmatpush1.bf16.msra.mxu0 0
    %532 = vmatprep.subr.bf16.mxu0 0
    %533 = vmatpush1.bf16.msra.mxu0 0
    %534 = vmatprep.subr.bf16.mxu0 0
    %535 = vmatpush1.bf16.msra.mxu0 0
    %536 = vmatprep.mubr.bf16.mxu0 0
    %537 = vmatmul.mubr.bf16.gmra.mrb[0].mxu0 %v219
    %v538 = vpop.f32.mrb[0].mxu0
    %v539 = vadd.f32 %v498, %v538
    %v540 = vpop.f32.mrb[0].mxu0
    %v541 = vadd.f32 %v500, %v540
    %v542 = vpop.f32.mrb[0].mxu0
    %v543 = vpop.f32.mrb[0].mxu0
    %544 = vdwg.mxu0
    %546 = vrot.lane.b32.xlu0 %v539, 64
    %v547 = vpop.permute.xlu0 %546
    %v549 = vmax.f32 %v539, %v547
    %551 = vrot.lane.b32.xlu0 %v541, 64
    %v552 = vpop.permute.xlu0 %551
    %v554 = vmax.f32 %v541, %v552
    %v555 = vmax.f32 %v549, %v554
    %s556 = scalar_lea.vmem [#allocation5], 384
    %v557 = vld [vmem:[%s556] sm:$0xff]
    %v558 = vld [vmem:[%s556 + $0x8] sm:$0xff]
    %v559 = vld [vmem:[%s556 + $0x10] sm:$0xff]
    %v560 = vld [vmem:[%s556 + $0x18] sm:$0xff]
    %v561 = vld [vmem:[%s556 + $0x20] sm:$0xff]
    %v562 = vld [vmem:[%s556 + $0x28] sm:$0xff]
    %v563 = vld [vmem:[%s556 + $0x30] sm:$0xff]
    %v564 = vld [vmem:[%s556 + $0x38] sm:$0xff]
    %v565 = vld [vmem:[%s556 + $0x40] sm:$0xff]
    %v566 = vld [vmem:[%s556 + $0x48] sm:$0xff]
    %v567 = vld [vmem:[%s556 + $0x50] sm:$0xff]
    %v568 = vld [vmem:[%s556 + $0x58] sm:$0xff]
    %v569 = vld [vmem:[%s556 + $0x60] sm:$0xff]
    %v570 = vld [vmem:[%s556 + $0x68] sm:$0xff]
    %v571 = vld [vmem:[%s556 + $0x70] sm:$0xff]
    %v572 = vld [vmem:[%s556 + $0x78] sm:$0xff]
    %v573 = vld [vmem:[%s556 + $0x80] sm:$0xff]
    %v574 = vld [vmem:[%s556 + $0x88] sm:$0xff]
    %v575 = vld [vmem:[%s556 + $0x90] sm:$0xff]
    %v576 = vld [vmem:[%s556 + $0x98] sm:$0xff]
    %v577 = vld [vmem:[%s556 + $0xa0] sm:$0xff]
    %v578 = vld [vmem:[%s556 + $0xa8] sm:$0xff]
    %v579 = vld [vmem:[%s556 + $0xb0] sm:$0xff]
    %v580 = vld [vmem:[%s556 + $0xb8] sm:$0xff]
    %v581 = vld [vmem:[%s556 + $0xc0] sm:$0xff]
    %v582 = vld [vmem:[%s556 + $0xc8] sm:$0xff]
    %v583 = vld [vmem:[%s556 + $0xd0] sm:$0xff]
    %v584 = vld [vmem:[%s556 + $0xd8] sm:$0xff]
    %v585 = vld [vmem:[%s556 + $0xe0] sm:$0xff]
    %v586 = vld [vmem:[%s556 + $0xe8] sm:$0xff]
    %v587 = vld [vmem:[%s556 + $0xf0] sm:$0xff]
    %v588 = vld [vmem:[%s556 + $0xf8] sm:$0xff]
    %v589 = vld [vmem:[%s556 + $0x100] sm:$0xff]
    %v590 = vld [vmem:[%s556 + $0x108] sm:$0xff]
    %v591 = vld [vmem:[%s556 + $0x110] sm:$0xff]
    %v592 = vld [vmem:[%s556 + $0x118] sm:$0xff]
    %v593 = vld [vmem:[%s556 + $0x120] sm:$0xff]
    %v594 = vld [vmem:[%s556 + $0x128] sm:$0xff]
    %v595 = vld [vmem:[%s556 + $0x130] sm:$0xff]
    %v596 = vld [vmem:[%s556 + $0x138] sm:$0xff]
    %v597 = vld [vmem:[%s556 + $0x140] sm:$0xff]
    %v598 = vld [vmem:[%s556 + $0x148] sm:$0xff]
    %v599 = vld [vmem:[%s556 + $0x150] sm:$0xff]
    %v600 = vld [vmem:[%s556 + $0x158] sm:$0xff]
    %v601 = vld [vmem:[%s556 + $0x160] sm:$0xff]
    %v602 = vld [vmem:[%s556 + $0x168] sm:$0xff]
    %v603 = vld [vmem:[%s556 + $0x170] sm:$0xff]
    %v604 = vld [vmem:[%s556 + $0x178] sm:$0xff]
    %v653 = vunpack.c.l.b16 %v557
    %v654 = vunpack.c.h.b16 %v557
    %v655 = vunpack.c.l.b16 %v558
    %v656 = vunpack.c.h.b16 %v558
    %v657 = vunpack.c.l.b16 %v559
    %v658 = vunpack.c.h.b16 %v559
    %v659 = vunpack.c.l.b16 %v560
    %v660 = vunpack.c.h.b16 %v560
    %v661 = vunpack.c.l.b16 %v561
    %v662 = vunpack.c.h.b16 %v561
    %v663 = vunpack.c.l.b16 %v562
    %v664 = vunpack.c.h.b16 %v562
    %v665 = vunpack.c.l.b16 %v563
    %v666 = vunpack.c.h.b16 %v563
    %v667 = vunpack.c.l.b16 %v564
    %v668 = vunpack.c.h.b16 %v564
    %v669 = vunpack.c.l.b16 %v565
    %v670 = vunpack.c.h.b16 %v565
    %v671 = vunpack.c.l.b16 %v566
    %v672 = vunpack.c.h.b16 %v566
    %v673 = vunpack.c.l.b16 %v567
    %v674 = vunpack.c.h.b16 %v567
    %v675 = vunpack.c.l.b16 %v568
    %v676 = vunpack.c.h.b16 %v568
    %v677 = vunpack.c.l.b16 %v569
    %v678 = vunpack.c.h.b16 %v569
    %v679 = vunpack.c.l.b16 %v570
    %v680 = vunpack.c.h.b16 %v570
    %v681 = vunpack.c.l.b16 %v571
    %v682 = vunpack.c.h.b16 %v571
    %v683 = vunpack.c.l.b16 %v572
    %v684 = vunpack.c.h.b16 %v572
    %v685 = vunpack.c.l.b16 %v573
    %v686 = vunpack.c.h.b16 %v573
    %v687 = vunpack.c.l.b16 %v574
    %v688 = vunpack.c.h.b16 %v574
    %v689 = vunpack.c.l.b16 %v575
    %v690 = vunpack.c.h.b16 %v575
    %v691 = vunpack.c.l.b16 %v576
    %v692 = vunpack.c.h.b16 %v576
    %v693 = vunpack.c.l.b16 %v577
    %v694 = vunpack.c.h.b16 %v577
    %v695 = vunpack.c.l.b16 %v578
    %v696 = vunpack.c.h.b16 %v578
    %v697 = vunpack.c.l.b16 %v579
    %v698 = vunpack.c.h.b16 %v579
    %v699 = vunpack.c.l.b16 %v580
    %v700 = vunpack.c.h.b16 %v580
    %v701 = vunpack.c.l.b16 %v581
    %v702 = vunpack.c.h.b16 %v581
    %v703 = vunpack.c.l.b16 %v582
    %v704 = vunpack.c.h.b16 %v582
    %v705 = vunpack.c.l.b16 %v583
    %v706 = vunpack.c.h.b16 %v583
    %v707 = vunpack.c.l.b16 %v584
    %v708 = vunpack.c.h.b16 %v584
    %v709 = vunpack.c.l.b16 %v585
    %v710 = vunpack.c.h.b16 %v585
    %v711 = vunpack.c.l.b16 %v586
    %v712 = vunpack.c.h.b16 %v586
    %v713 = vunpack.c.l.b16 %v587
    %v714 = vunpack.c.h.b16 %v587
    %v715 = vunpack.c.l.b16 %v588
    %v716 = vunpack.c.h.b16 %v588
    %v717 = vunpack.c.l.b16 %v589
    %v718 = vunpack.c.h.b16 %v589
    %v719 = vunpack.c.l.b16 %v590
    %v720 = vunpack.c.h.b16 %v590
    %v721 = vunpack.c.l.b16 %v591
    %v722 = vunpack.c.h.b16 %v591
    %v723 = vunpack.c.l.b16 %v592
    %v724 = vunpack.c.h.b16 %v592
    %v725 = vunpack.c.l.b16 %v593
    %v726 = vunpack.c.h.b16 %v593
    %v727 = vunpack.c.l.b16 %v594
    %v728 = vunpack.c.h.b16 %v594
    %v729 = vunpack.c.l.b16 %v595
    %v730 = vunpack.c.h.b16 %v595
    %v731 = vunpack.c.l.b16 %v596
    %v732 = vunpack.c.h.b16 %v596
    %v733 = vunpack.c.l.b16 %v597
    %v734 = vunpack.c.h.b16 %v597
    %v735 = vunpack.c.l.b16 %v598
    %v736 = vunpack.c.h.b16 %v598
    %v737 = vunpack.c.l.b16 %v599
    %v738 = vunpack.c.h.b16 %v599
    %v739 = vunpack.c.l.b16 %v600
    %v740 = vunpack.c.h.b16 %v600
    %v741 = vunpack.c.l.b16 %v601
    %v742 = vunpack.c.h.b16 %v601
    %v743 = vunpack.c.l.b16 %v602
    %v744 = vunpack.c.h.b16 %v602
    %v745 = vunpack.c.l.b16 %v603
    %v746 = vunpack.c.h.b16 %v603
    %v747 = vunpack.c.l.b16 %v604
    %v748 = vunpack.c.h.b16 %v604
    %v749 = vpack.c.b16 %v655, %v653
    %v750 = vpack.c.b16 %v656, %v654
    %v751 = vpack.c.b16 %v659, %v657
    %v752 = vpack.c.b16 %v660, %v658
    %v753 = vpack.c.b16 %v663, %v661
    %v754 = vpack.c.b16 %v664, %v662
    %v755 = vpack.c.b16 %v667, %v665
    %v756 = vpack.c.b16 %v668, %v666
    %v757 = vpack.c.b16 %v671, %v669
    %v758 = vpack.c.b16 %v672, %v670
    %v759 = vpack.c.b16 %v675, %v673
    %v760 = vpack.c.b16 %v676, %v674
    %v761 = vpack.c.b16 %v679, %v677
    %v762 = vpack.c.b16 %v680, %v678
    %v763 = vpack.c.b16 %v683, %v681
    %v764 = vpack.c.b16 %v684, %v682
    %v765 = vpack.c.b16 %v687, %v685
    %v766 = vpack.c.b16 %v688, %v686
    %v767 = vpack.c.b16 %v691, %v689
    %v768 = vpack.c.b16 %v692, %v690
    %v769 = vpack.c.b16 %v695, %v693
    %v770 = vpack.c.b16 %v696, %v694
    %v771 = vpack.c.b16 %v699, %v697
    %v772 = vpack.c.b16 %v700, %v698
    %v773 = vpack.c.b16 %v703, %v701
    %v774 = vpack.c.b16 %v704, %v702
    %v775 = vpack.c.b16 %v707, %v705
    %v776 = vpack.c.b16 %v708, %v706
    %v777 = vpack.c.b16 %v711, %v709
    %v778 = vpack.c.b16 %v712, %v710
    %v779 = vpack.c.b16 %v715, %v713
    %v780 = vpack.c.b16 %v716, %v714
    %v781 = vpack.c.b16 %v719, %v717
    %v782 = vpack.c.b16 %v720, %v718
    %v783 = vpack.c.b16 %v723, %v721
    %v784 = vpack.c.b16 %v724, %v722
    %v785 = vpack.c.b16 %v727, %v725
    %v786 = vpack.c.b16 %v728, %v726
    %v787 = vpack.c.b16 %v731, %v729
    %v788 = vpack.c.b16 %v732, %v730
    %v789 = vpack.c.b16 %v735, %v733
    %v790 = vpack.c.b16 %v736, %v734
    %v791 = vpack.c.b16 %v739, %v737
    %v792 = vpack.c.b16 %v740, %v738
    %v793 = vpack.c.b16 %v743, %v741
    %v794 = vpack.c.b16 %v744, %v742
    %v795 = vpack.c.b16 %v747, %v745
    %v796 = vpack.c.b16 %v748, %v746
    %845 = vmatprep.subr.bf16.mxu0 %v750
    %846 = vmatpush1.bf16.msra.mxu0 %v749
    %847 = vmatprep.subr.bf16.mxu0 %v752
    %848 = vmatpush1.bf16.msra.mxu0 %v751
    %849 = vmatprep.subr.bf16.mxu0 %v754
    %850 = vmatpush1.bf16.msra.mxu0 %v753
    %851 = vmatprep.subr.bf16.mxu0 %v756
    %852 = vmatpush1.bf16.msra.mxu0 %v755
    %853 = vmatprep.subr.bf16.mxu0 %v758
    %854 = vmatpush1.bf16.msra.mxu0 %v757
    %855 = vmatprep.subr.bf16.mxu0 %v760
    %856 = vmatpush1.bf16.msra.mxu0 %v759
    %857 = vmatprep.subr.bf16.mxu0 %v762
    %858 = vmatpush1.bf16.msra.mxu0 %v761
    %859 = vmatprep.subr.bf16.mxu0 %v764
    %860 = vmatpush1.bf16.msra.mxu0 %v763
    %861 = vmatprep.subr.bf16.mxu0 %v766
    %862 = vmatpush1.bf16.msra.mxu0 %v765
    %863 = vmatprep.subr.bf16.mxu0 %v768
    %864 = vmatpush1.bf16.msra.mxu0 %v767
    %865 = vmatprep.subr.bf16.mxu0 %v770
    %866 = vmatpush1.bf16.msra.mxu0 %v769
    %867 = vmatprep.subr.bf16.mxu0 %v772
    %868 = vmatpush1.bf16.msra.mxu0 %v771
    %869 = vmatprep.subr.bf16.mxu0 %v774
    %870 = vmatpush1.bf16.msra.mxu0 %v773
    %871 = vmatprep.subr.bf16.mxu0 %v776
    %872 = vmatpush1.bf16.msra.mxu0 %v775
    %873 = vmatprep.subr.bf16.mxu0 %v778
    %874 = vmatpush1.bf16.msra.mxu0 %v777
    %875 = vmatprep.subr.bf16.mxu0 %v780
    %876 = vmatpush1.bf16.msra.mxu0 %v779
    %877 = vmatprep.mubr.bf16.mxu0 %v218
    %878 = vmatmul.mubr.bf16.gmra.mrb[0].mxu0 %v211
    %v879 = vpop.f32.mrb[0].mxu0
    %v880 = vadd.f32 0.0, %v879
    %v881 = vpop.f32.mrb[0].mxu0
    %v882 = vadd.f32 0.0, %v881
    %v883 = vpop.f32.mrb[0].mxu0
    %v884 = vpop.f32.mrb[0].mxu0
    %885 = vdwg.mxu0
    %886 = vmatprep.subr.bf16.mxu0 %v782
    %887 = vmatpush1.bf16.msra.mxu0 %v781
    %888 = vmatprep.subr.bf16.mxu0 %v784
    %889 = vmatpush1.bf16.msra.mxu0 %v783
    %890 = vmatprep.subr.bf16.mxu0 %v786
    %891 = vmatpush1.bf16.msra.mxu0 %v785
    %892 = vmatprep.subr.bf16.mxu0 %v788
    %893 = vmatpush1.bf16.msra.mxu0 %v787
    %894 = vmatprep.subr.bf16.mxu0 %v790
    %895 = vmatpush1.bf16.msra.mxu0 %v789
    %896 = vmatprep.subr.bf16.mxu0 %v792
    %897 = vmatpush1.bf16.msra.mxu0 %v791
    %898 = vmatprep.subr.bf16.mxu0 %v794
    %899 = vmatpush1.bf16.msra.mxu0 %v793
    %900 = vmatprep.subr.bf16.mxu0 %v796
    %901 = vmatpush1.bf16.msra.mxu0 %v795
    %902 = vmatprep.subr.bf16.mxu0 0
    %903 = vmatpush1.bf16.msra.mxu0 0
    %904 = vmatprep.subr.bf16.mxu0 0
    %905 = vmatpush1.bf16.msra.mxu0 0
    %906 = vmatprep.subr.bf16.mxu0 0
    %907 = vmatpush1.bf16.msra.mxu0 0
    %908 = vmatprep.subr.bf16.mxu0 0
    %909 = vmatpush1.bf16.msra.mxu0 0
    %910 = vmatprep.subr.bf16.mxu0 0
    %911 = vmatpush1.bf16.msra.mxu0 0
    %912 = vmatprep.subr.bf16.mxu0 0
    %913 = vmatpush1.bf16.msra.mxu0 0
    %914 = vmatprep.subr.bf16.mxu0 0
    %915 = vmatpush1.bf16.msra.mxu0 0
    %916 = vmatprep.subr.bf16.mxu0 0
    %917 = vmatpush1.bf16.msra.mxu0 0
    %918 = vmatprep.mubr.bf16.mxu0 0
    %919 = vmatmul.mubr.bf16.gmra.mrb[0].mxu0 %v219
    %v920 = vpop.f32.mrb[0].mxu0
    %v921 = vadd.f32 %v880, %v920
    %v922 = vpop.f32.mrb[0].mxu0
    %v923 = vadd.f32 %v882, %v922
    %v924 = vpop.f32.mrb[0].mxu0
    %v925 = vpop.f32.mrb[0].mxu0
    %926 = vdwg.mxu0
    %928 = vrot.lane.b32.xlu0 %v921, 64
    %v929 = vpop.permute.xlu0 %928
    %v931 = vmax.f32 %v921, %v929
    %933 = vrot.lane.b32.xlu0 %v923, 64
    %v934 = vpop.permute.xlu0 %933
    %v936 = vmax.f32 %v923, %v934
    %v937 = vmax.f32 %v931, %v936
    %s938 = scalar_lea.vmem [#allocation5], 768
    %v939 = vld [vmem:[%s938] sm:$0xff]
    %v940 = vld [vmem:[%s938 + $0x8] sm:$0xff]
    %v941 = vld [vmem:[%s938 + $0x10] sm:$0xff]
    %v942 = vld [vmem:[%s938 + $0x18] sm:$0xff]
    %v943 = vld [vmem:[%s938 + $0x20] sm:$0xff]
    %v944 = vld [vmem:[%s938 + $0x28] sm:$0xff]
    %v945 = vld [vmem:[%s938 + $0x30] sm:$0xff]
    %v946 = vld [vmem:[%s938 + $0x38] sm:$0xff]
    %v947 = vld [vmem:[%s938 + $0x40] sm:$0xff]
    %v948 = vld [vmem:[%s938 + $0x48] sm:$0xff]
    %v949 = vld [vmem:[%s938 + $0x50] sm:$0xff]
    %v950 = vld [vmem:[%s938 + $0x58] sm:$0xff]
    %v951 = vld [vmem:[%s938 + $0x60] sm:$0xff]
    %v952 = vld [vmem:[%s938 + $0x68] sm:$0xff]
    %v953 = vld [vmem:[%s938 + $0x70] sm:$0xff]
    %v954 = vld [vmem:[%s938 + $0x78] sm:$0xff]
    %v955 = vld [vmem:[%s938 + $0x80] sm:$0xff]
    %v956 = vld [vmem:[%s938 + $0x88] sm:$0xff]
    %v957 = vld [vmem:[%s938 + $0x90] sm:$0xff]
    %v958 = vld [vmem:[%s938 + $0x98] sm:$0xff]
    %v959 = vld [vmem:[%s938 + $0xa0] sm:$0xff]
    %v960 = vld [vmem:[%s938 + $0xa8] sm:$0xff]
    %v961 = vld [vmem:[%s938 + $0xb0] sm:$0xff]
    %v962 = vld [vmem:[%s938 + $0xb8] sm:$0xff]
    %v963 = vld [vmem:[%s938 + $0xc0] sm:$0xff]
    %v964 = vld [vmem:[%s938 + $0xc8] sm:$0xff]
    %v965 = vld [vmem:[%s938 + $0xd0] sm:$0xff]
    %v966 = vld [vmem:[%s938 + $0xd8] sm:$0xff]
    %v967 = vld [vmem:[%s938 + $0xe0] sm:$0xff]
    %v968 = vld [vmem:[%s938 + $0xe8] sm:$0xff]
    %v969 = vld [vmem:[%s938 + $0xf0] sm:$0xff]
    %v970 = vld [vmem:[%s938 + $0xf8] sm:$0xff]
    %v971 = vld [vmem:[%s938 + $0x100] sm:$0xff]
    %v972 = vld [vmem:[%s938 + $0x108] sm:$0xff]
    %v973 = vld [vmem:[%s938 + $0x110] sm:$0xff]
    %v974 = vld [vmem:[%s938 + $0x118] sm:$0xff]
    %v975 = vld [vmem:[%s938 + $0x120] sm:$0xff]
    %v976 = vld [vmem:[%s938 + $0x128] sm:$0xff]
    %v977 = vld [vmem:[%s938 + $0x130] sm:$0xff]
    %v978 = vld [vmem:[%s938 + $0x138] sm:$0xff]
    %v979 = vld [vmem:[%s938 + $0x140] sm:$0xff]
    %v980 = vld [vmem:[%s938 + $0x148] sm:$0xff]
    %v981 = vld [vmem:[%s938 + $0x150] sm:$0xff]
    %v982 = vld [vmem:[%s938 + $0x158] sm:$0xff]
    %v983 = vld [vmem:[%s938 + $0x160] sm:$0xff]
    %v984 = vld [vmem:[%s938 + $0x168] sm:$0xff]
    %v985 = vld [vmem:[%s938 + $0x170] sm:$0xff]
    %v986 = vld [vmem:[%s938 + $0x178] sm:$0xff]
    %v987 = vcombine.high %v218, %v218
    %v1037 = vunpack.c.l.b16 %v939
    %v1038 = vunpack.c.h.b16 %v939
    %v1039 = vunpack.c.l.b16 %v940
    %v1040 = vunpack.c.h.b16 %v940
    %v1041 = vunpack.c.l.b16 %v941
    %v1042 = vunpack.c.h.b16 %v941
    %v1043 = vunpack.c.l.b16 %v942
    %v1044 = vunpack.c.h.b16 %v942
    %v1045 = vunpack.c.l.b16 %v943
    %v1046 = vunpack.c.h.b16 %v943
    %v1047 = vunpack.c.l.b16 %v944
    %v1048 = vunpack.c.h.b16 %v944
    %v1049 = vunpack.c.l.b16 %v945
    %v1050 = vunpack.c.h.b16 %v945
    %v1051 = vunpack.c.l.b16 %v946
    %v1052 = vunpack.c.h.b16 %v946
    %v1053 = vunpack.c.l.b16 %v947
    %v1054 = vunpack.c.h.b16 %v947
    %v1055 = vunpack.c.l.b16 %v948
    %v1056 = vunpack.c.h.b16 %v948
    %v1057 = vunpack.c.l.b16 %v949
    %v1058 = vunpack.c.h.b16 %v949
    %v1059 = vunpack.c.l.b16 %v950
    %v1060 = vunpack.c.h.b16 %v950
    %v1061 = vunpack.c.l.b16 %v951
    %v1062 = vunpack.c.h.b16 %v951
    %v1063 = vunpack.c.l.b16 %v952
    %v1064 = vunpack.c.h.b16 %v952
    %v1065 = vunpack.c.l.b16 %v953
    %v1066 = vunpack.c.h.b16 %v953
    %v1067 = vunpack.c.l.b16 %v954
    %v1068 = vunpack.c.h.b16 %v954
    %v1069 = vunpack.c.l.b16 %v955
    %v1070 = vunpack.c.h.b16 %v955
    %v1071 = vunpack.c.l.b16 %v956
    %v1072 = vunpack.c.h.b16 %v956
    %v1073 = vunpack.c.l.b16 %v957
    %v1074 = vunpack.c.h.b16 %v957
    %v1075 = vunpack.c.l.b16 %v958
    %v1076 = vunpack.c.h.b16 %v958
    %v1077 = vunpack.c.l.b16 %v959
    %v1078 = vunpack.c.h.b16 %v959
    %v1079 = vunpack.c.l.b16 %v960
    %v1080 = vunpack.c.h.b16 %v960
    %v1081 = vunpack.c.l.b16 %v961
    %v1082 = vunpack.c.h.b16 %v961
    %v1083 = vunpack.c.l.b16 %v962
    %v1084 = vunpack.c.h.b16 %v962
    %v1085 = vunpack.c.l.b16 %v963
    %v1086 = vunpack.c.h.b16 %v963
    %v1087 = vunpack.c.l.b16 %v964
    %v1088 = vunpack.c.h.b16 %v964
    %v1089 = vunpack.c.l.b16 %v965
    %v1090 = vunpack.c.h.b16 %v965
    %v1091 = vunpack.c.l.b16 %v966
    %v1092 = vunpack.c.h.b16 %v966
    %v1093 = vunpack.c.l.b16 %v967
    %v1094 = vunpack.c.h.b16 %v967
    %v1095 = vunpack.c.l.b16 %v968
    %v1096 = vunpack.c.h.b16 %v968
    %v1097 = vunpack.c.l.b16 %v969
    %v1098 = vunpack.c.h.b16 %v969
    %v1099 = vunpack.c.l.b16 %v970
    %v1100 = vunpack.c.h.b16 %v970
    %v1101 = vunpack.c.l.b16 %v971
    %v1102 = vunpack.c.h.b16 %v971
    %v1103 = vunpack.c.l.b16 %v972
    %v1104 = vunpack.c.h.b16 %v972
    %v1105 = vunpack.c.l.b16 %v973
    %v1106 = vunpack.c.h.b16 %v973
    %v1107 = vunpack.c.l.b16 %v974
    %v1108 = vunpack.c.h.b16 %v974
    %v1109 = vunpack.c.l.b16 %v975
    %v1110 = vunpack.c.h.b16 %v975
    %v1111 = vunpack.c.l.b16 %v976
    %v1112 = vunpack.c.h.b16 %v976
    %v1113 = vunpack.c.l.b16 %v977
    %v1114 = vunpack.c.h.b16 %v977
    %v1115 = vunpack.c.l.b16 %v978
    %v1116 = vunpack.c.h.b16 %v978
    %v1117 = vunpack.c.l.b16 %v979
    %v1118 = vunpack.c.h.b16 %v979
    %v1119 = vunpack.c.l.b16 %v980
    %v1120 = vunpack.c.h.b16 %v980
    %v1121 = vunpack.c.l.b16 %v981
    %v1122 = vunpack.c.h.b16 %v981
    %v1123 = vunpack.c.l.b16 %v982
    %v1124 = vunpack.c.h.b16 %v982
    %v1125 = vunpack.c.l.b16 %v983
    %v1126 = vunpack.c.h.b16 %v983
    %v1127 = vunpack.c.l.b16 %v984
    %v1128 = vunpack.c.h.b16 %v984
    %v1129 = vunpack.c.l.b16 %v985
    %v1130 = vunpack.c.h.b16 %v985
    %v1131 = vunpack.c.l.b16 %v986
    %v1132 = vunpack.c.h.b16 %v986
    %v1133 = vpack.c.b16 %v1039, %v1037
    %v1134 = vpack.c.b16 %v1040, %v1038
    %v1135 = vpack.c.b16 %v1043, %v1041
    %v1136 = vpack.c.b16 %v1044, %v1042
    %v1137 = vpack.c.b16 %v1047, %v1045
    %v1138 = vpack.c.b16 %v1048, %v1046
    %v1139 = vpack.c.b16 %v1051, %v1049
    %v1140 = vpack.c.b16 %v1052, %v1050
    %v1141 = vpack.c.b16 %v1055, %v1053
    %v1142 = vpack.c.b16 %v1056, %v1054
    %v1143 = vpack.c.b16 %v1059, %v1057
    %v1144 = vpack.c.b16 %v1060, %v1058
    %v1145 = vpack.c.b16 %v1063, %v1061
    %v1146 = vpack.c.b16 %v1064, %v1062
    %v1147 = vpack.c.b16 %v1067, %v1065
    %v1148 = vpack.c.b16 %v1068, %v1066
    %v1149 = vpack.c.b16 %v1071, %v1069
    %v1150 = vpack.c.b16 %v1072, %v1070
    %v1151 = vpack.c.b16 %v1075, %v1073
    %v1152 = vpack.c.b16 %v1076, %v1074
    %v1153 = vpack.c.b16 %v1079, %v1077
    %v1154 = vpack.c.b16 %v1080, %v1078
    %v1155 = vpack.c.b16 %v1083, %v1081
    %v1156 = vpack.c.b16 %v1084, %v1082
    %v1157 = vpack.c.b16 %v1087, %v1085
    %v1158 = vpack.c.b16 %v1088, %v1086
    %v1159 = vpack.c.b16 %v1091, %v1089
    %v1160 = vpack.c.b16 %v1092, %v1090
    %v1161 = vpack.c.b16 %v1095, %v1093
    %v1162 = vpack.c.b16 %v1096, %v1094
    %v1163 = vpack.c.b16 %v1099, %v1097
    %v1164 = vpack.c.b16 %v1100, %v1098
    %v1165 = vpack.c.b16 %v1103, %v1101
    %v1166 = vpack.c.b16 %v1104, %v1102
    %v1167 = vpack.c.b16 %v1107, %v1105
    %v1168 = vpack.c.b16 %v1108, %v1106
    %v1169 = vpack.c.b16 %v1111, %v1109
    %v1170 = vpack.c.b16 %v1112, %v1110
    %v1171 = vpack.c.b16 %v1115, %v1113
    %v1172 = vpack.c.b16 %v1116, %v1114
    %v1173 = vpack.c.b16 %v1119, %v1117
    %v1174 = vpack.c.b16 %v1120, %v1118
    %v1175 = vpack.c.b16 %v1123, %v1121
    %v1176 = vpack.c.b16 %v1124, %v1122
    %v1177 = vpack.c.b16 %v1127, %v1125
    %v1178 = vpack.c.b16 %v1128, %v1126
    %v1179 = vpack.c.b16 %v1131, %v1129
    %v1180 = vpack.c.b16 %v1132, %v1130
    %1229 = vmatprep.subr.bf16.mxu0 %v1134
    %1230 = vmatpush1.bf16.msra.mxu0 %v1133
    %1231 = vmatprep.subr.bf16.mxu0 %v1136
    %1232 = vmatpush1.bf16.msra.mxu0 %v1135
    %1233 = vmatprep.subr.bf16.mxu0 %v1138
    %1234 = vmatpush1.bf16.msra.mxu0 %v1137
    %1235 = vmatprep.subr.bf16.mxu0 %v1140
    %1236 = vmatpush1.bf16.msra.mxu0 %v1139
    %1237 = vmatprep.subr.bf16.mxu0 %v1142
    %1238 = vmatpush1.bf16.msra.mxu0 %v1141
    %1239 = vmatprep.subr.bf16.mxu0 %v1144
    %1240 = vmatpush1.bf16.msra.mxu0 %v1143
    %1241 = vmatprep.subr.bf16.mxu0 %v1146
    %1242 = vmatpush1.bf16.msra.mxu0 %v1145
    %1243 = vmatprep.subr.bf16.mxu0 %v1148
    %1244 = vmatpush1.bf16.msra.mxu0 %v1147
    %1245 = vmatprep.subr.bf16.mxu0 %v1150
    %1246 = vmatpush1.bf16.msra.mxu0 %v1149
    %1247 = vmatprep.subr.bf16.mxu0 %v1152
    %1248 = vmatpush1.bf16.msra.mxu0 %v1151
    %1249 = vmatprep.subr.bf16.mxu0 %v1154
    %1250 = vmatpush1.bf16.msra.mxu0 %v1153
    %1251 = vmatprep.subr.bf16.mxu0 %v1156
    %1252 = vmatpush1.bf16.msra.mxu0 %v1155
    %1253 = vmatprep.subr.bf16.mxu0 %v1158
    %1254 = vmatpush1.bf16.msra.mxu0 %v1157
    %1255 = vmatprep.subr.bf16.mxu0 %v1160
    %1256 = vmatpush1.bf16.msra.mxu0 %v1159
    %1257 = vmatprep.subr.bf16.mxu0 %v1162
    %1258 = vmatpush1.bf16.msra.mxu0 %v1161
    %1259 = vmatprep.subr.bf16.mxu0 %v1164
    %1260 = vmatpush1.bf16.msra.mxu0 %v1163
    %1261 = vmatprep.mubr.bf16.mxu0 %v219
    %1262 = vmatmul.mubr.bf16.gmra.mrb[0].mxu0 %v218
    %v1263 = vpop.f32.mrb[0].mxu0
    %v1264 = vadd.f32 0.0, %v1263
    %v1265 = vpop.f32.mrb[0].mxu0
    %v1266 = vadd.f32 0.0, %v1265
    %v1267 = vpop.f32.mrb[0].mxu0
    %v1268 = vpop.f32.mrb[0].mxu0
    %1269 = vdwg.mxu0
    %1270 = vmatprep.subr.bf16.mxu0 %v1166
    %1271 = vmatpush1.bf16.msra.mxu0 %v1165
    %1272 = vmatprep.subr.bf16.mxu0 %v1168
    %1273 = vmatpush1.bf16.msra.mxu0 %v1167
    %1274 = vmatprep.subr.bf16.mxu0 %v1170
    %1275 = vmatpush1.bf16.msra.mxu0 %v1169
    %1276 = vmatprep.subr.bf16.mxu0 %v1172
    %1277 = vmatpush1.bf16.msra.mxu0 %v1171
    %1278 = vmatprep.subr.bf16.mxu0 %v1174
    %1279 = vmatpush1.bf16.msra.mxu0 %v1173
    %1280 = vmatprep.subr.bf16.mxu0 %v1176
    %1281 = vmatpush1.bf16.msra.mxu0 %v1175
    %1282 = vmatprep.subr.bf16.mxu0 %v1178
    %1283 = vmatpush1.bf16.msra.mxu0 %v1177
    %1284 = vmatprep.subr.bf16.mxu0 %v1180
    %1285 = vmatpush1.bf16.msra.mxu0 %v1179
    %1286 = vmatprep.subr.bf16.mxu0 0
    %1287 = vmatpush1.bf16.msra.mxu0 0
    %1288 = vmatprep.subr.bf16.mxu0 0
    %1289 = vmatpush1.bf16.msra.mxu0 0
    %1290 = vmatprep.subr.bf16.mxu0 0
    %1291 = vmatpush1.bf16.msra.mxu0 0
    %1292 = vmatprep.subr.bf16.mxu0 0
    %1293 = vmatpush1.bf16.msra.mxu0 0
    %1294 = vmatprep.subr.bf16.mxu0 0
    %1295 = vmatpush1.bf16.msra.mxu0 0
    %1296 = vmatprep.subr.bf16.mxu0 0
    %1297 = vmatpush1.bf16.msra.mxu0 0
    %1298 = vmatprep.subr.bf16.mxu0 0
    %1299 = vmatpush1.bf16.msra.mxu0 0
    %1300 = vmatprep.subr.bf16.mxu0 0
    %1301 = vmatpush1.bf16.msra.mxu0 0
    %1302 = vmatprep.mubr.bf16.mxu0 0
    %1303 = vmatmul.mubr.bf16.gmra.mrb[0].mxu0 %v987
    %v1304 = vpop.f32.mrb[0].mxu0
    %v1305 = vadd.f32 %v1264, %v1304
    %v1306 = vpop.f32.mrb[0].mxu0
    %v1307 = vadd.f32 %v1266, %v1306
    %v1308 = vpop.f32.mrb[0].mxu0
    %v1309 = vpop.f32.mrb[0].mxu0
    %1310 = vdwg.mxu0
    %1312 = vrot.lane.b32.xlu0 %v1305, 64
    %v1313 = vpop.permute.xlu0 %1312
    %v1315 = vmax.f32 %v1305, %v1313
    %1317 = vrot.lane.b32.xlu0 %v1307, 64
    %v1318 = vpop.permute.xlu0 %1317
    %v1320 = vmax.f32 %v1307, %v1318
    %v1321 = vmax.f32 %v1315, %v1320
    %s1322 = scalar_lea.vmem [#allocation5], 1152
    %v1323 = vld [vmem:[%s1322] sm:$0xff]
    %v1324 = vld [vmem:[%s1322 + $0x8] sm:$0xff]
    %v1325 = vld [vmem:[%s1322 + $0x10] sm:$0xff]
    %v1326 = vld [vmem:[%s1322 + $0x18] sm:$0xff]
    %v1327 = vld [vmem:[%s1322 + $0x20] sm:$0xff]
    %v1328 = vld [vmem:[%s1322 + $0x28] sm:$0xff]
    %v1329 = vld [vmem:[%s1322 + $0x30] sm:$0xff]
    %v1330 = vld [vmem:[%s1322 + $0x38] sm:$0xff]
    %v1331 = vld [vmem:[%s1322 + $0x40] sm:$0xff]
    %v1332 = vld [vmem:[%s1322 + $0x48] sm:$0xff]
    %v1333 = vld [vmem:[%s1322 + $0x50] sm:$0xff]
    %v1334 = vld [vmem:[%s1322 + $0x58] sm:$0xff]
    %v1335 = vld [vmem:[%s1322 + $0x60] sm:$0xff]
    %v1336 = vld [vmem:[%s1322 + $0x68] sm:$0xff]
    %v1337 = vld [vmem:[%s1322 + $0x70] sm:$0xff]
    %v1338 = vld [vmem:[%s1322 + $0x78] sm:$0xff]
    %v1339 = vld [vmem:[%s1322 + $0x80] sm:$0xff]
    %v1340 = vld [vmem:[%s1322 + $0x88] sm:$0xff]
    %v1341 = vld [vmem:[%s1322 + $0x90] sm:$0xff]
    %v1342 = vld [vmem:[%s1322 + $0x98] sm:$0xff]
    %v1343 = vld [vmem:[%s1322 + $0xa0] sm:$0xff]
    %v1344 = vld [vmem:[%s1322 + $0xa8] sm:$0xff]
    %v1345 = vld [vmem:[%s1322 + $0xb0] sm:$0xff]
    %v1346 = vld [vmem:[%s1322 + $0xb8] sm:$0xff]
    %v1347 = vld [vmem:[%s1322 + $0xc0] sm:$0xff]
    %v1348 = vld [vmem:[%s1322 + $0xc8] sm:$0xff]
    %v1349 = vld [vmem:[%s1322 + $0xd0] sm:$0xff]
    %v1350 = vld [vmem:[%s1322 + $0xd8] sm:$0xff]
    %v1351 = vld [vmem:[%s1322 + $0xe0] sm:$0xff]
    %v1352 = vld [vmem:[%s1322 + $0xe8] sm:$0xff]
    %v1353 = vld [vmem:[%s1322 + $0xf0] sm:$0xff]
    %v1354 = vld [vmem:[%s1322 + $0xf8] sm:$0xff]
    %v1355 = vld [vmem:[%s1322 + $0x100] sm:$0xff]
    %v1356 = vld [vmem:[%s1322 + $0x108] sm:$0xff]
    %v1357 = vld [vmem:[%s1322 + $0x110] sm:$0xff]
    %v1358 = vld [vmem:[%s1322 + $0x118] sm:$0xff]
    %v1359 = vld [vmem:[%s1322 + $0x120] sm:$0xff]
    %v1360 = vld [vmem:[%s1322 + $0x128] sm:$0xff]
    %v1361 = vld [vmem:[%s1322 + $0x130] sm:$0xff]
    %v1362 = vld [vmem:[%s1322 + $0x138] sm:$0xff]
    %v1363 = vld [vmem:[%s1322 + $0x140] sm:$0xff]
    %v1364 = vld [vmem:[%s1322 + $0x148] sm:$0xff]
    %v1365 = vld [vmem:[%s1322 + $0x150] sm:$0xff]
    %v1366 = vld [vmem:[%s1322 + $0x158] sm:$0xff]
    %v1367 = vld [vmem:[%s1322 + $0x160] sm:$0xff]
    %v1368 = vld [vmem:[%s1322 + $0x168] sm:$0xff]
    %v1369 = vld [vmem:[%s1322 + $0x170] sm:$0xff]
    %v1370 = vld [vmem:[%s1322 + $0x178] sm:$0xff]
    %v1371 = vcombine.high %v147, %v147
    %v1373 = vunpack.c.l.s4 1966171168
    %v1374 = vunpack.c.0.s8 %v1373
    %v1375 = vlaneseq
    %v1376 = vshrl.u32 %v1375, 7
    %v1377 = vsub.s32 %v1374, %v1376
    %v1378 = vrot.slane %v1371, %v1377
    %v1380 = vunpack.c.l.s4 1966171168
    %v1381 = vunpack.c.0.s8 %v1380
    %v1382 = vlaneseq
    %v1383 = vshrl.u32 %v1382, 7
    %v1384 = vsub.s32 %v1381, %v1383
    %v1385 = vrot.slane %v1378, %v1384
    %v1435 = vunpack.c.l.b16 %v1323
    %v1436 = vunpack.c.h.b16 %v1323
    %v1437 = vunpack.c.l.b16 %v1324
    %v1438 = vunpack.c.h.b16 %v1324
    %v1439 = vunpack.c.l.b16 %v1325
    %v1440 = vunpack.c.h.b16 %v1325
    %v1441 = vunpack.c.l.b16 %v1326
    %v1442 = vunpack.c.h.b16 %v1326
    %v1443 = vunpack.c.l.b16 %v1327
    %v1444 = vunpack.c.h.b16 %v1327
    %v1445 = vunpack.c.l.b16 %v1328
    %v1446 = vunpack.c.h.b16 %v1328
    %v1447 = vunpack.c.l.b16 %v1329
    %v1448 = vunpack.c.h.b16 %v1329
    %v1449 = vunpack.c.l.b16 %v1330
    %v1450 = vunpack.c.h.b16 %v1330
    %v1451 = vunpack.c.l.b16 %v1331
    %v1452 = vunpack.c.h.b16 %v1331
    %v1453 = vunpack.c.l.b16 %v1332
    %v1454 = vunpack.c.h.b16 %v1332
    %v1455 = vunpack.c.l.b16 %v1333
    %v1456 = vunpack.c.h.b16 %v1333
    %v1457 = vunpack.c.l.b16 %v1334
    %v1458 = vunpack.c.h.b16 %v1334
    %v1459 = vunpack.c.l.b16 %v1335
    %v1460 = vunpack.c.h.b16 %v1335
    %v1461 = vunpack.c.l.b16 %v1336
    %v1462 = vunpack.c.h.b16 %v1336
    %v1463 = vunpack.c.l.b16 %v1337
    %v1464 = vunpack.c.h.b16 %v1337
    %v1465 = vunpack.c.l.b16 %v1338
    %v1466 = vunpack.c.h.b16 %v1338
    %v1467 = vunpack.c.l.b16 %v1339
    %v1468 = vunpack.c.h.b16 %v1339
    %v1469 = vunpack.c.l.b16 %v1340
    %v1470 = vunpack.c.h.b16 %v1340
    %v1471 = vunpack.c.l.b16 %v1341
    %v1472 = vunpack.c.h.b16 %v1341
    %v1473 = vunpack.c.l.b16 %v1342
    %v1474 = vunpack.c.h.b16 %v1342
    %v1475 = vunpack.c.l.b16 %v1343
    %v1476 = vunpack.c.h.b16 %v1343
    %v1477 = vunpack.c.l.b16 %v1344
    %v1478 = vunpack.c.h.b16 %v1344
    %v1479 = vunpack.c.l.b16 %v1345
    %v1480 = vunpack.c.h.b16 %v1345
    %v1481 = vunpack.c.l.b16 %v1346
    %v1482 = vunpack.c.h.b16 %v1346
    %v1483 = vunpack.c.l.b16 %v1347
    %v1484 = vunpack.c.h.b16 %v1347
    %v1485 = vunpack.c.l.b16 %v1348
    %v1486 = vunpack.c.h.b16 %v1348
    %v1487 = vunpack.c.l.b16 %v1349
    %v1488 = vunpack.c.h.b16 %v1349
    %v1489 = vunpack.c.l.b16 %v1350
    %v1490 = vunpack.c.h.b16 %v1350
    %v1491 = vunpack.c.l.b16 %v1351
    %v1492 = vunpack.c.h.b16 %v1351
    %v1493 = vunpack.c.l.b16 %v1352
    %v1494 = vunpack.c.h.b16 %v1352
    %v1495 = vunpack.c.l.b16 %v1353
    %v1496 = vunpack.c.h.b16 %v1353
    %v1497 = vunpack.c.l.b16 %v1354
    %v1498 = vunpack.c.h.b16 %v1354
    %v1499 = vunpack.c.l.b16 %v1355
    %v1500 = vunpack.c.h.b16 %v1355
    %v1501 = vunpack.c.l.b16 %v1356
    %v1502 = vunpack.c.h.b16 %v1356
    %v1503 = vunpack.c.l.b16 %v1357
    %v1504 = vunpack.c.h.b16 %v1357
    %v1505 = vunpack.c.l.b16 %v1358
    %v1506 = vunpack.c.h.b16 %v1358
    %v1507 = vunpack.c.l.b16 %v1359
    %v1508 = vunpack.c.h.b16 %v1359
    %v1509 = vunpack.c.l.b16 %v1360
    %v1510 = vunpack.c.h.b16 %v1360
    %v1511 = vunpack.c.l.b16 %v1361
    %v1512 = vunpack.c.h.b16 %v1361
    %v1513 = vunpack.c.l.b16 %v1362
    %v1514 = vunpack.c.h.b16 %v1362
    %v1515 = vunpack.c.l.b16 %v1363
    %v1516 = vunpack.c.h.b16 %v1363
    %v1517 = vunpack.c.l.b16 %v1364
    %v1518 = vunpack.c.h.b16 %v1364
    %v1519 = vunpack.c.l.b16 %v1365
    %v1520 = vunpack.c.h.b16 %v1365
    %v1521 = vunpack.c.l.b16 %v1366
    %v1522 = vunpack.c.h.b16 %v1366
    %v1523 = vunpack.c.l.b16 %v1367
    %v1524 = vunpack.c.h.b16 %v1367
    %v1525 = vunpack.c.l.b16 %v1368
    %v1526 = vunpack.c.h.b16 %v1368
    %v1527 = vunpack.c.l.b16 %v1369
    %v1528 = vunpack.c.h.b16 %v1369
    %v1529 = vunpack.c.l.b16 %v1370
    %v1530 = vunpack.c.h.b16 %v1370
    %v1531 = vpack.c.b16 %v1437, %v1435
    %v1532 = vpack.c.b16 %v1438, %v1436
    %v1533 = vpack.c.b16 %v1441, %v1439
    %v1534 = vpack.c.b16 %v1442, %v1440
    %v1535 = vpack.c.b16 %v1445, %v1443
    %v1536 = vpack.c.b16 %v1446, %v1444
    %v1537 = vpack.c.b16 %v1449, %v1447
    %v1538 = vpack.c.b16 %v1450, %v1448
    %v1539 = vpack.c.b16 %v1453, %v1451
    %v1540 = vpack.c.b16 %v1454, %v1452
    %v1541 = vpack.c.b16 %v1457, %v1455
    %v1542 = vpack.c.b16 %v1458, %v1456
    %v1543 = vpack.c.b16 %v1461, %v1459
    %v1544 = vpack.c.b16 %v1462, %v1460
    %v1545 = vpack.c.b16 %v1465, %v1463
    %v1546 = vpack.c.b16 %v1466, %v1464
    %v1547 = vpack.c.b16 %v1469, %v1467
    %v1548 = vpack.c.b16 %v1470, %v1468
    %v1549 = vpack.c.b16 %v1473, %v1471
    %v1550 = vpack.c.b16 %v1474, %v1472
    %v1551 = vpack.c.b16 %v1477, %v1475
    %v1552 = vpack.c.b16 %v1478, %v1476
    %v1553 = vpack.c.b16 %v1481, %v1479
    %v1554 = vpack.c.b16 %v1482, %v1480
    %v1555 = vpack.c.b16 %v1485, %v1483
    %v1556 = vpack.c.b16 %v1486, %v1484
    %v1557 = vpack.c.b16 %v1489, %v1487
    %v1558 = vpack.c.b16 %v1490, %v1488
    %v1559 = vpack.c.b16 %v1493, %v1491
    %v1560 = vpack.c.b16 %v1494, %v1492
    %v1561 = vpack.c.b16 %v1497, %v1495
    %v1562 = vpack.c.b16 %v1498, %v1496
    %v1563 = vpack.c.b16 %v1501, %v1499
    %v1564 = vpack.c.b16 %v1502, %v1500
    %v1565 = vpack.c.b16 %v1505, %v1503
    %v1566 = vpack.c.b16 %v1506, %v1504
    %v1567 = vpack.c.b16 %v1509, %v1507
    %v1568 = vpack.c.b16 %v1510, %v1508
    %v1569 = vpack.c.b16 %v1513, %v1511
    %v1570 = vpack.c.b16 %v1514, %v1512
    %v1571 = vpack.c.b16 %v1517, %v1515
    %v1572 = vpack.c.b16 %v1518, %v1516
    %v1573 = vpack.c.b16 %v1521, %v1519
    %v1574 = vpack.c.b16 %v1522, %v1520
    %v1575 = vpack.c.b16 %v1525, %v1523
    %v1576 = vpack.c.b16 %v1526, %v1524
    %v1577 = vpack.c.b16 %v1529, %v1527
    %v1578 = vpack.c.b16 %v1530, %v1528
    %1627 = vmatprep.subr.bf16.mxu0 %v1532
    %1628 = vmatpush1.bf16.msra.mxu0 %v1531
    %1629 = vmatprep.subr.bf16.mxu0 %v1534
    %1630 = vmatpush1.bf16.msra.mxu0 %v1533
    %1631 = vmatprep.subr.bf16.mxu0 %v1536
    %1632 = vmatpush1.bf16.msra.mxu0 %v1535
    %1633 = vmatprep.subr.bf16.mxu0 %v1538
    %1634 = vmatpush1.bf16.msra.mxu0 %v1537
    %1635 = vmatprep.subr.bf16.mxu0 %v1540
    %1636 = vmatpush1.bf16.msra.mxu0 %v1539
    %1637 = vmatprep.subr.bf16.mxu0 %v1542
    %1638 = vmatpush1.bf16.msra.mxu0 %v1541
    %1639 = vmatprep.subr.bf16.mxu0 %v1544
    %1640 = vmatpush1.bf16.msra.mxu0 %v1543
    %1641 = vmatprep.subr.bf16.mxu0 %v1546
    %1642 = vmatpush1.bf16.msra.mxu0 %v1545
    %1643 = vmatprep.subr.bf16.mxu0 %v1548
    %1644 = vmatpush1.bf16.msra.mxu0 %v1547
    %1645 = vmatprep.subr.bf16.mxu0 %v1550
    %1646 = vmatpush1.bf16.msra.mxu0 %v1549
    %1647 = vmatprep.subr.bf16.mxu0 %v1552
    %1648 = vmatpush1.bf16.msra.mxu0 %v1551
    %1649 = vmatprep.subr.bf16.mxu0 %v1554
    %1650 = vmatpush1.bf16.msra.mxu0 %v1553
    %1651 = vmatprep.subr.bf16.mxu0 %v1556
    %1652 = vmatpush1.bf16.msra.mxu0 %v1555
    %1653 = vmatprep.subr.bf16.mxu0 %v1558
    %1654 = vmatpush1.bf16.msra.mxu0 %v1557
    %1655 = vmatprep.subr.bf16.mxu0 %v1560
    %1656 = vmatpush1.bf16.msra.mxu0 %v1559
    %1657 = vmatprep.subr.bf16.mxu0 %v1562
    %1658 = vmatpush1.bf16.msra.mxu0 %v1561
    %1659 = vmatprep.mubr.bf16.mxu0 %v987
    %1660 = vmatmul.mubr.bf16.gmra.mrb[0].mxu0 %v219
    %v1661 = vpop.f32.mrb[0].mxu0
    %v1662 = vadd.f32 0.0, %v1661
    %v1663 = vpop.f32.mrb[0].mxu0
    %v1664 = vadd.f32 0.0, %v1663
    %v1665 = vpop.f32.mrb[0].mxu0
    %v1666 = vpop.f32.mrb[0].mxu0
    %1667 = vdwg.mxu0
    %1668 = vmatprep.subr.bf16.mxu0 %v1564
    %1669 = vmatpush1.bf16.msra.mxu0 %v1563
    %1670 = vmatprep.subr.bf16.mxu0 %v1566
    %1671 = vmatpush1.bf16.msra.mxu0 %v1565
    %1672 = vmatprep.subr.bf16.mxu0 %v1568
    %1673 = vmatpush1.bf16.msra.mxu0 %v1567
    %1674 = vmatprep.subr.bf16.mxu0 %v1570
    %1675 = vmatpush1.bf16.msra.mxu0 %v1569
    %1676 = vmatprep.subr.bf16.mxu0 %v1572
    %1677 = vmatpush1.bf16.msra.mxu0 %v1571
    %1678 = vmatprep.subr.bf16.mxu0 %v1574
    %1679 = vmatpush1.bf16.msra.mxu0 %v1573
    %1680 = vmatprep.subr.bf16.mxu0 %v1576
    %1681 = vmatpush1.bf16.msra.mxu0 %v1575
    %1682 = vmatprep.subr.bf16.mxu0 %v1578
    %1683 = vmatpush1.bf16.msra.mxu0 %v1577
    %1684 = vmatprep.subr.bf16.mxu0 0
    %1685 = vmatpush1.bf16.msra.mxu0 0
    %1686 = vmatprep.subr.bf16.mxu0 0
    %1687 = vmatpush1.bf16.msra.mxu0 0
    %1688 = vmatprep.subr.bf16.mxu0 0
    %1689 = vmatpush1.bf16.msra.mxu0 0
    %1690 = vmatprep.subr.bf16.mxu0 0
    %1691 = vmatpush1.bf16.msra.mxu0 0
    %1692 = vmatprep.subr.bf16.mxu0 0
    %1693 = vmatpush1.bf16.msra.mxu0 0
    %1694 = vmatprep.subr.bf16.mxu0 0
    %1695 = vmatpush1.bf16.msra.mxu0 0
    %1696 = vmatprep.subr.bf16.mxu0 0
    %1697 = vmatpush1.bf16.msra.mxu0 0
    %1698 = vmatprep.subr.bf16.mxu0 0
    %1699 = vmatpush1.bf16.msra.mxu0 0
    %1700 = vmatprep.mubr.bf16.mxu0 0
    %1701 = vmatmul.mubr.bf16.gmra.mrb[0].mxu0 %v1385
    %v1702 = vpop.f32.mrb[0].mxu0
    %v1703 = vadd.f32 %v1662, %v1702
    %v1704 = vpop.f32.mrb[0].mxu0
    %v1705 = vadd.f32 %v1664, %v1704
    %v1706 = vpop.f32.mrb[0].mxu0
    %v1707 = vpop.f32.mrb[0].mxu0
    %1708 = vdwg.mxu0
    %1710 = vrot.lane.b32.xlu0 %v1703, 64
    %v1711 = vpop.permute.xlu0 %1710
    %v1713 = vmax.f32 %v1703, %v1711
    %1715 = vrot.lane.b32.xlu0 %v1705, 64
    %v1716 = vpop.permute.xlu0 %1715
    %v1718 = vmax.f32 %v1705, %v1716
    %v1719 = vmax.f32 %v1713, %v1718
    %s1720 = scalar_lea.vmem [#allocation5], 1536
    %v1721 = vld [vmem:[%s1720] sm:$0xff]
    %v1722 = vld [vmem:[%s1720 + $0x8] sm:$0xff]
    %v1723 = vld [vmem:[%s1720 + $0x10] sm:$0xff]
    %v1724 = vld [vmem:[%s1720 + $0x18] sm:$0xff]
    %v1725 = vld [vmem:[%s1720 + $0x20] sm:$0xff]
    %v1726 = vld [vmem:[%s1720 + $0x28] sm:$0xff]
    %v1727 = vld [vmem:[%s1720 + $0x30] sm:$0xff]
    %v1728 = vld [vmem:[%s1720 + $0x38] sm:$0xff]
    %v1729 = vld [vmem:[%s1720 + $0x40] sm:$0xff]
    %v1730 = vld [vmem:[%s1720 + $0x48] sm:$0xff]
    %v1731 = vld [vmem:[%s1720 + $0x50] sm:$0xff]
    %v1732 = vld [vmem:[%s1720 + $0x58] sm:$0xff]
    %v1733 = vld [vmem:[%s1720 + $0x60] sm:$0xff]
    %v1734 = vld [vmem:[%s1720 + $0x68] sm:$0xff]
    %v1735 = vld [vmem:[%s1720 + $0x70] sm:$0xff]
    %v1736 = vld [vmem:[%s1720 + $0x78] sm:$0xff]
    %v1737 = vld [vmem:[%s1720 + $0x80] sm:$0xff]
    %v1738 = vld [vmem:[%s1720 + $0x88] sm:$0xff]
    %v1739 = vld [vmem:[%s1720 + $0x90] sm:$0xff]
    %v1740 = vld [vmem:[%s1720 + $0x98] sm:$0xff]
    %v1741 = vld [vmem:[%s1720 + $0xa0] sm:$0xff]
    %v1742 = vld [vmem:[%s1720 + $0xa8] sm:$0xff]
    %v1743 = vld [vmem:[%s1720 + $0xb0] sm:$0xff]
    %v1744 = vld [vmem:[%s1720 + $0xb8] sm:$0xff]
    %v1745 = vld [vmem:[%s1720 + $0xc0] sm:$0xff]
    %v1746 = vld [vmem:[%s1720 + $0xc8] sm:$0xff]
    %v1747 = vld [vmem:[%s1720 + $0xd0] sm:$0xff]
    %v1748 = vld [vmem:[%s1720 + $0xd8] sm:$0xff]
    %v1749 = vld [vmem:[%s1720 + $0xe0] sm:$0xff]
    %v1750 = vld [vmem:[%s1720 + $0xe8] sm:$0xff]
    %v1751 = vld [vmem:[%s1720 + $0xf0] sm:$0xff]
    %v1752 = vld [vmem:[%s1720 + $0xf8] sm:$0xff]
    %v1753 = vld [vmem:[%s1720 + $0x100] sm:$0xff]
    %v1754 = vld [vmem:[%s1720 + $0x108] sm:$0xff]
    %v1755 = vld [vmem:[%s1720 + $0x110] sm:$0xff]
    %v1756 = vld [vmem:[%s1720 + $0x118] sm:$0xff]
    %v1757 = vld [vmem:[%s1720 + $0x120] sm:$0xff]
    %v1758 = vld [vmem:[%s1720 + $0x128] sm:$0xff]
    %v1759 = vld [vmem:[%s1720 + $0x130] sm:$0xff]
    %v1760 = vld [vmem:[%s1720 + $0x138] sm:$0xff]
    %v1761 = vld [vmem:[%s1720 + $0x140] sm:$0xff]
    %v1762 = vld [vmem:[%s1720 + $0x148] sm:$0xff]
    %v1763 = vld [vmem:[%s1720 + $0x150] sm:$0xff]
    %v1764 = vld [vmem:[%s1720 + $0x158] sm:$0xff]
    %v1765 = vld [vmem:[%s1720 + $0x160] sm:$0xff]
    %v1766 = vld [vmem:[%s1720 + $0x168] sm:$0xff]
    %v1767 = vld [vmem:[%s1720 + $0x170] sm:$0xff]
    %v1768 = vld [vmem:[%s1720 + $0x178] sm:$0xff]
    %v1769 = vcombine.high %v1378, %v1378
    %v1771 = vunpack.c.l.s4 1966171168
    %v1772 = vunpack.c.0.s8 %v1771
    %v1773 = vlaneseq
    %v1774 = vshrl.u32 %v1773, 7
    %v1775 = vsub.s32 %v1772, %v1774
    %v1776 = vrot.slane %v1769, %v1775
    %v1826 = vunpack.c.l.b16 %v1721
    %v1827 = vunpack.c.h.b16 %v1721
    %v1828 = vunpack.c.l.b16 %v1722
    %v1829 = vunpack.c.h.b16 %v1722
    %v1830 = vunpack.c.l.b16 %v1723
    %v1831 = vunpack.c.h.b16 %v1723
    %v1832 = vunpack.c.l.b16 %v1724
    %v1833 = vunpack.c.h.b16 %v1724
    %v1834 = vunpack.c.l.b16 %v1725
    %v1835 = vunpack.c.h.b16 %v1725
    %v1836 = vunpack.c.l.b16 %v1726
    %v1837 = vunpack.c.h.b16 %v1726
    %v1838 = vunpack.c.l.b16 %v1727
    %v1839 = vunpack.c.h.b16 %v1727
    %v1840 = vunpack.c.l.b16 %v1728
    %v1841 = vunpack.c.h.b16 %v1728
    %v1842 = vunpack.c.l.b16 %v1729
    %v1843 = vunpack.c.h.b16 %v1729
    %v1844 = vunpack.c.l.b16 %v1730
    %v1845 = vunpack.c.h.b16 %v1730
    %v1846 = vunpack.c.l.b16 %v1731
    %v1847 = vunpack.c.h.b16 %v1731
    %v1848 = vunpack.c.l.b16 %v1732
    %v1849 = vunpack.c.h.b16 %v1732
    %v1850 = vunpack.c.l.b16 %v1733
    %v1851 = vunpack.c.h.b16 %v1733
    %v1852 = vunpack.c.l.b16 %v1734
    %v1853 = vunpack.c.h.b16 %v1734
    %v1854 = vunpack.c.l.b16 %v1735
    %v1855 = vunpack.c.h.b16 %v1735
    %v1856 = vunpack.c.l.b16 %v1736
    %v1857 = vunpack.c.h.b16 %v1736
    %v1858 = vunpack.c.l.b16 %v1737
    %v1859 = vunpack.c.h.b16 %v1737
    %v1860 = vunpack.c.l.b16 %v1738
    %v1861 = vunpack.c.h.b16 %v1738
    %v1862 = vunpack.c.l.b16 %v1739
    %v1863 = vunpack.c.h.b16 %v1739
    %v1864 = vunpack.c.l.b16 %v1740
    %v1865 = vunpack.c.h.b16 %v1740
    %v1866 = vunpack.c.l.b16 %v1741
    %v1867 = vunpack.c.h.b16 %v1741
    %v1868 = vunpack.c.l.b16 %v1742
    %v1869 = vunpack.c.h.b16 %v1742
    %v1870 = vunpack.c.l.b16 %v1743
    %v1871 = vunpack.c.h.b16 %v1743
    %v1872 = vunpack.c.l.b16 %v1744
    %v1873 = vunpack.c.h.b16 %v1744
    %v1874 = vunpack.c.l.b16 %v1745
    %v1875 = vunpack.c.h.b16 %v1745
    %v1876 = vunpack.c.l.b16 %v1746
    %v1877 = vunpack.c.h.b16 %v1746
    %v1878 = vunpack.c.l.b16 %v1747
    %v1879 = vunpack.c.h.b16 %v1747
    %v1880 = vunpack.c.l.b16 %v1748
    %v1881 = vunpack.c.h.b16 %v1748
    %v1882 = vunpack.c.l.b16 %v1749
    %v1883 = vunpack.c.h.b16 %v1749
    %v1884 = vunpack.c.l.b16 %v1750
    %v1885 = vunpack.c.h.b16 %v1750
    %v1886 = vunpack.c.l.b16 %v1751
    %v1887 = vunpack.c.h.b16 %v1751
    %v1888 = vunpack.c.l.b16 %v1752
    %v1889 = vunpack.c.h.b16 %v1752
    %v1890 = vunpack.c.l.b16 %v1753
    %v1891 = vunpack.c.h.b16 %v1753
    %v1892 = vunpack.c.l.b16 %v1754
    %v1893 = vunpack.c.h.b16 %v1754
    %v1894 = vunpack.c.l.b16 %v1755
    %v1895 = vunpack.c.h.b16 %v1755
    %v1896 = vunpack.c.l.b16 %v1756
    %v1897 = vunpack.c.h.b16 %v1756
    %v1898 = vunpack.c.l.b16 %v1757
    %v1899 = vunpack.c.h.b16 %v1757
    %v1900 = vunpack.c.l.b16 %v1758
    %v1901 = vunpack.c.h.b16 %v1758
    %v1902 = vunpack.c.l.b16 %v1759
    %v1903 = vunpack.c.h.b16 %v1759
    %v1904 = vunpack.c.l.b16 %v1760
    %v1905 = vunpack.c.h.b16 %v1760
    %v1906 = vunpack.c.l.b16 %v1761
    %v1907 = vunpack.c.h.b16 %v1761
    %v1908 = vunpack.c.l.b16 %v1762
    %v1909 = vunpack.c.h.b16 %v1762
    %v1910 = vunpack.c.l.b16 %v1763
    %v1911 = vunpack.c.h.b16 %v1763
    %v1912 = vunpack.c.l.b16 %v1764
    %v1913 = vunpack.c.h.b16 %v1764
    %v1914 = vunpack.c.l.b16 %v1765
    %v1915 = vunpack.c.h.b16 %v1765
    %v1916 = vunpack.c.l.b16 %v1766
    %v1917 = vunpack.c.h.b16 %v1766
    %v1918 = vunpack.c.l.b16 %v1767
    %v1919 = vunpack.c.h.b16 %v1767
    %v1920 = vunpack.c.l.b16 %v1768
    %v1921 = vunpack.c.h.b16 %v1768
    %v1922 = vpack.c.b16 %v1828, %v1826
    %v1923 = vpack.c.b16 %v1829, %v1827
    %v1924 = vpack.c.b16 %v1832, %v1830
    %v1925 = vpack.c.b16 %v1833, %v1831
    %v1926 = vpack.c.b16 %v1836, %v1834
    %v1927 = vpack.c.b16 %v1837, %v1835
    %v1928 = vpack.c.b16 %v1840, %v1838
    %v1929 = vpack.c.b16 %v1841, %v1839
    %v1930 = vpack.c.b16 %v1844, %v1842
    %v1931 = vpack.c.b16 %v1845, %v1843
    %v1932 = vpack.c.b16 %v1848, %v1846
    %v1933 = vpack.c.b16 %v1849, %v1847
    %v1934 = vpack.c.b16 %v1852, %v1850
    %v1935 = vpack.c.b16 %v1853, %v1851
    %v1936 = vpack.c.b16 %v1856, %v1854
    %v1937 = vpack.c.b16 %v1857, %v1855
    %v1938 = vpack.c.b16 %v1860, %v1858
    %v1939 = vpack.c.b16 %v1861, %v1859
    %v1940 = vpack.c.b16 %v1864, %v1862
    %v1941 = vpack.c.b16 %v1865, %v1863
    %v1942 = vpack.c.b16 %v1868, %v1866
    %v1943 = vpack.c.b16 %v1869, %v1867
    %v1944 = vpack.c.b16 %v1872, %v1870
    %v1945 = vpack.c.b16 %v1873, %v1871
    %v1946 = vpack.c.b16 %v1876, %v1874
    %v1947 = vpack.c.b16 %v1877, %v1875
    %v1948 = vpack.c.b16 %v1880, %v1878
    %v1949 = vpack.c.b16 %v1881, %v1879
    %v1950 = vpack.c.b16 %v1884, %v1882
    %v1951 = vpack.c.b16 %v1885, %v1883
    %v1952 = vpack.c.b16 %v1888, %v1886
    %v1953 = vpack.c.b16 %v1889, %v1887
    %v1954 = vpack.c.b16 %v1892, %v1890
    %v1955 = vpack.c.b16 %v1893, %v1891
    %v1956 = vpack.c.b16 %v1896, %v1894
    %v1957 = vpack.c.b16 %v1897, %v1895
    %v1958 = vpack.c.b16 %v1900, %v1898
    %v1959 = vpack.c.b16 %v1901, %v1899
    %v1960 = vpack.c.b16 %v1904, %v1902
    %v1961 = vpack.c.b16 %v1905, %v1903
    %v1962 = vpack.c.b16 %v1908, %v1906
    %v1963 = vpack.c.b16 %v1909, %v1907
    %v1964 = vpack.c.b16 %v1912, %v1910
    %v1965 = vpack.c.b16 %v1913, %v1911
    %v1966 = vpack.c.b16 %v1916, %v1914
    %v1967 = vpack.c.b16 %v1917, %v1915
    %v1968 = vpack.c.b16 %v1920, %v1918
    %v1969 = vpack.c.b16 %v1921, %v1919
    %2018 = vmatprep.subr.bf16.mxu0 %v1923
    %2019 = vmatpush1.bf16.msra.mxu0 %v1922
    %2020 = vmatprep.subr.bf16.mxu0 %v1925
    %2021 = vmatpush1.bf16.msra.mxu0 %v1924
    %2022 = vmatprep.subr.bf16.mxu0 %v1927
    %2023 = vmatpush1.bf16.msra.mxu0 %v1926
    %2024 = vmatprep.subr.bf16.mxu0 %v1929
    %2025 = vmatpush1.bf16.msra.mxu0 %v1928
    %2026 = vmatprep.subr.bf16.mxu0 %v1931
    %2027 = vmatpush1.bf16.msra.mxu0 %v1930
    %2028 = vmatprep.subr.bf16.mxu0 %v1933
    %2029 = vmatpush1.bf16.msra.mxu0 %v1932
    %2030 = vmatprep.subr.bf16.mxu0 %v1935
    %2031 = vmatpush1.bf16.msra.mxu0 %v1934
    %2032 = vmatprep.subr.bf16.mxu0 %v1937
    %2033 = vmatpush1.bf16.msra.mxu0 %v1936
    %2034 = vmatprep.subr.bf16.mxu0 %v1939
    %2035 = vmatpush1.bf16.msra.mxu0 %v1938
    %2036 = vmatprep.subr.bf16.mxu0 %v1941
    %2037 = vmatpush1.bf16.msra.mxu0 %v1940
    %2038 = vmatprep.subr.bf16.mxu0 %v1943
    %2039 = vmatpush1.bf16.msra.mxu0 %v1942
    %2040 = vmatprep.subr.bf16.mxu0 %v1945
    %2041 = vmatpush1.bf16.msra.mxu0 %v1944
    %2042 = vmatprep.subr.bf16.mxu0 %v1947
    %2043 = vmatpush1.bf16.msra.mxu0 %v1946
    %2044 = vmatprep.subr.bf16.mxu0 %v1949
    %2045 = vmatpush1.bf16.msra.mxu0 %v1948
    %2046 = vmatprep.subr.bf16.mxu0 %v1951
    %2047 = vmatpush1.bf16.msra.mxu0 %v1950
    %2048 = vmatprep.subr.bf16.mxu0 %v1953
    %2049 = vmatpush1.bf16.msra.mxu0 %v1952
    %2050 = vmatprep.mubr.bf16.mxu0 %v1385
    %2051 = vmatmul.mubr.bf16.gmra.mrb[0].mxu0 %v987
    %v2052 = vpop.f32.mrb[0].mxu0
    %v2053 = vadd.f32 0.0, %v2052
    %v2054 = vpop.f32.mrb[0].mxu0
    %v2055 = vadd.f32 0.0, %v2054
    %v2056 = vpop.f32.mrb[0].mxu0
    %v2057 = vpop.f32.mrb[0].mxu0
    %2058 = vdwg.mxu0
    %2059 = vmatprep.subr.bf16.mxu0 %v1955
    %2060 = vmatpush1.bf16.msra.mxu0 %v1954
    %2061 = vmatprep.subr.bf16.mxu0 %v1957
    %2062 = vmatpush1.bf16.msra.mxu0 %v1956
    %2063 = vmatprep.subr.bf16.mxu0 %v1959
    %2064 = vmatpush1.bf16.msra.mxu0 %v1958
    %2065 = vmatprep.subr.bf16.mxu0 %v1961
    %2066 = vmatpush1.bf16.msra.mxu0 %v1960
    %2067 = vmatprep.subr.bf16.mxu0 %v1963
    %2068 = vmatpush1.bf16.msra.mxu0 %v1962
    %2069 = vmatprep.subr.bf16.mxu0 %v1965
    %2070 = vmatpush1.bf16.msra.mxu0 %v1964
    %2071 = vmatprep.subr.bf16.mxu0 %v1967
    %2072 = vmatpush1.bf16.msra.mxu0 %v1966
    %2073 = vmatprep.subr.bf16.mxu0 %v1969
    %2074 = vmatpush1.bf16.msra.mxu0 %v1968
    %2075 = vmatprep.subr.bf16.mxu0 0
    %2076 = vmatpush1.bf16.msra.mxu0 0
    %2077 = vmatprep.subr.bf16.mxu0 0
    %2078 = vmatpush1.bf16.msra.mxu0 0
    %2079 = vmatprep.subr.bf16.mxu0 0
    %2080 = vmatpush1.bf16.msra.mxu0 0
    %2081 = vmatprep.subr.bf16.mxu0 0
    %2082 = vmatpush1.bf16.msra.mxu0 0
    %2083 = vmatprep.subr.bf16.mxu0 0
    %2084 = vmatpush1.bf16.msra.mxu0 0
    %2085 = vmatprep.subr.bf16.mxu0 0
    %2086 = vmatpush1.bf16.msra.mxu0 0
    %2087 = vmatprep.subr.bf16.mxu0 0
    %2088 = vmatpush1.bf16.msra.mxu0 0
    %2089 = vmatprep.subr.bf16.mxu0 0
    %2090 = vmatpush1.bf16.msra.mxu0 0
    %2091 = vmatprep.mubr.bf16.mxu0 0
    %2092 = vmatmul.mubr.bf16.gmra.mrb[0].mxu0 %v1776
    %v2093 = vpop.f32.mrb[0].mxu0
    %v2094 = vadd.f32 %v2053, %v2093
    %v2095 = vpop.f32.mrb[0].mxu0
    %v2096 = vadd.f32 %v2055, %v2095
    %v2097 = vpop.f32.mrb[0].mxu0
    %v2098 = vpop.f32.mrb[0].mxu0
    %2099 = vdwg.mxu0
    %2101 = vrot.lane.b32.xlu0 %v2094, 64
    %v2102 = vpop.permute.xlu0 %2101
    %v2104 = vmax.f32 %v2094, %v2102
    %2106 = vrot.lane.b32.xlu0 %v2096, 64
    %v2107 = vpop.permute.xlu0 %2106
    %v2109 = vmax.f32 %v2096, %v2107
    %v2110 = vmax.f32 %v2104, %v2109
    %s2111 = scalar_lea.vmem [#allocation5], 1920
    %v2112 = vld [vmem:[%s2111] sm:$0xff]
    %v2113 = vld [vmem:[%s2111 + $0x8] sm:$0xff]
    %v2114 = vld [vmem:[%s2111 + $0x10] sm:$0xff]
    %v2115 = vld [vmem:[%s2111 + $0x18] sm:$0xff]
    %v2116 = vld [vmem:[%s2111 + $0x20] sm:$0xff]
    %v2117 = vld [vmem:[%s2111 + $0x28] sm:$0xff]
    %v2118 = vld [vmem:[%s2111 + $0x30] sm:$0xff]
    %v2119 = vld [vmem:[%s2111 + $0x38] sm:$0xff]
    %v2120 = vld [vmem:[%s2111 + $0x40] sm:$0xff]
    %v2121 = vld [vmem:[%s2111 + $0x48] sm:$0xff]
    %v2122 = vld [vmem:[%s2111 + $0x50] sm:$0xff]
    %v2123 = vld [vmem:[%s2111 + $0x58] sm:$0xff]
    %v2124 = vld [vmem:[%s2111 + $0x60] sm:$0xff]
    %v2125 = vld [vmem:[%s2111 + $0x68] sm:$0xff]
    %v2126 = vld [vmem:[%s2111 + $0x70] sm:$0xff]
    %v2127 = vld [vmem:[%s2111 + $0x78] sm:$0xff]
    %v2128 = vld [vmem:[%s2111 + $0x80] sm:$0xff]
    %v2129 = vld [vmem:[%s2111 + $0x88] sm:$0xff]
    %v2130 = vld [vmem:[%s2111 + $0x90] sm:$0xff]
    %v2131 = vld [vmem:[%s2111 + $0x98] sm:$0xff]
    %v2132 = vld [vmem:[%s2111 + $0xa0] sm:$0xff]
    %v2133 = vld [vmem:[%s2111 + $0xa8] sm:$0xff]
    %v2134 = vld [vmem:[%s2111 + $0xb0] sm:$0xff]
    %v2135 = vld [vmem:[%s2111 + $0xb8] sm:$0xff]
    %v2136 = vld [vmem:[%s2111 + $0xc0] sm:$0xff]
    %v2137 = vld [vmem:[%s2111 + $0xc8] sm:$0xff]
    %v2138 = vld [vmem:[%s2111 + $0xd0] sm:$0xff]
    %v2139 = vld [vmem:[%s2111 + $0xd8] sm:$0xff]
    %v2140 = vld [vmem:[%s2111 + $0xe0] sm:$0xff]
    %v2141 = vld [vmem:[%s2111 + $0xe8] sm:$0xff]
    %v2142 = vld [vmem:[%s2111 + $0xf0] sm:$0xff]
    %v2143 = vld [vmem:[%s2111 + $0xf8] sm:$0xff]
    %v2144 = vld [vmem:[%s2111 + $0x100] sm:$0xff]
    %v2145 = vld [vmem:[%s2111 + $0x108] sm:$0xff]
    %v2146 = vld [vmem:[%s2111 + $0x110] sm:$0xff]
    %v2147 = vld [vmem:[%s2111 + $0x118] sm:$0xff]
    %v2148 = vld [vmem:[%s2111 + $0x120] sm:$0xff]
    %v2149 = vld [vmem:[%s2111 + $0x128] sm:$0xff]
    %v2150 = vld [vmem:[%s2111 + $0x130] sm:$0xff]
    %v2151 = vld [vmem:[%s2111 + $0x138] sm:$0xff]
    %v2152 = vld [vmem:[%s2111 + $0x140] sm:$0xff]
    %v2153 = vld [vmem:[%s2111 + $0x148] sm:$0xff]
    %v2154 = vld [vmem:[%s2111 + $0x150] sm:$0xff]
    %v2155 = vld [vmem:[%s2111 + $0x158] sm:$0xff]
    %v2156 = vld [vmem:[%s2111 + $0x160] sm:$0xff]
    %v2157 = vld [vmem:[%s2111 + $0x168] sm:$0xff]
    %v2158 = vld [vmem:[%s2111 + $0x170] sm:$0xff]
    %v2159 = vld [vmem:[%s2111 + $0x178] sm:$0xff]
    %v2160 = vcombine.high %v1385, %v1385
    %v2210 = vunpack.c.l.b16 %v2112
    %v2211 = vunpack.c.h.b16 %v2112
    %v2212 = vunpack.c.l.b16 %v2113
    %v2213 = vunpack.c.h.b16 %v2113
    %v2214 = vunpack.c.l.b16 %v2114
    %v2215 = vunpack.c.h.b16 %v2114
    %v2216 = vunpack.c.l.b16 %v2115
    %v2217 = vunpack.c.h.b16 %v2115
    %v2218 = vunpack.c.l.b16 %v2116
    %v2219 = vunpack.c.h.b16 %v2116
    %v2220 = vunpack.c.l.b16 %v2117
    %v2221 = vunpack.c.h.b16 %v2117
    %v2222 = vunpack.c.l.b16 %v2118
    %v2223 = vunpack.c.h.b16 %v2118
    %v2224 = vunpack.c.l.b16 %v2119
    %v2225 = vunpack.c.h.b16 %v2119
    %v2226 = vunpack.c.l.b16 %v2120
    %v2227 = vunpack.c.h.b16 %v2120
    %v2228 = vunpack.c.l.b16 %v2121
    %v2229 = vunpack.c.h.b16 %v2121
    %v2230 = vunpack.c.l.b16 %v2122
    %v2231 = vunpack.c.h.b16 %v2122
    %v2232 = vunpack.c.l.b16 %v2123
    %v2233 = vunpack.c.h.b16 %v2123
    %v2234 = vunpack.c.l.b16 %v2124
    %v2235 = vunpack.c.h.b16 %v2124
    %v2236 = vunpack.c.l.b16 %v2125
    %v2237 = vunpack.c.h.b16 %v2125
    %v2238 = vunpack.c.l.b16 %v2126
    %v2239 = vunpack.c.h.b16 %v2126
    %v2240 = vunpack.c.l.b16 %v2127
    %v2241 = vunpack.c.h.b16 %v2127
    %v2242 = vunpack.c.l.b16 %v2128
    %v2243 = vunpack.c.h.b16 %v2128
    %v2244 = vunpack.c.l.b16 %v2129
    %v2245 = vunpack.c.h.b16 %v2129
    %v2246 = vunpack.c.l.b16 %v2130
    %v2247 = vunpack.c.h.b16 %v2130
    %v2248 = vunpack.c.l.b16 %v2131
    %v2249 = vunpack.c.h.b16 %v2131
    %v2250 = vunpack.c.l.b16 %v2132
    %v2251 = vunpack.c.h.b16 %v2132
    %v2252 = vunpack.c.l.b16 %v2133
    %v2253 = vunpack.c.h.b16 %v2133
    %v2254 = vunpack.c.l.b16 %v2134
    %v2255 = vunpack.c.h.b16 %v2134
    %v2256 = vunpack.c.l.b16 %v2135
    %v2257 = vunpack.c.h.b16 %v2135
    %v2258 = vunpack.c.l.b16 %v2136
    %v2259 = vunpack.c.h.b16 %v2136
    %v2260 = vunpack.c.l.b16 %v2137
    %v2261 = vunpack.c.h.b16 %v2137
    %v2262 = vunpack.c.l.b16 %v2138
    %v2263 = vunpack.c.h.b16 %v2138
    %v2264 = vunpack.c.l.b16 %v2139
    %v2265 = vunpack.c.h.b16 %v2139
    %v2266 = vunpack.c.l.b16 %v2140
    %v2267 = vunpack.c.h.b16 %v2140
    %v2268 = vunpack.c.l.b16 %v2141
    %v2269 = vunpack.c.h.b16 %v2141
    %v2270 = vunpack.c.l.b16 %v2142
    %v2271 = vunpack.c.h.b16 %v2142
    %v2272 = vunpack.c.l.b16 %v2143
    %v2273 = vunpack.c.h.b16 %v2143
    %v2274 = vunpack.c.l.b16 %v2144
    %v2275 = vunpack.c.h.b16 %v2144
    %v2276 = vunpack.c.l.b16 %v2145
    %v2277 = vunpack.c.h.b16 %v2145
    %v2278 = vunpack.c.l.b16 %v2146
    %v2279 = vunpack.c.h.b16 %v2146
    %v2280 = vunpack.c.l.b16 %v2147
    %v2281 = vunpack.c.h.b16 %v2147
    %v2282 = vunpack.c.l.b16 %v2148
    %v2283 = vunpack.c.h.b16 %v2148
    %v2284 = vunpack.c.l.b16 %v2149
    %v2285 = vunpack.c.h.b16 %v2149
    %v2286 = vunpack.c.l.b16 %v2150
    %v2287 = vunpack.c.h.b16 %v2150
    %v2288 = vunpack.c.l.b16 %v2151
    %v2289 = vunpack.c.h.b16 %v2151
    %v2290 = vunpack.c.l.b16 %v2152
    %v2291 = vunpack.c.h.b16 %v2152
    %v2292 = vunpack.c.l.b16 %v2153
    %v2293 = vunpack.c.h.b16 %v2153
    %v2294 = vunpack.c.l.b16 %v2154
    %v2295 = vunpack.c.h.b16 %v2154
    %v2296 = vunpack.c.l.b16 %v2155
    %v2297 = vunpack.c.h.b16 %v2155
    %v2298 = vunpack.c.l.b16 %v2156
    %v2299 = vunpack.c.h.b16 %v2156
    %v2300 = vunpack.c.l.b16 %v2157
    %v2301 = vunpack.c.h.b16 %v2157
    %v2302 = vunpack.c.l.b16 %v2158
    %v2303 = vunpack.c.h.b16 %v2158
    %v2304 = vunpack.c.l.b16 %v2159
    %v2305 = vunpack.c.h.b16 %v2159
    %v2306 = vpack.c.b16 %v2212, %v2210
    %v2307 = vpack.c.b16 %v2213, %v2211
    %v2308 = vpack.c.b16 %v2216, %v2214
    %v2309 = vpack.c.b16 %v2217, %v2215
    %v2310 = vpack.c.b16 %v2220, %v2218
    %v2311 = vpack.c.b16 %v2221, %v2219
    %v2312 = vpack.c.b16 %v2224, %v2222
    %v2313 = vpack.c.b16 %v2225, %v2223
    %v2314 = vpack.c.b16 %v2228, %v2226
    %v2315 = vpack.c.b16 %v2229, %v2227
    %v2316 = vpack.c.b16 %v2232, %v2230
    %v2317 = vpack.c.b16 %v2233, %v2231
    %v2318 = vpack.c.b16 %v2236, %v2234
    %v2319 = vpack.c.b16 %v2237, %v2235
    %v2320 = vpack.c.b16 %v2240, %v2238
    %v2321 = vpack.c.b16 %v2241, %v2239
    %v2322 = vpack.c.b16 %v2244, %v2242
    %v2323 = vpack.c.b16 %v2245, %v2243
    %v2324 = vpack.c.b16 %v2248, %v2246
    %v2325 = vpack.c.b16 %v2249, %v2247
    %v2326 = vpack.c.b16 %v2252, %v2250
    %v2327 = vpack.c.b16 %v2253, %v2251
    %v2328 = vpack.c.b16 %v2256, %v2254
    %v2329 = vpack.c.b16 %v2257, %v2255
    %v2330 = vpack.c.b16 %v2260, %v2258
    %v2331 = vpack.c.b16 %v2261, %v2259
    %v2332 = vpack.c.b16 %v2264, %v2262
    %v2333 = vpack.c.b16 %v2265, %v2263
    %v2334 = vpack.c.b16 %v2268, %v2266
    %v2335 = vpack.c.b16 %v2269, %v2267
    %v2336 = vpack.c.b16 %v2272, %v2270
    %v2337 = vpack.c.b16 %v2273, %v2271
    %v2338 = vpack.c.b16 %v2276, %v2274
    %v2339 = vpack.c.b16 %v2277, %v2275
    %v2340 = vpack.c.b16 %v2280, %v2278
    %v2341 = vpack.c.b16 %v2281, %v2279
    %v2342 = vpack.c.b16 %v2284, %v2282
    %v2343 = vpack.c.b16 %v2285, %v2283
    %v2344 = vpack.c.b16 %v2288, %v2286
    %v2345 = vpack.c.b16 %v2289, %v2287
    %v2346 = vpack.c.b16 %v2292, %v2290
    %v2347 = vpack.c.b16 %v2293, %v2291
    %v2348 = vpack.c.b16 %v2296, %v2294
    %v2349 = vpack.c.b16 %v2297, %v2295
    %v2350 = vpack.c.b16 %v2300, %v2298
    %v2351 = vpack.c.b16 %v2301, %v2299
    %v2352 = vpack.c.b16 %v2304, %v2302
    %v2353 = vpack.c.b16 %v2305, %v2303
    %2402 = vmatprep.subr.bf16.mxu0 %v2307
    %2403 = vmatpush1.bf16.msra.mxu0 %v2306
    %2404 = vmatprep.subr.bf16.mxu0 %v2309
    %2405 = vmatpush1.bf16.msra.mxu0 %v2308
    %2406 = vmatprep.subr.bf16.mxu0 %v2311
    %2407 = vmatpush1.bf16.msra.mxu0 %v2310
    %2408 = vmatprep.subr.bf16.mxu0 %v2313
    %2409 = vmatpush1.bf16.msra.mxu0 %v2312
    %2410 = vmatprep.subr.bf16.mxu0 %v2315
    %2411 = vmatpush1.bf16.msra.mxu0 %v2314
    %2412 = vmatprep.subr.bf16.mxu0 %v2317
    %2413 = vmatpush1.bf16.msra.mxu0 %v2316
    %2414 = vmatprep.subr.bf16.mxu0 %v2319
    %2415 = vmatpush1.bf16.msra.mxu0 %v2318
    %2416 = vmatprep.subr.bf16.mxu0 %v2321
    %2417 = vmatpush1.bf16.msra.mxu0 %v2320
    %2418 = vmatprep.subr.bf16.mxu0 %v2323
    %2419 = vmatpush1.bf16.msra.mxu0 %v2322
    %2420 = vmatprep.subr.bf16.mxu0 %v2325
    %2421 = vmatpush1.bf16.msra.mxu0 %v2324
    %2422 = vmatprep.subr.bf16.mxu0 %v2327
    %2423 = vmatpush1.bf16.msra.mxu0 %v2326
    %2424 = vmatprep.subr.bf16.mxu0 %v2329
    %2425 = vmatpush1.bf16.msra.mxu0 %v2328
    %2426 = vmatprep.subr.bf16.mxu0 %v2331
    %2427 = vmatpush1.bf16.msra.mxu0 %v2330
    %2428 = vmatprep.subr.bf16.mxu0 %v2333
    %2429 = vmatpush1.bf16.msra.mxu0 %v2332
    %2430 = vmatprep.subr.bf16.mxu0 %v2335
    %2431 = vmatpush1.bf16.msra.mxu0 %v2334
    %2432 = vmatprep.subr.bf16.mxu0 %v2337
    %2433 = vmatpush1.bf16.msra.mxu0 %v2336
    %2434 = vmatprep.mubr.bf16.mxu0 %v1776
    %2435 = vmatmul.mubr.bf16.gmra.mrb[0].mxu0 %v1385
    %v2436 = vpop.f32.mrb[0].mxu0
    %v2437 = vadd.f32 0.0, %v2436
    %v2438 = vpop.f32.mrb[0].mxu0
    %v2439 = vadd.f32 0.0, %v2438
    %v2440 = vpop.f32.mrb[0].mxu0
    %v2441 = vpop.f32.mrb[0].mxu0
    %2442 = vdwg.mxu0
    %2443 = vmatprep.subr.bf16.mxu0 %v2339
    %2444 = vmatpush1.bf16.msra.mxu0 %v2338
    %2445 = vmatprep.subr.bf16.mxu0 %v2341
    %2446 = vmatpush1.bf16.msra.mxu0 %v2340
    %2447 = vmatprep.subr.bf16.mxu0 %v2343
    %2448 = vmatpush1.bf16.msra.mxu0 %v2342
    %2449 = vmatprep.subr.bf16.mxu0 %v2345
    %2450 = vmatpush1.bf16.msra.mxu0 %v2344
    %2451 = vmatprep.subr.bf16.mxu0 %v2347
    %2452 = vmatpush1.bf16.msra.mxu0 %v2346
    %2453 = vmatprep.subr.bf16.mxu0 %v2349
    %2454 = vmatpush1.bf16.msra.mxu0 %v2348
    %2455 = vmatprep.subr.bf16.mxu0 %v2351
    %2456 = vmatpush1.bf16.msra.mxu0 %v2350
    %2457 = vmatprep.subr.bf16.mxu0 %v2353
    %2458 = vmatpush1.bf16.msra.mxu0 %v2352
    %2459 = vmatprep.subr.bf16.mxu0 0
    %2460 = vmatpush1.bf16.msra.mxu0 0
    %2461 = vmatprep.subr.bf16.mxu0 0
    %2462 = vmatpush1.bf16.msra.mxu0 0
    %2463 = vmatprep.subr.bf16.mxu0 0
    %2464 = vmatpush1.bf16.msra.mxu0 0
    %2465 = vmatprep.subr.bf16.mxu0 0
    %2466 = vmatpush1.bf16.msra.mxu0 0
    %2467 = vmatprep.subr.bf16.mxu0 0
    %2468 = vmatpush1.bf16.msra.mxu0 0
    %2469 = vmatprep.subr.bf16.mxu0 0
    %2470 = vmatpush1.bf16.msra.mxu0 0
    %2471 = vmatprep.subr.bf16.mxu0 0
    %2472 = vmatpush1.bf16.msra.mxu0 0
    %2473 = vmatprep.subr.bf16.mxu0 0
    %2474 = vmatpush1.bf16.msra.mxu0 0
    %2475 = vmatprep.mubr.bf16.mxu0 0
    %2476 = vmatmul.mubr.bf16.gmra.mrb[0].mxu0 %v2160
    %v2477 = vpop.f32.mrb[0].mxu0
    %v2478 = vadd.f32 %v2437, %v2477
    %v2479 = vpop.f32.mrb[0].mxu0
    %v2480 = vadd.f32 %v2439, %v2479
    %v2481 = vpop.f32.mrb[0].mxu0
    %v2482 = vpop.f32.mrb[0].mxu0
    %2483 = vdwg.mxu0
    %2485 = vrot.lane.b32.xlu0 %v2478, 64
    %v2486 = vpop.permute.xlu0 %2485
    %v2488 = vmax.f32 %v2478, %v2486
    %2490 = vrot.lane.b32.xlu0 %v2480, 64
    %v2491 = vpop.permute.xlu0 %2490
    %v2493 = vmax.f32 %v2480, %v2491
    %v2494 = vmax.f32 %v2488, %v2493
    %s2495 = scalar_lea.vmem [#allocation5], 2304
    %v2496 = vld [vmem:[%s2495] sm:$0xff]
    %v2497 = vld [vmem:[%s2495 + $0x8] sm:$0xff]
    %v2498 = vld [vmem:[%s2495 + $0x10] sm:$0xff]
    %v2499 = vld [vmem:[%s2495 + $0x18] sm:$0xff]
    %v2500 = vld [vmem:[%s2495 + $0x20] sm:$0xff]
    %v2501 = vld [vmem:[%s2495 + $0x28] sm:$0xff]
    %v2502 = vld [vmem:[%s2495 + $0x30] sm:$0xff]
    %v2503 = vld [vmem:[%s2495 + $0x38] sm:$0xff]
    %v2504 = vld [vmem:[%s2495 + $0x40] sm:$0xff]
    %v2505 = vld [vmem:[%s2495 + $0x48] sm:$0xff]
    %v2506 = vld [vmem:[%s2495 + $0x50] sm:$0xff]
    %v2507 = vld [vmem:[%s2495 + $0x58] sm:$0xff]
    %v2508 = vld [vmem:[%s2495 + $0x60] sm:$0xff]
    %v2509 = vld [vmem:[%s2495 + $0x68] sm:$0xff]
    %v2510 = vld [vmem:[%s2495 + $0x70] sm:$0xff]
    %v2511 = vld [vmem:[%s2495 + $0x78] sm:$0xff]
    %v2512 = vld [vmem:[%s2495 + $0x80] sm:$0xff]
    %v2513 = vld [vmem:[%s2495 + $0x88] sm:$0xff]
    %v2514 = vld [vmem:[%s2495 + $0x90] sm:$0xff]
    %v2515 = vld [vmem:[%s2495 + $0x98] sm:$0xff]
    %v2516 = vld [vmem:[%s2495 + $0xa0] sm:$0xff]
    %v2517 = vld [vmem:[%s2495 + $0xa8] sm:$0xff]
    %v2518 = vld [vmem:[%s2495 + $0xb0] sm:$0xff]
    %v2519 = vld [vmem:[%s2495 + $0xb8] sm:$0xff]
    %v2520 = vld [vmem:[%s2495 + $0xc0] sm:$0xff]
    %v2521 = vld [vmem:[%s2495 + $0xc8] sm:$0xff]
    %v2522 = vld [vmem:[%s2495 + $0xd0] sm:$0xff]
    %v2523 = vld [vmem:[%s2495 + $0xd8] sm:$0xff]
    %v2524 = vld [vmem:[%s2495 + $0xe0] sm:$0xff]
    %v2525 = vld [vmem:[%s2495 + $0xe8] sm:$0xff]
    %v2526 = vld [vmem:[%s2495 + $0xf0] sm:$0xff]
    %v2527 = vld [vmem:[%s2495 + $0xf8] sm:$0xff]
    %v2528 = vld [vmem:[%s2495 + $0x100] sm:$0xff]
    %v2529 = vld [vmem:[%s2495 + $0x108] sm:$0xff]
    %v2530 = vld [vmem:[%s2495 + $0x110] sm:$0xff]
    %v2531 = vld [vmem:[%s2495 + $0x118] sm:$0xff]
    %v2532 = vld [vmem:[%s2495 + $0x120] sm:$0xff]
    %v2533 = vld [vmem:[%s2495 + $0x128] sm:$0xff]
    %v2534 = vld [vmem:[%s2495 + $0x130] sm:$0xff]
    %v2535 = vld [vmem:[%s2495 + $0x138] sm:$0xff]
    %v2536 = vld [vmem:[%s2495 + $0x140] sm:$0xff]
    %v2537 = vld [vmem:[%s2495 + $0x148] sm:$0xff]
    %v2538 = vld [vmem:[%s2495 + $0x150] sm:$0xff]
    %v2539 = vld [vmem:[%s2495 + $0x158] sm:$0xff]
    %v2540 = vld [vmem:[%s2495 + $0x160] sm:$0xff]
    %v2541 = vld [vmem:[%s2495 + $0x168] sm:$0xff]
    %v2542 = vld [vmem:[%s2495 + $0x170] sm:$0xff]
    %v2543 = vld [vmem:[%s2495 + $0x178] sm:$0xff]
    %v2544 = vcombine.high %v1776, %v1776
    %v2594 = vunpack.c.l.b16 %v2496
    %v2595 = vunpack.c.h.b16 %v2496
    %v2596 = vunpack.c.l.b16 %v2497
    %v2597 = vunpack.c.h.b16 %v2497
    %v2598 = vunpack.c.l.b16 %v2498
    %v2599 = vunpack.c.h.b16 %v2498
    %v2600 = vunpack.c.l.b16 %v2499
    %v2601 = vunpack.c.h.b16 %v2499
    %v2602 = vunpack.c.l.b16 %v2500
    %v2603 = vunpack.c.h.b16 %v2500
    %v2604 = vunpack.c.l.b16 %v2501
    %v2605 = vunpack.c.h.b16 %v2501
    %v2606 = vunpack.c.l.b16 %v2502
    %v2607 = vunpack.c.h.b16 %v2502
    %v2608 = vunpack.c.l.b16 %v2503
    %v2609 = vunpack.c.h.b16 %v2503
    %v2610 = vunpack.c.l.b16 %v2504
    %v2611 = vunpack.c.h.b16 %v2504
    %v2612 = vunpack.c.l.b16 %v2505
    %v2613 = vunpack.c.h.b16 %v2505
    %v2614 = vunpack.c.l.b16 %v2506
    %v2615 = vunpack.c.h.b16 %v2506
    %v2616 = vunpack.c.l.b16 %v2507
    %v2617 = vunpack.c.h.b16 %v2507
    %v2618 = vunpack.c.l.b16 %v2508
    %v2619 = vunpack.c.h.b16 %v2508
    %v2620 = vunpack.c.l.b16 %v2509
    %v2621 = vunpack.c.h.b16 %v2509
    %v2622 = vunpack.c.l.b16 %v2510
    %v2623 = vunpack.c.h.b16 %v2510
    %v2624 = vunpack.c.l.b16 %v2511
    %v2625 = vunpack.c.h.b16 %v2511
    %v2626 = vunpack.c.l.b16 %v2512
    %v2627 = vunpack.c.h.b16 %v2512
    %v2628 = vunpack.c.l.b16 %v2513
    %v2629 = vunpack.c.h.b16 %v2513
    %v2630 = vunpack.c.l.b16 %v2514
    %v2631 = vunpack.c.h.b16 %v2514
    %v2632 = vunpack.c.l.b16 %v2515
    %v2633 = vunpack.c.h.b16 %v2515
    %v2634 = vunpack.c.l.b16 %v2516
    %v2635 = vunpack.c.h.b16 %v2516
    %v2636 = vunpack.c.l.b16 %v2517
    %v2637 = vunpack.c.h.b16 %v2517
    %v2638 = vunpack.c.l.b16 %v2518
    %v2639 = vunpack.c.h.b16 %v2518
    %v2640 = vunpack.c.l.b16 %v2519
    %v2641 = vunpack.c.h.b16 %v2519
    %v2642 = vunpack.c.l.b16 %v2520
    %v2643 = vunpack.c.h.b16 %v2520
    %v2644 = vunpack.c.l.b16 %v2521
    %v2645 = vunpack.c.h.b16 %v2521
    %v2646 = vunpack.c.l.b16 %v2522
    %v2647 = vunpack.c.h.b16 %v2522
    %v2648 = vunpack.c.l.b16 %v2523
    %v2649 = vunpack.c.h.b16 %v2523
    %v2650 = vunpack.c.l.b16 %v2524
    %v2651 = vunpack.c.h.b16 %v2524
    %v2652 = vunpack.c.l.b16 %v2525
    %v2653 = vunpack.c.h.b16 %v2525
    %v2654 = vunpack.c.l.b16 %v2526
    %v2655 = vunpack.c.h.b16 %v2526
    %v2656 = vunpack.c.l.b16 %v2527
    %v2657 = vunpack.c.h.b16 %v2527
    %v2658 = vunpack.c.l.b16 %v2528
    %v2659 = vunpack.c.h.b16 %v2528
    %v2660 = vunpack.c.l.b16 %v2529
    %v2661 = vunpack.c.h.b16 %v2529
    %v2662 = vunpack.c.l.b16 %v2530
    %v2663 = vunpack.c.h.b16 %v2530
    %v2664 = vunpack.c.l.b16 %v2531
    %v2665 = vunpack.c.h.b16 %v2531
    %v2666 = vunpack.c.l.b16 %v2532
    %v2667 = vunpack.c.h.b16 %v2532
    %v2668 = vunpack.c.l.b16 %v2533
    %v2669 = vunpack.c.h.b16 %v2533
    %v2670 = vunpack.c.l.b16 %v2534
    %v2671 = vunpack.c.h.b16 %v2534
    %v2672 = vunpack.c.l.b16 %v2535
    %v2673 = vunpack.c.h.b16 %v2535
    %v2674 = vunpack.c.l.b16 %v2536
    %v2675 = vunpack.c.h.b16 %v2536
    %v2676 = vunpack.c.l.b16 %v2537
    %v2677 = vunpack.c.h.b16 %v2537
    %v2678 = vunpack.c.l.b16 %v2538
    %v2679 = vunpack.c.h.b16 %v2538
    %v2680 = vunpack.c.l.b16 %v2539
    %v2681 = vunpack.c.h.b16 %v2539
    %v2682 = vunpack.c.l.b16 %v2540
    %v2683 = vunpack.c.h.b16 %v2540
    %v2684 = vunpack.c.l.b16 %v2541
    %v2685 = vunpack.c.h.b16 %v2541
    %v2686 = vunpack.c.l.b16 %v2542
    %v2687 = vunpack.c.h.b16 %v2542
    %v2688 = vunpack.c.l.b16 %v2543
    %v2689 = vunpack.c.h.b16 %v2543
    %v2690 = vpack.c.b16 %v2596, %v2594
    %v2691 = vpack.c.b16 %v2597, %v2595
    %v2692 = vpack.c.b16 %v2600, %v2598
    %v2693 = vpack.c.b16 %v2601, %v2599
    %v2694 = vpack.c.b16 %v2604, %v2602
    %v2695 = vpack.c.b16 %v2605, %v2603
    %v2696 = vpack.c.b16 %v2608, %v2606
    %v2697 = vpack.c.b16 %v2609, %v2607
    %v2698 = vpack.c.b16 %v2612, %v2610
    %v2699 = vpack.c.b16 %v2613, %v2611
    %v2700 = vpack.c.b16 %v2616, %v2614
    %v2701 = vpack.c.b16 %v2617, %v2615
    %v2702 = vpack.c.b16 %v2620, %v2618
    %v2703 = vpack.c.b16 %v2621, %v2619
    %v2704 = vpack.c.b16 %v2624, %v2622
    %v2705 = vpack.c.b16 %v2625, %v2623
    %v2706 = vpack.c.b16 %v2628, %v2626
    %v2707 = vpack.c.b16 %v2629, %v2627
    %v2708 = vpack.c.b16 %v2632, %v2630
    %v2709 = vpack.c.b16 %v2633, %v2631
    %v2710 = vpack.c.b16 %v2636, %v2634
    %v2711 = vpack.c.b16 %v2637, %v2635
    %v2712 = vpack.c.b16 %v2640, %v2638
    %v2713 = vpack.c.b16 %v2641, %v2639
    %v2714 = vpack.c.b16 %v2644, %v2642
    %v2715 = vpack.c.b16 %v2645, %v2643
    %v2716 = vpack.c.b16 %v2648, %v2646
    %v2717 = vpack.c.b16 %v2649, %v2647
    %v2718 = vpack.c.b16 %v2652, %v2650
    %v2719 = vpack.c.b16 %v2653, %v2651
    %v2720 = vpack.c.b16 %v2656, %v2654
    %v2721 = vpack.c.b16 %v2657, %v2655
    %v2722 = vpack.c.b16 %v2660, %v2658
    %v2723 = vpack.c.b16 %v2661, %v2659
    %v2724 = vpack.c.b16 %v2664, %v2662
    %v2725 = vpack.c.b16 %v2665, %v2663
    %v2726 = vpack.c.b16 %v2668, %v2666
    %v2727 = vpack.c.b16 %v2669, %v2667
    %v2728 = vpack.c.b16 %v2672, %v2670
    %v2729 = vpack.c.b16 %v2673, %v2671
    %v2730 = vpack.c.b16 %v2676, %v2674
    %v2731 = vpack.c.b16 %v2677, %v2675
    %v2732 = vpack.c.b16 %v2680, %v2678
    %v2733 = vpack.c.b16 %v2681, %v2679
    %v2734 = vpack.c.b16 %v2684, %v2682
    %v2735 = vpack.c.b16 %v2685, %v2683
    %v2736 = vpack.c.b16 %v2688, %v2686
    %v2737 = vpack.c.b16 %v2689, %v2687
    %2786 = vmatprep.subr.bf16.mxu0 %v2691
    %2787 = vmatpush1.bf16.msra.mxu0 %v2690
    %2788 = vmatprep.subr.bf16.mxu0 %v2693
    %2789 = vmatpush1.bf16.msra.mxu0 %v2692
    %2790 = vmatprep.subr.bf16.mxu0 %v2695
    %2791 = vmatpush1.bf16.msra.mxu0 %v2694
    %2792 = vmatprep.subr.bf16.mxu0 %v2697
    %2793 = vmatpush1.bf16.msra.mxu0 %v2696
    %2794 = vmatprep.subr.bf16.mxu0 %v2699
    %2795 = vmatpush1.bf16.msra.mxu0 %v2698
    %2796 = vmatprep.subr.bf16.mxu0 %v2701
    %2797 = vmatpush1.bf16.msra.mxu0 %v2700
    %2798 = vmatprep.subr.bf16.mxu0 %v2703
    %2799 = vmatpush1.bf16.msra.mxu0 %v2702
    %2800 = vmatprep.subr.bf16.mxu0 %v2705
    %2801 = vmatpush1.bf16.msra.mxu0 %v2704
    %2802 = vmatprep.subr.bf16.mxu0 %v2707
    %2803 = vmatpush1.bf16.msra.mxu0 %v2706
    %2804 = vmatprep.subr.bf16.mxu0 %v2709
    %2805 = vmatpush1.bf16.msra.mxu0 %v2708
    %2806 = vmatprep.subr.bf16.mxu0 %v2711
    %2807 = vmatpush1.bf16.msra.mxu0 %v2710
    %2808 = vmatprep.subr.bf16.mxu0 %v2713
    %2809 = vmatpush1.bf16.msra.mxu0 %v2712
    %2810 = vmatprep.subr.bf16.mxu0 %v2715
    %2811 = vmatpush1.bf16.msra.mxu0 %v2714
    %2812 = vmatprep.subr.bf16.mxu0 %v2717
    %2813 = vmatpush1.bf16.msra.mxu0 %v2716
    %2814 = vmatprep.subr.bf16.mxu0 %v2719
    %2815 = vmatpush1.bf16.msra.mxu0 %v2718
    %2816 = vmatprep.subr.bf16.mxu0 %v2721
    %2817 = vmatpush1.bf16.msra.mxu0 %v2720
    %2818 = vmatprep.mubr.bf16.mxu0 %v2160
    %2819 = vmatmul.mubr.bf16.gmra.mrb[0].mxu0 %v1776
    %v2820 = vpop.f32.mrb[0].mxu0
    %v2821 = vadd.f32 0.0, %v2820
    %v2822 = vpop.f32.mrb[0].mxu0
    %v2823 = vadd.f32 0.0, %v2822
    %v2824 = vpop.f32.mrb[0].mxu0
    %v2825 = vpop.f32.mrb[0].mxu0
    %2826 = vdwg.mxu0
    %2827 = vmatprep.subr.bf16.mxu0 %v2723
    %2828 = vmatpush1.bf16.msra.mxu0 %v2722
    %2829 = vmatprep.subr.bf16.mxu0 %v2725
    %2830 = vmatpush1.bf16.msra.mxu0 %v2724
    %2831 = vmatprep.subr.bf16.mxu0 %v2727
    %2832 = vmatpush1.bf16.msra.mxu0 %v2726
    %2833 = vmatprep.subr.bf16.mxu0 %v2729
    %2834 = vmatpush1.bf16.msra.mxu0 %v2728
    %2835 = vmatprep.subr.bf16.mxu0 %v2731
    %2836 = vmatpush1.bf16.msra.mxu0 %v2730
    %2837 = vmatprep.subr.bf16.mxu0 %v2733
    %2838 = vmatpush1.bf16.msra.mxu0 %v2732
    %2839 = vmatprep.subr.bf16.mxu0 %v2735
    %2840 = vmatpush1.bf16.msra.mxu0 %v2734
    %2841 = vmatprep.subr.bf16.mxu0 %v2737
    %2842 = vmatpush1.bf16.msra.mxu0 %v2736
    %2843 = vmatprep.subr.bf16.mxu0 0
    %2844 = vmatpush1.bf16.msra.mxu0 0
    %2845 = vmatprep.subr.bf16.mxu0 0
    %2846 = vmatpush1.bf16.msra.mxu0 0
    %2847 = vmatprep.subr.bf16.mxu0 0
    %2848 = vmatpush1.bf16.msra.mxu0 0
    %2849 = vmatprep.subr.bf16.mxu0 0
    %2850 = vmatpush1.bf16.msra.mxu0 0
    %2851 = vmatprep.subr.bf16.mxu0 0
    %2852 = vmatpush1.bf16.msra.mxu0 0
    %2853 = vmatprep.subr.bf16.mxu0 0
    %2854 = vmatpush1.bf16.msra.mxu0 0
    %2855 = vmatprep.subr.bf16.mxu0 0
    %2856 = vmatpush1.bf16.msra.mxu0 0
    %2857 = vmatprep.subr.bf16.mxu0 0
    %2858 = vmatpush1.bf16.msra.mxu0 0
    %2859 = vmatprep.mubr.bf16.mxu0 0
    %2860 = vmatmul.mubr.bf16.gmra.mrb[0].mxu0 %v2544
    %v2861 = vpop.f32.mrb[0].mxu0
    %v2862 = vadd.f32 %v2821, %v2861
    %v2863 = vpop.f32.mrb[0].mxu0
    %v2864 = vadd.f32 %v2823, %v2863
    %v2865 = vpop.f32.mrb[0].mxu0
    %v2866 = vpop.f32.mrb[0].mxu0
    %2867 = vdwg.mxu0
    %2869 = vrot.lane.b32.xlu0 %v2862, 64
    %v2870 = vpop.permute.xlu0 %2869
    %v2872 = vmax.f32 %v2862, %v2870
    %2874 = vrot.lane.b32.xlu0 %v2864, 64
    %v2875 = vpop.permute.xlu0 %2874
    %v2877 = vmax.f32 %v2864, %v2875
    %v2878 = vmax.f32 %v2872, %v2877
    %s2879 = scalar_lea.vmem [#allocation5], 2688
    %v2880 = vld [vmem:[%s2879] sm:$0xff]
    %v2881 = vld [vmem:[%s2879 + $0x8] sm:$0xff]
    %v2882 = vld [vmem:[%s2879 + $0x10] sm:$0xff]
    %v2883 = vld [vmem:[%s2879 + $0x18] sm:$0xff]
    %v2884 = vld [vmem:[%s2879 + $0x20] sm:$0xff]
    %v2885 = vld [vmem:[%s2879 + $0x28] sm:$0xff]
    %v2886 = vld [vmem:[%s2879 + $0x30] sm:$0xff]
    %v2887 = vld [vmem:[%s2879 + $0x38] sm:$0xff]
    %v2888 = vld [vmem:[%s2879 + $0x40] sm:$0xff]
    %v2889 = vld [vmem:[%s2879 + $0x48] sm:$0xff]
    %v2890 = vld [vmem:[%s2879 + $0x50] sm:$0xff]
    %v2891 = vld [vmem:[%s2879 + $0x58] sm:$0xff]
    %v2892 = vld [vmem:[%s2879 + $0x60] sm:$0xff]
    %v2893 = vld [vmem:[%s2879 + $0x68] sm:$0xff]
    %v2894 = vld [vmem:[%s2879 + $0x70] sm:$0xff]
    %v2895 = vld [vmem:[%s2879 + $0x78] sm:$0xff]
    %v2896 = vld [vmem:[%s2879 + $0x80] sm:$0xff]
    %v2897 = vld [vmem:[%s2879 + $0x88] sm:$0xff]
    %v2898 = vld [vmem:[%s2879 + $0x90] sm:$0xff]
    %v2899 = vld [vmem:[%s2879 + $0x98] sm:$0xff]
    %v2900 = vld [vmem:[%s2879 + $0xa0] sm:$0xff]
    %v2901 = vld [vmem:[%s2879 + $0xa8] sm:$0xff]
    %v2902 = vld [vmem:[%s2879 + $0xb0] sm:$0xff]
    %v2903 = vld [vmem:[%s2879 + $0xb8] sm:$0xff]
    %v2904 = vld [vmem:[%s2879 + $0xc0] sm:$0xff]
    %v2905 = vld [vmem:[%s2879 + $0xc8] sm:$0xff]
    %v2906 = vld [vmem:[%s2879 + $0xd0] sm:$0xff]
    %v2907 = vld [vmem:[%s2879 + $0xd8] sm:$0xff]
    %v2908 = vld [vmem:[%s2879 + $0xe0] sm:$0xff]
    %v2909 = vld [vmem:[%s2879 + $0xe8] sm:$0xff]
    %v2910 = vld [vmem:[%s2879 + $0xf0] sm:$0xff]
    %v2911 = vld [vmem:[%s2879 + $0xf8] sm:$0xff]
    %v2912 = vld [vmem:[%s2879 + $0x100] sm:$0xff]
    %v2913 = vld [vmem:[%s2879 + $0x108] sm:$0xff]
    %v2914 = vld [vmem:[%s2879 + $0x110] sm:$0xff]
    %v2915 = vld [vmem:[%s2879 + $0x118] sm:$0xff]
    %v2916 = vld [vmem:[%s2879 + $0x120] sm:$0xff]
    %v2917 = vld [vmem:[%s2879 + $0x128] sm:$0xff]
    %v2918 = vld [vmem:[%s2879 + $0x130] sm:$0xff]
    %v2919 = vld [vmem:[%s2879 + $0x138] sm:$0xff]
    %v2920 = vld [vmem:[%s2879 + $0x140] sm:$0xff]
    %v2921 = vld [vmem:[%s2879 + $0x148] sm:$0xff]
    %v2922 = vld [vmem:[%s2879 + $0x150] sm:$0xff]
    %v2923 = vld [vmem:[%s2879 + $0x158] sm:$0xff]
    %v2924 = vld [vmem:[%s2879 + $0x160] sm:$0xff]
    %v2925 = vld [vmem:[%s2879 + $0x168] sm:$0xff]
    %v2926 = vld [vmem:[%s2879 + $0x170] sm:$0xff]
    %v2927 = vld [vmem:[%s2879 + $0x178] sm:$0xff]
    %v2976 = vunpack.c.l.b16 %v2880
    %v2977 = vunpack.c.h.b16 %v2880
    %v2978 = vunpack.c.l.b16 %v2881
    %v2979 = vunpack.c.h.b16 %v2881
    %v2980 = vunpack.c.l.b16 %v2882
    %v2981 = vunpack.c.h.b16 %v2882
    %v2982 = vunpack.c.l.b16 %v2883
    %v2983 = vunpack.c.h.b16 %v2883
    %v2984 = vunpack.c.l.b16 %v2884
    %v2985 = vunpack.c.h.b16 %v2884
    %v2986 = vunpack.c.l.b16 %v2885
    %v2987 = vunpack.c.h.b16 %v2885
    %v2988 = vunpack.c.l.b16 %v2886
    %v2989 = vunpack.c.h.b16 %v2886
    %v2990 = vunpack.c.l.b16 %v2887
    %v2991 = vunpack.c.h.b16 %v2887
    %v2992 = vunpack.c.l.b16 %v2888
    %v2993 = vunpack.c.h.b16 %v2888
    %v2994 = vunpack.c.l.b16 %v2889
    %v2995 = vunpack.c.h.b16 %v2889
    %v2996 = vunpack.c.l.b16 %v2890
    %v2997 = vunpack.c.h.b16 %v2890
    %v2998 = vunpack.c.l.b16 %v2891
    %v2999 = vunpack.c.h.b16 %v2891
    %v3000 = vunpack.c.l.b16 %v2892
    %v3001 = vunpack.c.h.b16 %v2892
    %v3002 = vunpack.c.l.b16 %v2893
    %v3003 = vunpack.c.h.b16 %v2893
    %v3004 = vunpack.c.l.b16 %v2894
    %v3005 = vunpack.c.h.b16 %v2894
    %v3006 = vunpack.c.l.b16 %v2895
    %v3007 = vunpack.c.h.b16 %v2895
    %v3008 = vunpack.c.l.b16 %v2896
    %v3009 = vunpack.c.h.b16 %v2896
    %v3010 = vunpack.c.l.b16 %v2897
    %v3011 = vunpack.c.h.b16 %v2897
    %v3012 = vunpack.c.l.b16 %v2898
    %v3013 = vunpack.c.h.b16 %v2898
    %v3014 = vunpack.c.l.b16 %v2899
    %v3015 = vunpack.c.h.b16 %v2899
    %v3016 = vunpack.c.l.b16 %v2900
    %v3017 = vunpack.c.h.b16 %v2900
    %v3018 = vunpack.c.l.b16 %v2901
    %v3019 = vunpack.c.h.b16 %v2901
    %v3020 = vunpack.c.l.b16 %v2902
    %v3021 = vunpack.c.h.b16 %v2902
    %v3022 = vunpack.c.l.b16 %v2903
    %v3023 = vunpack.c.h.b16 %v2903
    %v3024 = vunpack.c.l.b16 %v2904
    %v3025 = vunpack.c.h.b16 %v2904
    %v3026 = vunpack.c.l.b16 %v2905
    %v3027 = vunpack.c.h.b16 %v2905
    %v3028 = vunpack.c.l.b16 %v2906
    %v3029 = vunpack.c.h.b16 %v2906
    %v3030 = vunpack.c.l.b16 %v2907
    %v3031 = vunpack.c.h.b16 %v2907
    %v3032 = vunpack.c.l.b16 %v2908
    %v3033 = vunpack.c.h.b16 %v2908
    %v3034 = vunpack.c.l.b16 %v2909
    %v3035 = vunpack.c.h.b16 %v2909
    %v3036 = vunpack.c.l.b16 %v2910
    %v3037 = vunpack.c.h.b16 %v2910
    %v3038 = vunpack.c.l.b16 %v2911
    %v3039 = vunpack.c.h.b16 %v2911
    %v3040 = vunpack.c.l.b16 %v2912
    %v3041 = vunpack.c.h.b16 %v2912
    %v3042 = vunpack.c.l.b16 %v2913
    %v3043 = vunpack.c.h.b16 %v2913
    %v3044 = vunpack.c.l.b16 %v2914
    %v3045 = vunpack.c.h.b16 %v2914
    %v3046 = vunpack.c.l.b16 %v2915
    %v3047 = vunpack.c.h.b16 %v2915
    %v3048 = vunpack.c.l.b16 %v2916
    %v3049 = vunpack.c.h.b16 %v2916
    %v3050 = vunpack.c.l.b16 %v2917
    %v3051 = vunpack.c.h.b16 %v2917
    %v3052 = vunpack.c.l.b16 %v2918
    %v3053 = vunpack.c.h.b16 %v2918
    %v3054 = vunpack.c.l.b16 %v2919
    %v3055 = vunpack.c.h.b16 %v2919
    %v3056 = vunpack.c.l.b16 %v2920
    %v3057 = vunpack.c.h.b16 %v2920
    %v3058 = vunpack.c.l.b16 %v2921
    %v3059 = vunpack.c.h.b16 %v2921
    %v3060 = vunpack.c.l.b16 %v2922
    %v3061 = vunpack.c.h.b16 %v2922
    %v3062 = vunpack.c.l.b16 %v2923
    %v3063 = vunpack.c.h.b16 %v2923
    %v3064 = vunpack.c.l.b16 %v2924
    %v3065 = vunpack.c.h.b16 %v2924
    %v3066 = vunpack.c.l.b16 %v2925
    %v3067 = vunpack.c.h.b16 %v2925
    %v3068 = vunpack.c.l.b16 %v2926
    %v3069 = vunpack.c.h.b16 %v2926
    %v3070 = vunpack.c.l.b16 %v2927
    %v3071 = vunpack.c.h.b16 %v2927
    %v3072 = vpack.c.b16 %v2978, %v2976
    %v3073 = vpack.c.b16 %v2979, %v2977
    %v3074 = vpack.c.b16 %v2982, %v2980
    %v3075 = vpack.c.b16 %v2983, %v2981
    %v3076 = vpack.c.b16 %v2986, %v2984
    %v3077 = vpack.c.b16 %v2987, %v2985
    %v3078 = vpack.c.b16 %v2990, %v2988
    %v3079 = vpack.c.b16 %v2991, %v2989
    %v3080 = vpack.c.b16 %v2994, %v2992
    %v3081 = vpack.c.b16 %v2995, %v2993
    %v3082 = vpack.c.b16 %v2998, %v2996
    %v3083 = vpack.c.b16 %v2999, %v2997
    %v3084 = vpack.c.b16 %v3002, %v3000
    %v3085 = vpack.c.b16 %v3003, %v3001
    %v3086 = vpack.c.b16 %v3006, %v3004
    %v3087 = vpack.c.b16 %v3007, %v3005
    %v3088 = vpack.c.b16 %v3010, %v3008
    %v3089 = vpack.c.b16 %v3011, %v3009
    %v3090 = vpack.c.b16 %v3014, %v3012
    %v3091 = vpack.c.b16 %v3015, %v3013
    %v3092 = vpack.c.b16 %v3018, %v3016
    %v3093 = vpack.c.b16 %v3019, %v3017
    %v3094 = vpack.c.b16 %v3022, %v3020
    %v3095 = vpack.c.b16 %v3023, %v3021
    %v3096 = vpack.c.b16 %v3026, %v3024
    %v3097 = vpack.c.b16 %v3027, %v3025
    %v3098 = vpack.c.b16 %v3030, %v3028
    %v3099 = vpack.c.b16 %v3031, %v3029
    %v3100 = vpack.c.b16 %v3034, %v3032
    %v3101 = vpack.c.b16 %v3035, %v3033
    %v3102 = vpack.c.b16 %v3038, %v3036
    %v3103 = vpack.c.b16 %v3039, %v3037
    %v3104 = vpack.c.b16 %v3042, %v3040
    %v3105 = vpack.c.b16 %v3043, %v3041
    %v3106 = vpack.c.b16 %v3046, %v3044
    %v3107 = vpack.c.b16 %v3047, %v3045
    %v3108 = vpack.c.b16 %v3050, %v3048
    %v3109 = vpack.c.b16 %v3051, %v3049
    %v3110 = vpack.c.b16 %v3054, %v3052
    %v3111 = vpack.c.b16 %v3055, %v3053
    %v3112 = vpack.c.b16 %v3058, %v3056
    %v3113 = vpack.c.b16 %v3059, %v3057
    %v3114 = vpack.c.b16 %v3062, %v3060
    %v3115 = vpack.c.b16 %v3063, %v3061
    %v3116 = vpack.c.b16 %v3066, %v3064
    %v3117 = vpack.c.b16 %v3067, %v3065
    %v3118 = vpack.c.b16 %v3070, %v3068
    %v3119 = vpack.c.b16 %v3071, %v3069
    %3168 = vmatprep.subr.bf16.mxu0 %v3073
    %3169 = vmatpush1.bf16.msra.mxu0 %v3072
    %3170 = vmatprep.subr.bf16.mxu0 %v3075
    %3171 = vmatpush1.bf16.msra.mxu0 %v3074
    %3172 = vmatprep.subr.bf16.mxu0 %v3077
    %3173 = vmatpush1.bf16.msra.mxu0 %v3076
    %3174 = vmatprep.subr.bf16.mxu0 %v3079
    %3175 = vmatpush1.bf16.msra.mxu0 %v3078
    %3176 = vmatprep.subr.bf16.mxu0 %v3081
    %3177 = vmatpush1.bf16.msra.mxu0 %v3080
    %3178 = vmatprep.subr.bf16.mxu0 %v3083
    %3179 = vmatpush1.bf16.msra.mxu0 %v3082
    %3180 = vmatprep.subr.bf16.mxu0 %v3085
    %3181 = vmatpush1.bf16.msra.mxu0 %v3084
    %3182 = vmatprep.subr.bf16.mxu0 %v3087
    %3183 = vmatpush1.bf16.msra.mxu0 %v3086
    %3184 = vmatprep.subr.bf16.mxu0 %v3089
    %3185 = vmatpush1.bf16.msra.mxu0 %v3088
    %3186 = vmatprep.subr.bf16.mxu0 %v3091
    %3187 = vmatpush1.bf16.msra.mxu0 %v3090
    %3188 = vmatprep.subr.bf16.mxu0 %v3093
    %3189 = vmatpush1.bf16.msra.mxu0 %v3092
    %3190 = vmatprep.subr.bf16.mxu0 %v3095
    %3191 = vmatpush1.bf16.msra.mxu0 %v3094
    %3192 = vmatprep.subr.bf16.mxu0 %v3097
    %3193 = vmatpush1.bf16.msra.mxu0 %v3096
    %3194 = vmatprep.subr.bf16.mxu0 %v3099
    %3195 = vmatpush1.bf16.msra.mxu0 %v3098
    %3196 = vmatprep.subr.bf16.mxu0 %v3101
    %3197 = vmatpush1.bf16.msra.mxu0 %v3100
    %3198 = vmatprep.subr.bf16.mxu0 %v3103
    %3199 = vmatpush1.bf16.msra.mxu0 %v3102
    %3200 = vmatprep.mubr.bf16.mxu0 %v2160
    %3201 = vmatmul.mubr.bf16.gmra.mrb[0].mxu0 %v1776
    %v3202 = vpop.f32.mrb[0].mxu0
    %v3203 = vadd.f32 0.0, %v3202
    %v3204 = vpop.f32.mrb[0].mxu0
    %v3205 = vadd.f32 0.0, %v3204
    %v3206 = vpop.f32.mrb[0].mxu0
    %v3207 = vpop.f32.mrb[0].mxu0
    %3208 = vdwg.mxu0
    %3209 = vmatprep.subr.bf16.mxu0 %v3105
    %3210 = vmatpush1.bf16.msra.mxu0 %v3104
    %3211 = vmatprep.subr.bf16.mxu0 %v3107
    %3212 = vmatpush1.bf16.msra.mxu0 %v3106
    %3213 = vmatprep.subr.bf16.mxu0 %v3109
    %3214 = vmatpush1.bf16.msra.mxu0 %v3108
    %3215 = vmatprep.subr.bf16.mxu0 %v3111
    %3216 = vmatpush1.bf16.msra.mxu0 %v3110
    %3217 = vmatprep.subr.bf16.mxu0 %v3113
    %3218 = vmatpush1.bf16.msra.mxu0 %v3112
    %3219 = vmatprep.subr.bf16.mxu0 %v3115
    %3220 = vmatpush1.bf16.msra.mxu0 %v3114
    %3221 = vmatprep.subr.bf16.mxu0 %v3117
    %3222 = vmatpush1.bf16.msra.mxu0 %v3116
    %3223 = vmatprep.subr.bf16.mxu0 %v3119
    %3224 = vmatpush1.bf16.msra.mxu0 %v3118
    %3225 = vmatprep.subr.bf16.mxu0 0
    %3226 = vmatpush1.bf16.msra.mxu0 0
    %3227 = vmatprep.subr.bf16.mxu0 0
    %3228 = vmatpush1.bf16.msra.mxu0 0
    %3229 = vmatprep.subr.bf16.mxu0 0
    %3230 = vmatpush1.bf16.msra.mxu0 0
    %3231 = vmatprep.subr.bf16.mxu0 0
    %3232 = vmatpush1.bf16.msra.mxu0 0
    %3233 = vmatprep.subr.bf16.mxu0 0
    %3234 = vmatpush1.bf16.msra.mxu0 0
    %3235 = vmatprep.subr.bf16.mxu0 0
    %3236 = vmatpush1.bf16.msra.mxu0 0
    %3237 = vmatprep.subr.bf16.mxu0 0
    %3238 = vmatpush1.bf16.msra.mxu0 0
    %3239 = vmatprep.subr.bf16.mxu0 0
    %3240 = vmatpush1.bf16.msra.mxu0 0
    %3241 = vmatprep.mubr.bf16.mxu0 0
    %3242 = vmatmul.mubr.bf16.gmra.mrb[0].mxu0 %v2544
    %v3243 = vpop.f32.mrb[0].mxu0
    %v3244 = vadd.f32 %v3203, %v3243
    %v3245 = vpop.f32.mrb[0].mxu0
    %v3246 = vadd.f32 %v3205, %v3245
    %v3247 = vpop.f32.mrb[0].mxu0
    %v3248 = vpop.f32.mrb[0].mxu0
    %3249 = vdwg.mxu0
    %3251 = vrot.lane.b32.xlu0 %v3244, 64
    %v3252 = vpop.permute.xlu0 %3251
    %v3254 = vmax.f32 %v3244, %v3252
    %3256 = vrot.lane.b32.xlu0 %v3246, 64
    %v3257 = vpop.permute.xlu0 %3256
    %v3259 = vmax.f32 %v3246, %v3257
    %v3260 = vmax.f32 %v3254, %v3259
    %3262 = vrot.lane.b32.xlu0 %v937, 64
    %v3263 = vpop.permute.xlu0 %3262
    %3266 = vrot.lane.b32.xlu0 %v1719, 64
    %v3267 = vpop.permute.xlu0 %3266
    %3270 = vrot.lane.b32.xlu0 %v2494, 64
    %v3271 = vpop.permute.xlu0 %3270
    %3274 = vrot.lane.b32.xlu0 %v3260, 64
    %v3275 = vpop.permute.xlu0 %3274
    %vm3277 = vcmask 523264
    %v3278 = vsel %vm3277, %v555, %v3263
    %v3279 = vsel %vm3277, %v1321, %v3267
    %v3280 = vsel %vm3277, %v2110, %v3271
    %v3281 = vsel %vm3277, %v2878, %v3275
    %v3282 = vld [vmem:[#allocation7] sm:$0xf]
    %v3284 = vlaneseq
    %v3285 = vshrl.u32 %v3284, 7
    %v3286 = vsub.s32 0, %v3285
    %v3287 = vrot.slane %v3282, %v3286
    %v3288 = vlaneseq
    %v3289 = vshrl.u32 %v3288, 7
    %v3290 = vsub.s32 1, %v3289
    %v3291 = vrot.slane %v3282, %v3290
    %v3292 = vlaneseq
    %v3293 = vshrl.u32 %v3292, 7
    %v3294 = vsub.s32 2, %v3293
    %v3295 = vrot.slane %v3282, %v3294
    %v3296 = vlaneseq
    %v3297 = vshrl.u32 %v3296, 7
    %v3298 = vsub.s32 3, %v3297
    %v3299 = vrot.slane %v3282, %v3298
    %v3304 = vadd.f32 %v3278, %v3287
    %v3305 = vadd.f32 %v3279, %v3291
    %v3306 = vadd.f32 %v3280, %v3295
    %v3307 = vadd.f32 %v3281, %v3299
    %vm3308 = vcmp.gt.f32.partialorder %v3304, 0.0
    %vm3309 = vcmp.gt.f32.partialorder %v3305, 0.0
    %vm3310 = vcmp.gt.f32.partialorder %v3306, 0.0
    %vm3311 = vcmp.gt.f32.partialorder %v3307, 0.0
    %v3312 = vmin.f32 %v3304, 0.0
    %v3313 = vmin.f32 %v3305, 0.0
    %v3314 = vmin.f32 %v3306, 0.0
    %v3315 = vmin.f32 %v3307, 0.0
    %v3316 = vmul.f32 %v3312, 1.442695
    %v3317 = vpow.pop %v3316
    %v3318 = vmul.f32 %v3313, 1.442695
    %v3319 = vpow.pop %v3318
    %v3320 = vmul.f32 %v3314, 1.442695
    %v3321 = vpow.pop %v3320
    %v3322 = vmul.f32 %v3315, 1.442695
    %v3323 = vpow.pop %v3322
    %v3324 = vsub.f32 %v3317, 1.0
    %v3325 = vsub.f32 %v3319, 1.0
    %v3326 = vsub.f32 %v3321, 1.0
    %v3327 = vsub.f32 %v3323, 1.0
    %v3328 = vsel %vm3308, %v3304, %v3324
    %v3329 = vsel %vm3309, %v3305, %v3325
    %v3330 = vsel %vm3310, %v3306, %v3326
    %v3331 = vsel %vm3311, %v3307, %v3327
    %v3332 = vpack.c.bf16 %v3328, %v3328
    %v3333 = vpack.c.bf16 %v3329, %v3329
    %v3334 = vpack.c.bf16 %v3330, %v3330
    %v3335 = vpack.c.bf16 %v3331, %v3331
    %v3336 = vld [vmem:[#allocation8] sm:$0xff]
    %v3337 = vld [vmem:[#allocation8 + $0x8] sm:$0xff]
    %v3338 = vld [vmem:[#allocation8 + $0x10] sm:$0xff]
    %v3339 = vld [vmem:[#allocation8 + $0x18] sm:$0xff]
    %v3340 = vld [vmem:[#allocation8 + $0x20] sm:$0xff]
    %v3341 = vld [vmem:[#allocation8 + $0x28] sm:$0xff]
    %v3342 = vld [vmem:[#allocation8 + $0x30] sm:$0xff]
    %v3343 = vld [vmem:[#allocation8 + $0x38] sm:$0xff]
    %v3344 = vld [vmem:[#allocation8 + $0x40] sm:$0xff]
    %v3345 = vld [vmem:[#allocation8 + $0x48] sm:$0xff]
    %v3346 = vld [vmem:[#allocation8 + $0x50] sm:$0xff]
    %v3347 = vld [vmem:[#allocation8 + $0x58] sm:$0xff]
    %v3348 = vld [vmem:[#allocation8 + $0x60] sm:$0xff]
    %v3349 = vld [vmem:[#allocation8 + $0x68] sm:$0xff]
    %v3350 = vld [vmem:[#allocation8 + $0x70] sm:$0xff]
    %v3351 = vld [vmem:[#allocation8 + $0x78] sm:$0xff]
    %v3352 = vld [vmem:[#allocation8 + $0x80] sm:$0xff]
    %v3353 = vld [vmem:[#allocation8 + $0x88] sm:$0xff]
    %v3354 = vld [vmem:[#allocation8 + $0x90] sm:$0xff]
    %v3355 = vld [vmem:[#allocation8 + $0x98] sm:$0xff]
    %v3356 = vld [vmem:[#allocation8 + $0xa0] sm:$0xff]
    %v3357 = vld [vmem:[#allocation8 + $0xa8] sm:$0xff]
    %v3358 = vld [vmem:[#allocation8 + $0xb0] sm:$0xff]
    %v3359 = vld [vmem:[#allocation8 + $0xb8] sm:$0xff]
    %v3360 = vld [vmem:[#allocation8 + $0xc0] sm:$0xff]
    %v3361 = vld [vmem:[#allocation8 + $0xc8] sm:$0xff]
    %v3362 = vld [vmem:[#allocation8 + $0xd0] sm:$0xff]
    %v3363 = vld [vmem:[#allocation8 + $0xd8] sm:$0xff]
    %v3364 = vld [vmem:[#allocation8 + $0xe0] sm:$0xff]
    %v3365 = vld [vmem:[#allocation8 + $0xe8] sm:$0xff]
    %v3366 = vld [vmem:[#allocation8 + $0xf0] sm:$0xff]
    %v3367 = vld [vmem:[#allocation8 + $0xf8] sm:$0xff]
    %v3368 = vld [vmem:[#allocation8 + $0x100] sm:$0xff]
    %v3369 = vld [vmem:[#allocation8 + $0x108] sm:$0xff]
    %v3370 = vld [vmem:[#allocation8 + $0x110] sm:$0xff]
    %v3371 = vld [vmem:[#allocation8 + $0x118] sm:$0xff]
    %v3372 = vld [vmem:[#allocation8 + $0x120] sm:$0xff]
    %v3373 = vld [vmem:[#allocation8 + $0x128] sm:$0xff]
    %v3374 = vld [vmem:[#allocation8 + $0x130] sm:$0xff]
    %v3375 = vld [vmem:[#allocation8 + $0x138] sm:$0xff]
    %v3376 = vld [vmem:[#allocation8 + $0x140] sm:$0xff]
    %v3377 = vld [vmem:[#allocation8 + $0x148] sm:$0xff]
    %v3378 = vld [vmem:[#allocation8 + $0x150] sm:$0xff]
    %v3379 = vld [vmem:[#allocation8 + $0x158] sm:$0xff]
    %v3380 = vld [vmem:[#allocation8 + $0x160] sm:$0xff]
    %v3381 = vld [vmem:[#allocation8 + $0x168] sm:$0xff]
    %v3382 = vld [vmem:[#allocation8 + $0x170] sm:$0xff]
    %v3383 = vld [vmem:[#allocation8 + $0x178] sm:$0xff]
    %v3432 = vunpack.c.l.b16 %v3336
    %v3433 = vunpack.c.h.b16 %v3336
    %v3434 = vunpack.c.l.b16 %v3337
    %v3435 = vunpack.c.h.b16 %v3337
    %v3436 = vunpack.c.l.b16 %v3338
    %v3437 = vunpack.c.h.b16 %v3338
    %v3438 = vunpack.c.l.b16 %v3339
    %v3439 = vunpack.c.h.b16 %v3339
    %v3440 = vunpack.c.l.b16 %v3340
    %v3441 = vunpack.c.h.b16 %v3340
    %v3442 = vunpack.c.l.b16 %v3341
    %v3443 = vunpack.c.h.b16 %v3341
    %v3444 = vunpack.c.l.b16 %v3342
    %v3445 = vunpack.c.h.b16 %v3342
    %v3446 = vunpack.c.l.b16 %v3343
    %v3447 = vunpack.c.h.b16 %v3343
    %v3448 = vunpack.c.l.b16 %v3344
    %v3449 = vunpack.c.h.b16 %v3344
    %v3450 = vunpack.c.l.b16 %v3345
    %v3451 = vunpack.c.h.b16 %v3345
    %v3452 = vunpack.c.l.b16 %v3346
    %v3453 = vunpack.c.h.b16 %v3346
    %v3454 = vunpack.c.l.b16 %v3347
    %v3455 = vunpack.c.h.b16 %v3347
    %v3456 = vunpack.c.l.b16 %v3348
    %v3457 = vunpack.c.h.b16 %v3348
    %v3458 = vunpack.c.l.b16 %v3349
    %v3459 = vunpack.c.h.b16 %v3349
    %v3460 = vunpack.c.l.b16 %v3350
    %v3461 = vunpack.c.h.b16 %v3350
    %v3462 = vunpack.c.l.b16 %v3351
    %v3463 = vunpack.c.h.b16 %v3351
    %v3464 = vunpack.c.l.b16 %v3352
    %v3465 = vunpack.c.h.b16 %v3352
    %v3466 = vunpack.c.l.b16 %v3353
    %v3467 = vunpack.c.h.b16 %v3353
    %v3468 = vunpack.c.l.b16 %v3354
    %v3469 = vunpack.c.h.b16 %v3354
    %v3470 = vunpack.c.l.b16 %v3355
    %v3471 = vunpack.c.h.b16 %v3355
    %v3472 = vunpack.c.l.b16 %v3356
    %v3473 = vunpack.c.h.b16 %v3356
    %v3474 = vunpack.c.l.b16 %v3357
    %v3475 = vunpack.c.h.b16 %v3357
    %v3476 = vunpack.c.l.b16 %v3358
    %v3477 = vunpack.c.h.b16 %v3358
    %v3478 = vunpack.c.l.b16 %v3359
    %v3479 = vunpack.c.h.b16 %v3359
    %v3480 = vunpack.c.l.b16 %v3360
    %v3481 = vunpack.c.h.b16 %v3360
    %v3482 = vunpack.c.l.b16 %v3361
    %v3483 = vunpack.c.h.b16 %v3361
    %v3484 = vunpack.c.l.b16 %v3362
    %v3485 = vunpack.c.h.b16 %v3362
    %v3486 = vunpack.c.l.b16 %v3363
    %v3487 = vunpack.c.h.b16 %v3363
    %v3488 = vunpack.c.l.b16 %v3364
    %v3489 = vunpack.c.h.b16 %v3364
    %v3490 = vunpack.c.l.b16 %v3365
    %v3491 = vunpack.c.h.b16 %v3365
    %v3492 = vunpack.c.l.b16 %v3366
    %v3493 = vunpack.c.h.b16 %v3366
    %v3494 = vunpack.c.l.b16 %v3367
    %v3495 = vunpack.c.h.b16 %v3367
    %v3496 = vunpack.c.l.b16 %v3368
    %v3497 = vunpack.c.h.b16 %v3368
    %v3498 = vunpack.c.l.b16 %v3369
    %v3499 = vunpack.c.h.b16 %v3369
    %v3500 = vunpack.c.l.b16 %v3370
    %v3501 = vunpack.c.h.b16 %v3370
    %v3502 = vunpack.c.l.b16 %v3371
    %v3503 = vunpack.c.h.b16 %v3371
    %v3504 = vunpack.c.l.b16 %v3372
    %v3505 = vunpack.c.h.b16 %v3372
    %v3506 = vunpack.c.l.b16 %v3373
    %v3507 = vunpack.c.h.b16 %v3373
    %v3508 = vunpack.c.l.b16 %v3374
    %v3509 = vunpack.c.h.b16 %v3374
    %v3510 = vunpack.c.l.b16 %v3375
    %v3511 = vunpack.c.h.b16 %v3375
    %v3512 = vunpack.c.l.b16 %v3376
    %v3513 = vunpack.c.h.b16 %v3376
    %v3514 = vunpack.c.l.b16 %v3377
    %v3515 = vunpack.c.h.b16 %v3377
    %v3516 = vunpack.c.l.b16 %v3378
    %v3517 = vunpack.c.h.b16 %v3378
    %v3518 = vunpack.c.l.b16 %v3379
    %v3519 = vunpack.c.h.b16 %v3379
    %v3520 = vunpack.c.l.b16 %v3380
    %v3521 = vunpack.c.h.b16 %v3380
    %v3522 = vunpack.c.l.b16 %v3381
    %v3523 = vunpack.c.h.b16 %v3381
    %v3524 = vunpack.c.l.b16 %v3382
    %v3525 = vunpack.c.h.b16 %v3382
    %v3526 = vunpack.c.l.b16 %v3383
    %v3527 = vunpack.c.h.b16 %v3383
    %v3528 = vpack.c.b16 %v3434, %v3432
    %v3529 = vpack.c.b16 %v3435, %v3433
    %v3530 = vpack.c.b16 %v3438, %v3436
    %v3531 = vpack.c.b16 %v3439, %v3437
    %v3532 = vpack.c.b16 %v3442, %v3440
    %v3533 = vpack.c.b16 %v3443, %v3441
    %v3534 = vpack.c.b16 %v3446, %v3444
    %v3535 = vpack.c.b16 %v3447, %v3445
    %v3536 = vpack.c.b16 %v3450, %v3448
    %v3537 = vpack.c.b16 %v3451, %v3449
    %v3538 = vpack.c.b16 %v3454, %v3452
    %v3539 = vpack.c.b16 %v3455, %v3453
    %v3540 = vpack.c.b16 %v3458, %v3456
    %v3541 = vpack.c.b16 %v3459, %v3457
    %v3542 = vpack.c.b16 %v3462, %v3460
    %v3543 = vpack.c.b16 %v3463, %v3461
    %v3544 = vpack.c.b16 %v3466, %v3464
    %v3545 = vpack.c.b16 %v3467, %v3465
    %v3546 = vpack.c.b16 %v3470, %v3468
    %v3547 = vpack.c.b16 %v3471, %v3469
    %v3548 = vpack.c.b16 %v3474, %v3472
    %v3549 = vpack.c.b16 %v3475, %v3473
    %v3550 = vpack.c.b16 %v3478, %v3476
    %v3551 = vpack.c.b16 %v3479, %v3477
    %v3552 = vpack.c.b16 %v3482, %v3480
    %v3553 = vpack.c.b16 %v3483, %v3481
    %v3554 = vpack.c.b16 %v3486, %v3484
    %v3555 = vpack.c.b16 %v3487, %v3485
    %v3556 = vpack.c.b16 %v3490, %v3488
    %v3557 = vpack.c.b16 %v3491, %v3489
    %v3558 = vpack.c.b16 %v3494, %v3492
    %v3559 = vpack.c.b16 %v3495, %v3493
    %v3560 = vpack.c.b16 %v3498, %v3496
    %v3561 = vpack.c.b16 %v3499, %v3497
    %v3562 = vpack.c.b16 %v3502, %v3500
    %v3563 = vpack.c.b16 %v3503, %v3501
    %v3564 = vpack.c.b16 %v3506, %v3504
    %v3565 = vpack.c.b16 %v3507, %v3505
    %v3566 = vpack.c.b16 %v3510, %v3508
    %v3567 = vpack.c.b16 %v3511, %v3509
    %v3568 = vpack.c.b16 %v3514, %v3512
    %v3569 = vpack.c.b16 %v3515, %v3513
    %v3570 = vpack.c.b16 %v3518, %v3516
    %v3571 = vpack.c.b16 %v3519, %v3517
    %v3572 = vpack.c.b16 %v3522, %v3520
    %v3573 = vpack.c.b16 %v3523, %v3521
    %v3574 = vpack.c.b16 %v3526, %v3524
    %v3575 = vpack.c.b16 %v3527, %v3525
    %3624 = vmatprep.subr.bf16.mxu0 %v3529
    %3625 = vmatpush1.bf16.msra.mxu0 %v3528
    %3626 = vmatprep.subr.bf16.mxu0 %v3531
    %3627 = vmatpush1.bf16.msra.mxu0 %v3530
    %3628 = vmatprep.subr.bf16.mxu0 %v3533
    %3629 = vmatpush1.bf16.msra.mxu0 %v3532
    %3630 = vmatprep.subr.bf16.mxu0 %v3535
    %3631 = vmatpush1.bf16.msra.mxu0 %v3534
    %3632 = vmatprep.subr.bf16.mxu0 %v3537
    %3633 = vmatpush1.bf16.msra.mxu0 %v3536
    %3634 = vmatprep.subr.bf16.mxu0 %v3539
    %3635 = vmatpush1.bf16.msra.mxu0 %v3538
    %3636 = vmatprep.subr.bf16.mxu0 %v3541
    %3637 = vmatpush1.bf16.msra.mxu0 %v3540
    %3638 = vmatprep.subr.bf16.mxu0 %v3543
    %3639 = vmatpush1.bf16.msra.mxu0 %v3542
    %3640 = vmatprep.subr.bf16.mxu0 %v3545
    %3641 = vmatpush1.bf16.msra.mxu0 %v3544
    %3642 = vmatprep.subr.bf16.mxu0 %v3547
    %3643 = vmatpush1.bf16.msra.mxu0 %v3546
    %3644 = vmatprep.subr.bf16.mxu0 %v3549
    %3645 = vmatpush1.bf16.msra.mxu0 %v3548
    %3646 = vmatprep.subr.bf16.mxu0 %v3551
    %3647 = vmatpush1.bf16.msra.mxu0 %v3550
    %3648 = vmatprep.subr.bf16.mxu0 %v3553
    %3649 = vmatpush1.bf16.msra.mxu0 %v3552
    %3650 = vmatprep.subr.bf16.mxu0 %v3555
    %3651 = vmatpush1.bf16.msra.mxu0 %v3554
    %3652 = vmatprep.subr.bf16.mxu0 %v3557
    %3653 = vmatpush1.bf16.msra.mxu0 %v3556
    %3654 = vmatprep.subr.bf16.mxu0 %v3559
    %3655 = vmatpush1.bf16.msra.mxu0 %v3558
    %3656 = vmatprep.mubr.bf16.mxu0 %v3333
    %3657 = vmatmul.mubr.bf16.gmra.mrb[0].mxu0 %v3332
    %v3658 = vpop.f32.mrb[0].mxu0
    %v3659 = vadd.f32 0.0, %v3658
    %v3660 = vpop.f32.mrb[0].mxu0
    %v3661 = vadd.f32 0.0, %v3660
    %v3662 = vpop.f32.mrb[0].mxu0
    %v3663 = vpop.f32.mrb[0].mxu0
    %3664 = vdwg.mxu0
    %3665 = vmatprep.subr.bf16.mxu0 %v3561
    %3666 = vmatpush1.bf16.msra.mxu0 %v3560
    %3667 = vmatprep.subr.bf16.mxu0 %v3563
    %3668 = vmatpush1.bf16.msra.mxu0 %v3562
    %3669 = vmatprep.subr.bf16.mxu0 %v3565
    %3670 = vmatpush1.bf16.msra.mxu0 %v3564
    %3671 = vmatprep.subr.bf16.mxu0 %v3567
    %3672 = vmatpush1.bf16.msra.mxu0 %v3566
    %3673 = vmatprep.subr.bf16.mxu0 %v3569
    %3674 = vmatpush1.bf16.msra.mxu0 %v3568
    %3675 = vmatprep.subr.bf16.mxu0 %v3571
    %3676 = vmatpush1.bf16.msra.mxu0 %v3570
    %3677 = vmatprep.subr.bf16.mxu0 %v3573
    %3678 = vmatpush1.bf16.msra.mxu0 %v3572
    %3679 = vmatprep.subr.bf16.mxu0 %v3575
    %3680 = vmatpush1.bf16.msra.mxu0 %v3574
    %3681 = vmatprep.subr.bf16.mxu0 0
    %3682 = vmatpush1.bf16.msra.mxu0 0
    %3683 = vmatprep.subr.bf16.mxu0 0
    %3684 = vmatpush1.bf16.msra.mxu0 0
    %3685 = vmatprep.subr.bf16.mxu0 0
    %3686 = vmatpush1.bf16.msra.mxu0 0
    %3687 = vmatprep.subr.bf16.mxu0 0
    %3688 = vmatpush1.bf16.msra.mxu0 0
    %3689 = vmatprep.subr.bf16.mxu0 0
    %3690 = vmatpush1.bf16.msra.mxu0 0
    %3691 = vmatprep.subr.bf16.mxu0 0
    %3692 = vmatpush1.bf16.msra.mxu0 0
    %3693 = vmatprep.subr.bf16.mxu0 0
    %3694 = vmatpush1.bf16.msra.mxu0 0
    %3695 = vmatprep.subr.bf16.mxu0 0
    %3696 = vmatpush1.bf16.msra.mxu0 0
    %3697 = vmatprep.mubr.bf16.mxu0 0
    %3698 = vmatmul.mubr.bf16.gmra.mrb[0].mxu0 %v3334
    %v3699 = vpop.f32.mrb[0].mxu0
    %v3700 = vadd.f32 %v3659, %v3699
    %v3701 = vpop.f32.mrb[0].mxu0
    %v3702 = vadd.f32 %v3661, %v3701
    %v3703 = vpop.f32.mrb[0].mxu0
    %v3704 = vpop.f32.mrb[0].mxu0
    %3705 = vdwg.mxu0
    %3707 = vrot.lane.b32.xlu0 %v3700, 64
    %v3708 = vpop.permute.xlu0 %3707
    %v3710 = vmax.f32 %v3700, %v3708
    %3712 = vrot.lane.b32.xlu0 %v3702, 64
    %v3713 = vpop.permute.xlu0 %3712
    %v3715 = vmax.f32 %v3702, %v3713
    %v3716 = vmax.f32 %v3710, %v3715
    %s3717 = scalar_lea.vmem [#allocation8], 384
    %v3718 = vld [vmem:[%s3717] sm:$0xff]
    %v3719 = vld [vmem:[%s3717 + $0x8] sm:$0xff]
    %v3720 = vld [vmem:[%s3717 + $0x10] sm:$0xff]
    %v3721 = vld [vmem:[%s3717 + $0x18] sm:$0xff]
    %v3722 = vld [vmem:[%s3717 + $0x20] sm:$0xff]
    %v3723 = vld [vmem:[%s3717 + $0x28] sm:$0xff]
    %v3724 = vld [vmem:[%s3717 + $0x30] sm:$0xff]
    %v3725 = vld [vmem:[%s3717 + $0x38] sm:$0xff]
    %v3726 = vld [vmem:[%s3717 + $0x40] sm:$0xff]
    %v3727 = vld [vmem:[%s3717 + $0x48] sm:$0xff]
    %v3728 = vld [vmem:[%s3717 + $0x50] sm:$0xff]
    %v3729 = vld [vmem:[%s3717 + $0x58] sm:$0xff]
    %v3730 = vld [vmem:[%s3717 + $0x60] sm:$0xff]
    %v3731 = vld [vmem:[%s3717 + $0x68] sm:$0xff]
    %v3732 = vld [vmem:[%s3717 + $0x70] sm:$0xff]
    %v3733 = vld [vmem:[%s3717 + $0x78] sm:$0xff]
    %v3734 = vld [vmem:[%s3717 + $0x80] sm:$0xff]
    %v3735 = vld [vmem:[%s3717 + $0x88] sm:$0xff]
    %v3736 = vld [vmem:[%s3717 + $0x90] sm:$0xff]
    %v3737 = vld [vmem:[%s3717 + $0x98] sm:$0xff]
    %v3738 = vld [vmem:[%s3717 + $0xa0] sm:$0xff]
    %v3739 = vld [vmem:[%s3717 + $0xa8] sm:$0xff]
    %v3740 = vld [vmem:[%s3717 + $0xb0] sm:$0xff]
    %v3741 = vld [vmem:[%s3717 + $0xb8] sm:$0xff]
    %v3742 = vld [vmem:[%s3717 + $0xc0] sm:$0xff]
    %v3743 = vld [vmem:[%s3717 + $0xc8] sm:$0xff]
    %v3744 = vld [vmem:[%s3717 + $0xd0] sm:$0xff]
    %v3745 = vld [vmem:[%s3717 + $0xd8] sm:$0xff]
    %v3746 = vld [vmem:[%s3717 + $0xe0] sm:$0xff]
    %v3747 = vld [vmem:[%s3717 + $0xe8] sm:$0xff]
    %v3748 = vld [vmem:[%s3717 + $0xf0] sm:$0xff]
    %v3749 = vld [vmem:[%s3717 + $0xf8] sm:$0xff]
    %v3750 = vld [vmem:[%s3717 + $0x100] sm:$0xff]
    %v3751 = vld [vmem:[%s3717 + $0x108] sm:$0xff]
    %v3752 = vld [vmem:[%s3717 + $0x110] sm:$0xff]
    %v3753 = vld [vmem:[%s3717 + $0x118] sm:$0xff]
    %v3754 = vld [vmem:[%s3717 + $0x120] sm:$0xff]
    %v3755 = vld [vmem:[%s3717 + $0x128] sm:$0xff]
    %v3756 = vld [vmem:[%s3717 + $0x130] sm:$0xff]
    %v3757 = vld [vmem:[%s3717 + $0x138] sm:$0xff]
    %v3758 = vld [vmem:[%s3717 + $0x140] sm:$0xff]
    %v3759 = vld [vmem:[%s3717 + $0x148] sm:$0xff]
    %v3760 = vld [vmem:[%s3717 + $0x150] sm:$0xff]
    %v3761 = vld [vmem:[%s3717 + $0x158] sm:$0xff]
    %v3762 = vld [vmem:[%s3717 + $0x160] sm:$0xff]
    %v3763 = vld [vmem:[%s3717 + $0x168] sm:$0xff]
    %v3764 = vld [vmem:[%s3717 + $0x170] sm:$0xff]
    %v3765 = vld [vmem:[%s3717 + $0x178] sm:$0xff]
    %v3814 = vunpack.c.l.b16 %v3718
    %v3815 = vunpack.c.h.b16 %v3718
    %v3816 = vunpack.c.l.b16 %v3719
    %v3817 = vunpack.c.h.b16 %v3719
    %v3818 = vunpack.c.l.b16 %v3720
    %v3819 = vunpack.c.h.b16 %v3720
    %v3820 = vunpack.c.l.b16 %v3721
    %v3821 = vunpack.c.h.b16 %v3721
    %v3822 = vunpack.c.l.b16 %v3722
    %v3823 = vunpack.c.h.b16 %v3722
    %v3824 = vunpack.c.l.b16 %v3723
    %v3825 = vunpack.c.h.b16 %v3723
    %v3826 = vunpack.c.l.b16 %v3724
    %v3827 = vunpack.c.h.b16 %v3724
    %v3828 = vunpack.c.l.b16 %v3725
    %v3829 = vunpack.c.h.b16 %v3725
    %v3830 = vunpack.c.l.b16 %v3726
    %v3831 = vunpack.c.h.b16 %v3726
    %v3832 = vunpack.c.l.b16 %v3727
    %v3833 = vunpack.c.h.b16 %v3727
    %v3834 = vunpack.c.l.b16 %v3728
    %v3835 = vunpack.c.h.b16 %v3728
    %v3836 = vunpack.c.l.b16 %v3729
    %v3837 = vunpack.c.h.b16 %v3729
    %v3838 = vunpack.c.l.b16 %v3730
    %v3839 = vunpack.c.h.b16 %v3730
    %v3840 = vunpack.c.l.b16 %v3731
    %v3841 = vunpack.c.h.b16 %v3731
    %v3842 = vunpack.c.l.b16 %v3732
    %v3843 = vunpack.c.h.b16 %v3732
    %v3844 = vunpack.c.l.b16 %v3733
    %v3845 = vunpack.c.h.b16 %v3733
    %v3846 = vunpack.c.l.b16 %v3734
    %v3847 = vunpack.c.h.b16 %v3734
    %v3848 = vunpack.c.l.b16 %v3735
    %v3849 = vunpack.c.h.b16 %v3735
    %v3850 = vunpack.c.l.b16 %v3736
    %v3851 = vunpack.c.h.b16 %v3736
    %v3852 = vunpack.c.l.b16 %v3737
    %v3853 = vunpack.c.h.b16 %v3737
    %v3854 = vunpack.c.l.b16 %v3738
    %v3855 = vunpack.c.h.b16 %v3738
    %v3856 = vunpack.c.l.b16 %v3739
    %v3857 = vunpack.c.h.b16 %v3739
    %v3858 = vunpack.c.l.b16 %v3740
    %v3859 = vunpack.c.h.b16 %v3740
    %v3860 = vunpack.c.l.b16 %v3741
    %v3861 = vunpack.c.h.b16 %v3741
    %v3862 = vunpack.c.l.b16 %v3742
    %v3863 = vunpack.c.h.b16 %v3742
    %v3864 = vunpack.c.l.b16 %v3743
    %v3865 = vunpack.c.h.b16 %v3743
    %v3866 = vunpack.c.l.b16 %v3744
    %v3867 = vunpack.c.h.b16 %v3744
    %v3868 = vunpack.c.l.b16 %v3745
    %v3869 = vunpack.c.h.b16 %v3745
    %v3870 = vunpack.c.l.b16 %v3746
    %v3871 = vunpack.c.h.b16 %v3746
    %v3872 = vunpack.c.l.b16 %v3747
    %v3873 = vunpack.c.h.b16 %v3747
    %v3874 = vunpack.c.l.b16 %v3748
    %v3875 = vunpack.c.h.b16 %v3748
    %v3876 = vunpack.c.l.b16 %v3749
    %v3877 = vunpack.c.h.b16 %v3749
    %v3878 = vunpack.c.l.b16 %v3750
    %v3879 = vunpack.c.h.b16 %v3750
    %v3880 = vunpack.c.l.b16 %v3751
    %v3881 = vunpack.c.h.b16 %v3751
    %v3882 = vunpack.c.l.b16 %v3752
    %v3883 = vunpack.c.h.b16 %v3752
    %v3884 = vunpack.c.l.b16 %v3753
    %v3885 = vunpack.c.h.b16 %v3753
    %v3886 = vunpack.c.l.b16 %v3754
    %v3887 = vunpack.c.h.b16 %v3754
    %v3888 = vunpack.c.l.b16 %v3755
    %v3889 = vunpack.c.h.b16 %v3755
    %v3890 = vunpack.c.l.b16 %v3756
    %v3891 = vunpack.c.h.b16 %v3756
    %v3892 = vunpack.c.l.b16 %v3757
    %v3893 = vunpack.c.h.b16 %v3757
    %v3894 = vunpack.c.l.b16 %v3758
    %v3895 = vunpack.c.h.b16 %v3758
    %v3896 = vunpack.c.l.b16 %v3759
    %v3897 = vunpack.c.h.b16 %v3759
    %v3898 = vunpack.c.l.b16 %v3760
    %v3899 = vunpack.c.h.b16 %v3760
    %v3900 = vunpack.c.l.b16 %v3761
    %v3901 = vunpack.c.h.b16 %v3761
    %v3902 = vunpack.c.l.b16 %v3762
    %v3903 = vunpack.c.h.b16 %v3762
    %v3904 = vunpack.c.l.b16 %v3763
    %v3905 = vunpack.c.h.b16 %v3763
    %v3906 = vunpack.c.l.b16 %v3764
    %v3907 = vunpack.c.h.b16 %v3764
    %v3908 = vunpack.c.l.b16 %v3765
    %v3909 = vunpack.c.h.b16 %v3765
    %v3910 = vpack.c.b16 %v3816, %v3814
    %v3911 = vpack.c.b16 %v3817, %v3815
    %v3912 = vpack.c.b16 %v3820, %v3818
    %v3913 = vpack.c.b16 %v3821, %v3819
    %v3914 = vpack.c.b16 %v3824, %v3822
    %v3915 = vpack.c.b16 %v3825, %v3823
    %v3916 = vpack.c.b16 %v3828, %v3826
    %v3917 = vpack.c.b16 %v3829, %v3827
    %v3918 = vpack.c.b16 %v3832, %v3830
    %v3919 = vpack.c.b16 %v3833, %v3831
    %v3920 = vpack.c.b16 %v3836, %v3834
    %v3921 = vpack.c.b16 %v3837, %v3835
    %v3922 = vpack.c.b16 %v3840, %v3838
    %v3923 = vpack.c.b16 %v3841, %v3839
    %v3924 = vpack.c.b16 %v3844, %v3842
    %v3925 = vpack.c.b16 %v3845, %v3843
    %v3926 = vpack.c.b16 %v3848, %v3846
    %v3927 = vpack.c.b16 %v3849, %v3847
    %v3928 = vpack.c.b16 %v3852, %v3850
    %v3929 = vpack.c.b16 %v3853, %v3851
    %v3930 = vpack.c.b16 %v3856, %v3854
    %v3931 = vpack.c.b16 %v3857, %v3855
    %v3932 = vpack.c.b16 %v3860, %v3858
    %v3933 = vpack.c.b16 %v3861, %v3859
    %v3934 = vpack.c.b16 %v3864, %v3862
    %v3935 = vpack.c.b16 %v3865, %v3863
    %v3936 = vpack.c.b16 %v3868, %v3866
    %v3937 = vpack.c.b16 %v3869, %v3867
    %v3938 = vpack.c.b16 %v3872, %v3870
    %v3939 = vpack.c.b16 %v3873, %v3871
    %v3940 = vpack.c.b16 %v3876, %v3874
    %v3941 = vpack.c.b16 %v3877, %v3875
    %v3942 = vpack.c.b16 %v3880, %v3878
    %v3943 = vpack.c.b16 %v3881, %v3879
    %v3944 = vpack.c.b16 %v3884, %v3882
    %v3945 = vpack.c.b16 %v3885, %v3883
    %v3946 = vpack.c.b16 %v3888, %v3886
    %v3947 = vpack.c.b16 %v3889, %v3887
    %v3948 = vpack.c.b16 %v3892, %v3890
    %v3949 = vpack.c.b16 %v3893, %v3891
    %v3950 = vpack.c.b16 %v3896, %v3894
    %v3951 = vpack.c.b16 %v3897, %v3895
    %v3952 = vpack.c.b16 %v3900, %v3898
    %v3953 = vpack.c.b16 %v3901, %v3899
    %v3954 = vpack.c.b16 %v3904, %v3902
    %v3955 = vpack.c.b16 %v3905, %v3903
    %v3956 = vpack.c.b16 %v3908, %v3906
    %v3957 = vpack.c.b16 %v3909, %v3907
    %4006 = vmatprep.subr.bf16.mxu0 %v3911
    %4007 = vmatpush1.bf16.msra.mxu0 %v3910
    %4008 = vmatprep.subr.bf16.mxu0 %v3913
    %4009 = vmatpush1.bf16.msra.mxu0 %v3912
    %4010 = vmatprep.subr.bf16.mxu0 %v3915
    %4011 = vmatpush1.bf16.msra.mxu0 %v3914
    %4012 = vmatprep.subr.bf16.mxu0 %v3917
    %4013 = vmatpush1.bf16.msra.mxu0 %v3916
    %4014 = vmatprep.subr.bf16.mxu0 %v3919
    %4015 = vmatpush1.bf16.msra.mxu0 %v3918
    %4016 = vmatprep.subr.bf16.mxu0 %v3921
    %4017 = vmatpush1.bf16.msra.mxu0 %v3920
    %4018 = vmatprep.subr.bf16.mxu0 %v3923
    %4019 = vmatpush1.bf16.msra.mxu0 %v3922
    %4020 = vmatprep.subr.bf16.mxu0 %v3925
    %4021 = vmatpush1.bf16.msra.mxu0 %v3924
    %4022 = vmatprep.subr.bf16.mxu0 %v3927
    %4023 = vmatpush1.bf16.msra.mxu0 %v3926
    %4024 = vmatprep.subr.bf16.mxu0 %v3929
    %4025 = vmatpush1.bf16.msra.mxu0 %v3928
    %4026 = vmatprep.subr.bf16.mxu0 %v3931
    %4027 = vmatpush1.bf16.msra.mxu0 %v3930
    %4028 = vmatprep.subr.bf16.mxu0 %v3933
    %4029 = vmatpush1.bf16.msra.mxu0 %v3932
    %4030 = vmatprep.subr.bf16.mxu0 %v3935
    %4031 = vmatpush1.bf16.msra.mxu0 %v3934
    %4032 = vmatprep.subr.bf16.mxu0 %v3937
    %4033 = vmatpush1.bf16.msra.mxu0 %v3936
    %4034 = vmatprep.subr.bf16.mxu0 %v3939
    %4035 = vmatpush1.bf16.msra.mxu0 %v3938
    %4036 = vmatprep.subr.bf16.mxu0 %v3941
    %4037 = vmatpush1.bf16.msra.mxu0 %v3940
    %4038 = vmatprep.mubr.bf16.mxu0 %v3333
    %4039 = vmatmul.mubr.bf16.gmra.mrb[0].mxu0 %v3332
    %v4040 = vpop.f32.mrb[0].mxu0
    %v4041 = vadd.f32 0.0, %v4040
    %v4042 = vpop.f32.mrb[0].mxu0
    %v4043 = vadd.f32 0.0, %v4042
    %v4044 = vpop.f32.mrb[0].mxu0
    %v4045 = vpop.f32.mrb[0].mxu0
    %4046 = vdwg.mxu0
    %4047 = vmatprep.subr.bf16.mxu0 %v3943
    %4048 = vmatpush1.bf16.msra.mxu0 %v3942
    %4049 = vmatprep.subr.bf16.mxu0 %v3945
    %4050 = vmatpush1.bf16.msra.mxu0 %v3944
    %4051 = vmatprep.subr.bf16.mxu0 %v3947
    %4052 = vmatpush1.bf16.msra.mxu0 %v3946
    %4053 = vmatprep.subr.bf16.mxu0 %v3949
    %4054 = vmatpush1.bf16.msra.mxu0 %v3948
    %4055 = vmatprep.subr.bf16.mxu0 %v3951
    %4056 = vmatpush1.bf16.msra.mxu0 %v3950
    %4057 = vmatprep.subr.bf16.mxu0 %v3953
    %4058 = vmatpush1.bf16.msra.mxu0 %v3952
    %4059 = vmatprep.subr.bf16.mxu0 %v3955
    %4060 = vmatpush1.bf16.msra.mxu0 %v3954
    %4061 = vmatprep.subr.bf16.mxu0 %v3957
    %4062 = vmatpush1.bf16.msra.mxu0 %v3956
    %4063 = vmatprep.subr.bf16.mxu0 0
    %4064 = vmatpush1.bf16.msra.mxu0 0
    %4065 = vmatprep.subr.bf16.mxu0 0
    %4066 = vmatpush1.bf16.msra.mxu0 0
    %4067 = vmatprep.subr.bf16.mxu0 0
    %4068 = vmatpush1.bf16.msra.mxu0 0
    %4069 = vmatprep.subr.bf16.mxu0 0
    %4070 = vmatpush1.bf16.msra.mxu0 0
    %4071 = vmatprep.subr.bf16.mxu0 0
    %4072 = vmatpush1.bf16.msra.mxu0 0
    %4073 = vmatprep.subr.bf16.mxu0 0
    %4074 = vmatpush1.bf16.msra.mxu0 0
    %4075 = vmatprep.subr.bf16.mxu0 0
    %4076 = vmatpush1.bf16.msra.mxu0 0
    %4077 = vmatprep.subr.bf16.mxu0 0
    %4078 = vmatpush1.bf16.msra.mxu0 0
    %4079 = vmatprep.mubr.bf16.mxu0 0
    %4080 = vmatmul.mubr.bf16.gmra.mrb[0].mxu0 %v3334
    %v4081 = vpop.f32.mrb[0].mxu0
    %v4082 = vadd.f32 %v4041, %v4081
    %v4083 = vpop.f32.mrb[0].mxu0
    %v4084 = vadd.f32 %v4043, %v4083
    %v4085 = vpop.f32.mrb[0].mxu0
    %v4086 = vpop.f32.mrb[0].mxu0
    %4087 = vdwg.mxu0
    %4089 = vrot.lane.b32.xlu0 %v4082, 64
    %v4090 = vpop.permute.xlu0 %4089
    %v4092 = vmax.f32 %v4082, %v4090
    %4094 = vrot.lane.b32.xlu0 %v4084, 64
    %v4095 = vpop.permute.xlu0 %4094
    %v4097 = vmax.f32 %v4084, %v4095
    %v4098 = vmax.f32 %v4092, %v4097
    %s4099 = scalar_lea.vmem [#allocation8], 768
    %v4100 = vld [vmem:[%s4099] sm:$0xff]
    %v4101 = vld [vmem:[%s4099 + $0x8] sm:$0xff]
    %v4102 = vld [vmem:[%s4099 + $0x10] sm:$0xff]
    %v4103 = vld [vmem:[%s4099 + $0x18] sm:$0xff]
    %v4104 = vld [vmem:[%s4099 + $0x20] sm:$0xff]
    %v4105 = vld [vmem:[%s4099 + $0x28] sm:$0xff]
    %v4106 = vld [vmem:[%s4099 + $0x30] sm:$0xff]
    %v4107 = vld [vmem:[%s4099 + $0x38] sm:$0xff]
    %v4108 = vld [vmem:[%s4099 + $0x40] sm:$0xff]
    %v4109 = vld [vmem:[%s4099 + $0x48] sm:$0xff]
    %v4110 = vld [vmem:[%s4099 + $0x50] sm:$0xff]
    %v4111 = vld [vmem:[%s4099 + $0x58] sm:$0xff]
    %v4112 = vld [vmem:[%s4099 + $0x60] sm:$0xff]
    %v4113 = vld [vmem:[%s4099 + $0x68] sm:$0xff]
    %v4114 = vld [vmem:[%s4099 + $0x70] sm:$0xff]
    %v4115 = vld [vmem:[%s4099 + $0x78] sm:$0xff]
    %v4116 = vld [vmem:[%s4099 + $0x80] sm:$0xff]
    %v4117 = vld [vmem:[%s4099 + $0x88] sm:$0xff]
    %v4118 = vld [vmem:[%s4099 + $0x90] sm:$0xff]
    %v4119 = vld [vmem:[%s4099 + $0x98] sm:$0xff]
    %v4120 = vld [vmem:[%s4099 + $0xa0] sm:$0xff]
    %v4121 = vld [vmem:[%s4099 + $0xa8] sm:$0xff]
    %v4122 = vld [vmem:[%s4099 + $0xb0] sm:$0xff]
    %v4123 = vld [vmem:[%s4099 + $0xb8] sm:$0xff]
    %v4124 = vld [vmem:[%s4099 + $0xc0] sm:$0xff]
    %v4125 = vld [vmem:[%s4099 + $0xc8] sm:$0xff]
    %v4126 = vld [vmem:[%s4099 + $0xd0] sm:$0xff]
    %v4127 = vld [vmem:[%s4099 + $0xd8] sm:$0xff]
    %v4128 = vld [vmem:[%s4099 + $0xe0] sm:$0xff]
    %v4129 = vld [vmem:[%s4099 + $0xe8] sm:$0xff]
    %v4130 = vld [vmem:[%s4099 + $0xf0] sm:$0xff]
    %v4131 = vld [vmem:[%s4099 + $0xf8] sm:$0xff]
    %v4132 = vld [vmem:[%s4099 + $0x100] sm:$0xff]
    %v4133 = vld [vmem:[%s4099 + $0x108] sm:$0xff]
    %v4134 = vld [vmem:[%s4099 + $0x110] sm:$0xff]
    %v4135 = vld [vmem:[%s4099 + $0x118] sm:$0xff]
    %v4136 = vld [vmem:[%s4099 + $0x120] sm:$0xff]
    %v4137 = vld [vmem:[%s4099 + $0x128] sm:$0xff]
    %v4138 = vld [vmem:[%s4099 + $0x130] sm:$0xff]
    %v4139 = vld [vmem:[%s4099 + $0x138] sm:$0xff]
    %v4140 = vld [vmem:[%s4099 + $0x140] sm:$0xff]
    %v4141 = vld [vmem:[%s4099 + $0x148] sm:$0xff]
    %v4142 = vld [vmem:[%s4099 + $0x150] sm:$0xff]
    %v4143 = vld [vmem:[%s4099 + $0x158] sm:$0xff]
    %v4144 = vld [vmem:[%s4099 + $0x160] sm:$0xff]
    %v4145 = vld [vmem:[%s4099 + $0x168] sm:$0xff]
    %v4146 = vld [vmem:[%s4099 + $0x170] sm:$0xff]
    %v4147 = vld [vmem:[%s4099 + $0x178] sm:$0xff]
    %v4196 = vunpack.c.l.b16 %v4100
    %v4197 = vunpack.c.h.b16 %v4100
    %v4198 = vunpack.c.l.b16 %v4101
    %v4199 = vunpack.c.h.b16 %v4101
    %v4200 = vunpack.c.l.b16 %v4102
    %v4201 = vunpack.c.h.b16 %v4102
    %v4202 = vunpack.c.l.b16 %v4103
    %v4203 = vunpack.c.h.b16 %v4103
    %v4204 = vunpack.c.l.b16 %v4104
    %v4205 = vunpack.c.h.b16 %v4104
    %v4206 = vunpack.c.l.b16 %v4105
    %v4207 = vunpack.c.h.b16 %v4105
    %v4208 = vunpack.c.l.b16 %v4106
    %v4209 = vunpack.c.h.b16 %v4106
    %v4210 = vunpack.c.l.b16 %v4107
    %v4211 = vunpack.c.h.b16 %v4107
    %v4212 = vunpack.c.l.b16 %v4108
    %v4213 = vunpack.c.h.b16 %v4108
    %v4214 = vunpack.c.l.b16 %v4109
    %v4215 = vunpack.c.h.b16 %v4109
    %v4216 = vunpack.c.l.b16 %v4110
    %v4217 = vunpack.c.h.b16 %v4110
    %v4218 = vunpack.c.l.b16 %v4111
    %v4219 = vunpack.c.h.b16 %v4111
    %v4220 = vunpack.c.l.b16 %v4112
    %v4221 = vunpack.c.h.b16 %v4112
    %v4222 = vunpack.c.l.b16 %v4113
    %v4223 = vunpack.c.h.b16 %v4113
    %v4224 = vunpack.c.l.b16 %v4114
    %v4225 = vunpack.c.h.b16 %v4114
    %v4226 = vunpack.c.l.b16 %v4115
    %v4227 = vunpack.c.h.b16 %v4115
    %v4228 = vunpack.c.l.b16 %v4116
    %v4229 = vunpack.c.h.b16 %v4116
    %v4230 = vunpack.c.l.b16 %v4117
    %v4231 = vunpack.c.h.b16 %v4117
    %v4232 = vunpack.c.l.b16 %v4118
    %v4233 = vunpack.c.h.b16 %v4118
    %v4234 = vunpack.c.l.b16 %v4119
    %v4235 = vunpack.c.h.b16 %v4119
    %v4236 = vunpack.c.l.b16 %v4120
    %v4237 = vunpack.c.h.b16 %v4120
    %v4238 = vunpack.c.l.b16 %v4121
    %v4239 = vunpack.c.h.b16 %v4121
    %v4240 = vunpack.c.l.b16 %v4122
    %v4241 = vunpack.c.h.b16 %v4122
    %v4242 = vunpack.c.l.b16 %v4123
    %v4243 = vunpack.c.h.b16 %v4123
    %v4244 = vunpack.c.l.b16 %v4124
    %v4245 = vunpack.c.h.b16 %v4124
    %v4246 = vunpack.c.l.b16 %v4125
    %v4247 = vunpack.c.h.b16 %v4125
    %v4248 = vunpack.c.l.b16 %v4126
    %v4249 = vunpack.c.h.b16 %v4126
    %v4250 = vunpack.c.l.b16 %v4127
    %v4251 = vunpack.c.h.b16 %v4127
    %v4252 = vunpack.c.l.b16 %v4128
    %v4253 = vunpack.c.h.b16 %v4128
    %v4254 = vunpack.c.l.b16 %v4129
    %v4255 = vunpack.c.h.b16 %v4129
    %v4256 = vunpack.c.l.b16 %v4130
    %v4257 = vunpack.c.h.b16 %v4130
    %v4258 = vunpack.c.l.b16 %v4131
    %v4259 = vunpack.c.h.b16 %v4131
    %v4260 = vunpack.c.l.b16 %v4132
    %v4261 = vunpack.c.h.b16 %v4132
    %v4262 = vunpack.c.l.b16 %v4133
    %v4263 = vunpack.c.h.b16 %v4133
    %v4264 = vunpack.c.l.b16 %v4134
    %v4265 = vunpack.c.h.b16 %v4134
    %v4266 = vunpack.c.l.b16 %v4135
    %v4267 = vunpack.c.h.b16 %v4135
    %v4268 = vunpack.c.l.b16 %v4136
    %v4269 = vunpack.c.h.b16 %v4136
    %v4270 = vunpack.c.l.b16 %v4137
    %v4271 = vunpack.c.h.b16 %v4137
    %v4272 = vunpack.c.l.b16 %v4138
    %v4273 = vunpack.c.h.b16 %v4138
    %v4274 = vunpack.c.l.b16 %v4139
    %v4275 = vunpack.c.h.b16 %v4139
    %v4276 = vunpack.c.l.b16 %v4140
    %v4277 = vunpack.c.h.b16 %v4140
    %v4278 = vunpack.c.l.b16 %v4141
    %v4279 = vunpack.c.h.b16 %v4141
    %v4280 = vunpack.c.l.b16 %v4142
    %v4281 = vunpack.c.h.b16 %v4142
    %v4282 = vunpack.c.l.b16 %v4143
    %v4283 = vunpack.c.h.b16 %v4143
    %v4284 = vunpack.c.l.b16 %v4144
    %v4285 = vunpack.c.h.b16 %v4144
    %v4286 = vunpack.c.l.b16 %v4145
    %v4287 = vunpack.c.h.b16 %v4145
    %v4288 = vunpack.c.l.b16 %v4146
    %v4289 = vunpack.c.h.b16 %v4146
    %v4290 = vunpack.c.l.b16 %v4147
    %v4291 = vunpack.c.h.b16 %v4147
    %v4292 = vpack.c.b16 %v4198, %v4196
    %v4293 = vpack.c.b16 %v4199, %v4197
    %v4294 = vpack.c.b16 %v4202, %v4200
    %v4295 = vpack.c.b16 %v4203, %v4201
    %v4296 = vpack.c.b16 %v4206, %v4204
    %v4297 = vpack.c.b16 %v4207, %v4205
    %v4298 = vpack.c.b16 %v4210, %v4208
    %v4299 = vpack.c.b16 %v4211, %v4209
    %v4300 = vpack.c.b16 %v4214, %v4212
    %v4301 = vpack.c.b16 %v4215, %v4213
    %v4302 = vpack.c.b16 %v4218, %v4216
    %v4303 = vpack.c.b16 %v4219, %v4217
    %v4304 = vpack.c.b16 %v4222, %v4220
    %v4305 = vpack.c.b16 %v4223, %v4221
    %v4306 = vpack.c.b16 %v4226, %v4224
    %v4307 = vpack.c.b16 %v4227, %v4225
    %v4308 = vpack.c.b16 %v4230, %v4228
    %v4309 = vpack.c.b16 %v4231, %v4229
    %v4310 = vpack.c.b16 %v4234, %v4232
    %v4311 = vpack.c.b16 %v4235, %v4233
    %v4312 = vpack.c.b16 %v4238, %v4236
    %v4313 = vpack.c.b16 %v4239, %v4237
    %v4314 = vpack.c.b16 %v4242, %v4240
    %v4315 = vpack.c.b16 %v4243, %v4241
    %v4316 = vpack.c.b16 %v4246, %v4244
    %v4317 = vpack.c.b16 %v4247, %v4245
    %v4318 = vpack.c.b16 %v4250, %v4248
    %v4319 = vpack.c.b16 %v4251, %v4249
    %v4320 = vpack.c.b16 %v4254, %v4252
    %v4321 = vpack.c.b16 %v4255, %v4253
    %v4322 = vpack.c.b16 %v4258, %v4256
    %v4323 = vpack.c.b16 %v4259, %v4257
    %v4324 = vpack.c.b16 %v4262, %v4260
    %v4325 = vpack.c.b16 %v4263, %v4261
    %v4326 = vpack.c.b16 %v4266, %v4264
    %v4327 = vpack.c.b16 %v4267, %v4265
    %v4328 = vpack.c.b16 %v4270, %v4268
    %v4329 = vpack.c.b16 %v4271, %v4269
    %v4330 = vpack.c.b16 %v4274, %v4272
    %v4331 = vpack.c.b16 %v4275, %v4273
    %v4332 = vpack.c.b16 %v4278, %v4276
    %v4333 = vpack.c.b16 %v4279, %v4277
    %v4334 = vpack.c.b16 %v4282, %v4280
    %v4335 = vpack.c.b16 %v4283, %v4281
    %v4336 = vpack.c.b16 %v4286, %v4284
    %v4337 = vpack.c.b16 %v4287, %v4285
    %v4338 = vpack.c.b16 %v4290, %v4288
    %v4339 = vpack.c.b16 %v4291, %v4289
    %4388 = vmatprep.subr.bf16.mxu0 %v4293
    %4389 = vmatpush1.bf16.msra.mxu0 %v4292
    %4390 = vmatprep.subr.bf16.mxu0 %v4295
    %4391 = vmatpush1.bf16.msra.mxu0 %v4294
    %4392 = vmatprep.subr.bf16.mxu0 %v4297
    %4393 = vmatpush1.bf16.msra.mxu0 %v4296
    %4394 = vmatprep.subr.bf16.mxu0 %v4299
    %4395 = vmatpush1.bf16.msra.mxu0 %v4298
    %4396 = vmatprep.subr.bf16.mxu0 %v4301
    %4397 = vmatpush1.bf16.msra.mxu0 %v4300
    %4398 = vmatprep.subr.bf16.mxu0 %v4303
    %4399 = vmatpush1.bf16.msra.mxu0 %v4302
    %4400 = vmatprep.subr.bf16.mxu0 %v4305
    %4401 = vmatpush1.bf16.msra.mxu0 %v4304
    %4402 = vmatprep.subr.bf16.mxu0 %v4307
    %4403 = vmatpush1.bf16.msra.mxu0 %v4306
    %4404 = vmatprep.subr.bf16.mxu0 %v4309
    %4405 = vmatpush1.bf16.msra.mxu0 %v4308
    %4406 = vmatprep.subr.bf16.mxu0 %v4311
    %4407 = vmatpush1.bf16.msra.mxu0 %v4310
    %4408 = vmatprep.subr.bf16.mxu0 %v4313
    %4409 = vmatpush1.bf16.msra.mxu0 %v4312
    %4410 = vmatprep.subr.bf16.mxu0 %v4315
    %4411 = vmatpush1.bf16.msra.mxu0 %v4314
    %4412 = vmatprep.subr.bf16.mxu0 %v4317
    %4413 = vmatpush1.bf16.msra.mxu0 %v4316
    %4414 = vmatprep.subr.bf16.mxu0 %v4319
    %4415 = vmatpush1.bf16.msra.mxu0 %v4318
    %4416 = vmatprep.subr.bf16.mxu0 %v4321
    %4417 = vmatpush1.bf16.msra.mxu0 %v4320
    %4418 = vmatprep.subr.bf16.mxu0 %v4323
    %4419 = vmatpush1.bf16.msra.mxu0 %v4322
    %4420 = vmatprep.mubr.bf16.mxu0 %v3334
    %4421 = vmatmul.mubr.bf16.gmra.mrb[0].mxu0 %v3333
    %v4422 = vpop.f32.mrb[0].mxu0
    %v4423 = vadd.f32 0.0, %v4422
    %v4424 = vpop.f32.mrb[0].mxu0
    %v4425 = vadd.f32 0.0, %v4424
    %v4426 = vpop.f32.mrb[0].mxu0
    %v4427 = vpop.f32.mrb[0].mxu0
    %4428 = vdwg.mxu0
    %4429 = vmatprep.subr.bf16.mxu0 %v4325
    %4430 = vmatpush1.bf16.msra.mxu0 %v4324
    %4431 = vmatprep.subr.bf16.mxu0 %v4327
    %4432 = vmatpush1.bf16.msra.mxu0 %v4326
    %4433 = vmatprep.subr.bf16.mxu0 %v4329
    %4434 = vmatpush1.bf16.msra.mxu0 %v4328
    %4435 = vmatprep.subr.bf16.mxu0 %v4331
    %4436 = vmatpush1.bf16.msra.mxu0 %v4330
    %4437 = vmatprep.subr.bf16.mxu0 %v4333
    %4438 = vmatpush1.bf16.msra.mxu0 %v4332
    %4439 = vmatprep.subr.bf16.mxu0 %v4335
    %4440 = vmatpush1.bf16.msra.mxu0 %v4334
    %4441 = vmatprep.subr.bf16.mxu0 %v4337
    %4442 = vmatpush1.bf16.msra.mxu0 %v4336
    %4443 = vmatprep.subr.bf16.mxu0 %v4339
    %4444 = vmatpush1.bf16.msra.mxu0 %v4338
    %4445 = vmatprep.subr.bf16.mxu0 0
    %4446 = vmatpush1.bf16.msra.mxu0 0
    %4447 = vmatprep.subr.bf16.mxu0 0
    %4448 = vmatpush1.bf16.msra.mxu0 0
    %4449 = vmatprep.subr.bf16.mxu0 0
    %4450 = vmatpush1.bf16.msra.mxu0 0
    %4451 = vmatprep.subr.bf16.mxu0 0
    %4452 = vmatpush1.bf16.msra.mxu0 0
    %4453 = vmatprep.subr.bf16.mxu0 0
    %4454 = vmatpush1.bf16.msra.mxu0 0
    %4455 = vmatprep.subr.bf16.mxu0 0
    %4456 = vmatpush1.bf16.msra.mxu0 0
    %4457 = vmatprep.subr.bf16.mxu0 0
    %4458 = vmatpush1.bf16.msra.mxu0 0
    %4459 = vmatprep.subr.bf16.mxu0 0
    %4460 = vmatpush1.bf16.msra.mxu0 0
    %4461 = vmatprep.mubr.bf16.mxu0 0
    %4462 = vmatmul.mubr.bf16.gmra.mrb[0].mxu0 %v3335
    %v4463 = vpop.f32.mrb[0].mxu0
    %v4464 = vadd.f32 %v4423, %v4463
    %v4465 = vpop.f32.mrb[0].mxu0
    %v4466 = vadd.f32 %v4425, %v4465
    %v4467 = vpop.f32.mrb[0].mxu0
    %v4468 = vpop.f32.mrb[0].mxu0
    %4469 = vdwg.mxu0
    %4471 = vrot.lane.b32.xlu0 %v4464, 64
    %v4472 = vpop.permute.xlu0 %4471
    %v4474 = vmax.f32 %v4464, %v4472
    %4476 = vrot.lane.b32.xlu0 %v4466, 64
    %v4477 = vpop.permute.xlu0 %4476
    %v4479 = vmax.f32 %v4466, %v4477
    %v4480 = vmax.f32 %v4474, %v4479
    %s4481 = scalar_lea.vmem [#allocation8], 1152
    %v4482 = vld [vmem:[%s4481] sm:$0xff]
    %v4483 = vld [vmem:[%s4481 + $0x8] sm:$0xff]
    %v4484 = vld [vmem:[%s4481 + $0x10] sm:$0xff]
    %v4485 = vld [vmem:[%s4481 + $0x18] sm:$0xff]
    %v4486 = vld [vmem:[%s4481 + $0x20] sm:$0xff]
    %v4487 = vld [vmem:[%s4481 + $0x28] sm:$0xff]
    %v4488 = vld [vmem:[%s4481 + $0x30] sm:$0xff]
    %v4489 = vld [vmem:[%s4481 + $0x38] sm:$0xff]
    %v4490 = vld [vmem:[%s4481 + $0x40] sm:$0xff]
    %v4491 = vld [vmem:[%s4481 + $0x48] sm:$0xff]
    %v4492 = vld [vmem:[%s4481 + $0x50] sm:$0xff]
    %v4493 = vld [vmem:[%s4481 + $0x58] sm:$0xff]
    %v4494 = vld [vmem:[%s4481 + $0x60] sm:$0xff]
    %v4495 = vld [vmem:[%s4481 + $0x68] sm:$0xff]
    %v4496 = vld [vmem:[%s4481 + $0x70] sm:$0xff]
    %v4497 = vld [vmem:[%s4481 + $0x78] sm:$0xff]
    %v4498 = vld [vmem:[%s4481 + $0x80] sm:$0xff]
    %v4499 = vld [vmem:[%s4481 + $0x88] sm:$0xff]
    %v4500 = vld [vmem:[%s4481 + $0x90] sm:$0xff]
    %v4501 = vld [vmem:[%s4481 + $0x98] sm:$0xff]
    %v4502 = vld [vmem:[%s4481 + $0xa0] sm:$0xff]
    %v4503 = vld [vmem:[%s4481 + $0xa8] sm:$0xff]
    %v4504 = vld [vmem:[%s4481 + $0xb0] sm:$0xff]
    %v4505 = vld [vmem:[%s4481 + $0xb8] sm:$0xff]
    %v4506 = vld [vmem:[%s4481 + $0xc0] sm:$0xff]
    %v4507 = vld [vmem:[%s4481 + $0xc8] sm:$0xff]
    %v4508 = vld [vmem:[%s4481 + $0xd0] sm:$0xff]
    %v4509 = vld [vmem:[%s4481 + $0xd8] sm:$0xff]
    %v4510 = vld [vmem:[%s4481 + $0xe0] sm:$0xff]
    %v4511 = vld [vmem:[%s4481 + $0xe8] sm:$0xff]
    %v4512 = vld [vmem:[%s4481 + $0xf0] sm:$0xff]
    %v4513 = vld [vmem:[%s4481 + $0xf8] sm:$0xff]
    %v4514 = vld [vmem:[%s4481 + $0x100] sm:$0xff]
    %v4515 = vld [vmem:[%s4481 + $0x108] sm:$0xff]
    %v4516 = vld [vmem:[%s4481 + $0x110] sm:$0xff]
    %v4517 = vld [vmem:[%s4481 + $0x118] sm:$0xff]
    %v4518 = vld [vmem:[%s4481 + $0x120] sm:$0xff]
    %v4519 = vld [vmem:[%s4481 + $0x128] sm:$0xff]
    %v4520 = vld [vmem:[%s4481 + $0x130] sm:$0xff]
    %v4521 = vld [vmem:[%s4481 + $0x138] sm:$0xff]
    %v4522 = vld [vmem:[%s4481 + $0x140] sm:$0xff]
    %v4523 = vld [vmem:[%s4481 + $0x148] sm:$0xff]
    %v4524 = vld [vmem:[%s4481 + $0x150] sm:$0xff]
    %v4525 = vld [vmem:[%s4481 + $0x158] sm:$0xff]
    %v4526 = vld [vmem:[%s4481 + $0x160] sm:$0xff]
    %v4527 = vld [vmem:[%s4481 + $0x168] sm:$0xff]
    %v4528 = vld [vmem:[%s4481 + $0x170] sm:$0xff]
    %v4529 = vld [vmem:[%s4481 + $0x178] sm:$0xff]
    %v4578 = vunpack.c.l.b16 %v4482
    %v4579 = vunpack.c.h.b16 %v4482
    %v4580 = vunpack.c.l.b16 %v4483
    %v4581 = vunpack.c.h.b16 %v4483
    %v4582 = vunpack.c.l.b16 %v4484
    %v4583 = vunpack.c.h.b16 %v4484
    %v4584 = vunpack.c.l.b16 %v4485
    %v4585 = vunpack.c.h.b16 %v4485
    %v4586 = vunpack.c.l.b16 %v4486
    %v4587 = vunpack.c.h.b16 %v4486
    %v4588 = vunpack.c.l.b16 %v4487
    %v4589 = vunpack.c.h.b16 %v4487
    %v4590 = vunpack.c.l.b16 %v4488
    %v4591 = vunpack.c.h.b16 %v4488
    %v4592 = vunpack.c.l.b16 %v4489
    %v4593 = vunpack.c.h.b16 %v4489
    %v4594 = vunpack.c.l.b16 %v4490
    %v4595 = vunpack.c.h.b16 %v4490
    %v4596 = vunpack.c.l.b16 %v4491
    %v4597 = vunpack.c.h.b16 %v4491
    %v4598 = vunpack.c.l.b16 %v4492
    %v4599 = vunpack.c.h.b16 %v4492
    %v4600 = vunpack.c.l.b16 %v4493
    %v4601 = vunpack.c.h.b16 %v4493
    %v4602 = vunpack.c.l.b16 %v4494
    %v4603 = vunpack.c.h.b16 %v4494
    %v4604 = vunpack.c.l.b16 %v4495
    %v4605 = vunpack.c.h.b16 %v4495
    %v4606 = vunpack.c.l.b16 %v4496
    %v4607 = vunpack.c.h.b16 %v4496
    %v4608 = vunpack.c.l.b16 %v4497
    %v4609 = vunpack.c.h.b16 %v4497
    %v4610 = vunpack.c.l.b16 %v4498
    %v4611 = vunpack.c.h.b16 %v4498
    %v4612 = vunpack.c.l.b16 %v4499
    %v4613 = vunpack.c.h.b16 %v4499
    %v4614 = vunpack.c.l.b16 %v4500
    %v4615 = vunpack.c.h.b16 %v4500
    %v4616 = vunpack.c.l.b16 %v4501
    %v4617 = vunpack.c.h.b16 %v4501
    %v4618 = vunpack.c.l.b16 %v4502
    %v4619 = vunpack.c.h.b16 %v4502
    %v4620 = vunpack.c.l.b16 %v4503
    %v4621 = vunpack.c.h.b16 %v4503
    %v4622 = vunpack.c.l.b16 %v4504
    %v4623 = vunpack.c.h.b16 %v4504
    %v4624 = vunpack.c.l.b16 %v4505
    %v4625 = vunpack.c.h.b16 %v4505
    %v4626 = vunpack.c.l.b16 %v4506
    %v4627 = vunpack.c.h.b16 %v4506
    %v4628 = vunpack.c.l.b16 %v4507
    %v4629 = vunpack.c.h.b16 %v4507
    %v4630 = vunpack.c.l.b16 %v4508
    %v4631 = vunpack.c.h.b16 %v4508
    %v4632 = vunpack.c.l.b16 %v4509
    %v4633 = vunpack.c.h.b16 %v4509
    %v4634 = vunpack.c.l.b16 %v4510
    %v4635 = vunpack.c.h.b16 %v4510
    %v4636 = vunpack.c.l.b16 %v4511
    %v4637 = vunpack.c.h.b16 %v4511
    %v4638 = vunpack.c.l.b16 %v4512
    %v4639 = vunpack.c.h.b16 %v4512
    %v4640 = vunpack.c.l.b16 %v4513
    %v4641 = vunpack.c.h.b16 %v4513
    %v4642 = vunpack.c.l.b16 %v4514
    %v4643 = vunpack.c.h.b16 %v4514
    %v4644 = vunpack.c.l.b16 %v4515
    %v4645 = vunpack.c.h.b16 %v4515
    %v4646 = vunpack.c.l.b16 %v4516
    %v4647 = vunpack.c.h.b16 %v4516
    %v4648 = vunpack.c.l.b16 %v4517
    %v4649 = vunpack.c.h.b16 %v4517
    %v4650 = vunpack.c.l.b16 %v4518
    %v4651 = vunpack.c.h.b16 %v4518
    %v4652 = vunpack.c.l.b16 %v4519
    %v4653 = vunpack.c.h.b16 %v4519
    %v4654 = vunpack.c.l.b16 %v4520
    %v4655 = vunpack.c.h.b16 %v4520
    %v4656 = vunpack.c.l.b16 %v4521
    %v4657 = vunpack.c.h.b16 %v4521
    %v4658 = vunpack.c.l.b16 %v4522
    %v4659 = vunpack.c.h.b16 %v4522
    %v4660 = vunpack.c.l.b16 %v4523
    %v4661 = vunpack.c.h.b16 %v4523
    %v4662 = vunpack.c.l.b16 %v4524
    %v4663 = vunpack.c.h.b16 %v4524
    %v4664 = vunpack.c.l.b16 %v4525
    %v4665 = vunpack.c.h.b16 %v4525
    %v4666 = vunpack.c.l.b16 %v4526
    %v4667 = vunpack.c.h.b16 %v4526
    %v4668 = vunpack.c.l.b16 %v4527
    %v4669 = vunpack.c.h.b16 %v4527
    %v4670 = vunpack.c.l.b16 %v4528
    %v4671 = vunpack.c.h.b16 %v4528
    %v4672 = vunpack.c.l.b16 %v4529
    %v4673 = vunpack.c.h.b16 %v4529
    %v4674 = vpack.c.b16 %v4580, %v4578
    %v4675 = vpack.c.b16 %v4581, %v4579
    %v4676 = vpack.c.b16 %v4584, %v4582
    %v4677 = vpack.c.b16 %v4585, %v4583
    %v4678 = vpack.c.b16 %v4588, %v4586
    %v4679 = vpack.c.b16 %v4589, %v4587
    %v4680 = vpack.c.b16 %v4592, %v4590
    %v4681 = vpack.c.b16 %v4593, %v4591
    %v4682 = vpack.c.b16 %v4596, %v4594
    %v4683 = vpack.c.b16 %v4597, %v4595
    %v4684 = vpack.c.b16 %v4600, %v4598
    %v4685 = vpack.c.b16 %v4601, %v4599
    %v4686 = vpack.c.b16 %v4604, %v4602
    %v4687 = vpack.c.b16 %v4605, %v4603
    %v4688 = vpack.c.b16 %v4608, %v4606
    %v4689 = vpack.c.b16 %v4609, %v4607
    %v4690 = vpack.c.b16 %v4612, %v4610
    %v4691 = vpack.c.b16 %v4613, %v4611
    %v4692 = vpack.c.b16 %v4616, %v4614
    %v4693 = vpack.c.b16 %v4617, %v4615
    %v4694 = vpack.c.b16 %v4620, %v4618
    %v4695 = vpack.c.b16 %v4621, %v4619
    %v4696 = vpack.c.b16 %v4624, %v4622
    %v4697 = vpack.c.b16 %v4625, %v4623
    %v4698 = vpack.c.b16 %v4628, %v4626
    %v4699 = vpack.c.b16 %v4629, %v4627
    %v4700 = vpack.c.b16 %v4632, %v4630
    %v4701 = vpack.c.b16 %v4633, %v4631
    %v4702 = vpack.c.b16 %v4636, %v4634
    %v4703 = vpack.c.b16 %v4637, %v4635
    %v4704 = vpack.c.b16 %v4640, %v4638
    %v4705 = vpack.c.b16 %v4641, %v4639
    %v4706 = vpack.c.b16 %v4644, %v4642
    %v4707 = vpack.c.b16 %v4645, %v4643
    %v4708 = vpack.c.b16 %v4648, %v4646
    %v4709 = vpack.c.b16 %v4649, %v4647
    %v4710 = vpack.c.b16 %v4652, %v4650
    %v4711 = vpack.c.b16 %v4653, %v4651
    %v4712 = vpack.c.b16 %v4656, %v4654
    %v4713 = vpack.c.b16 %v4657, %v4655
    %v4714 = vpack.c.b16 %v4660, %v4658
    %v4715 = vpack.c.b16 %v4661, %v4659
    %v4716 = vpack.c.b16 %v4664, %v4662
    %v4717 = vpack.c.b16 %v4665, %v4663
    %v4718 = vpack.c.b16 %v4668, %v4666
    %v4719 = vpack.c.b16 %v4669, %v4667
    %v4720 = vpack.c.b16 %v4672, %v4670
    %v4721 = vpack.c.b16 %v4673, %v4671
    %4770 = vmatprep.subr.bf16.mxu0 %v4675
    %4771 = vmatpush1.bf16.msra.mxu0 %v4674
    %4772 = vmatprep.subr.bf16.mxu0 %v4677
    %4773 = vmatpush1.bf16.msra.mxu0 %v4676
    %4774 = vmatprep.subr.bf16.mxu0 %v4679
    %4775 = vmatpush1.bf16.msra.mxu0 %v4678
    %4776 = vmatprep.subr.bf16.mxu0 %v4681
    %4777 = vmatpush1.bf16.msra.mxu0 %v4680
    %4778 = vmatprep.subr.bf16.mxu0 %v4683
    %4779 = vmatpush1.bf16.msra.mxu0 %v4682
    %4780 = vmatprep.subr.bf16.mxu0 %v4685
    %4781 = vmatpush1.bf16.msra.mxu0 %v4684
    %4782 = vmatprep.subr.bf16.mxu0 %v4687
    %4783 = vmatpush1.bf16.msra.mxu0 %v4686
    %4784 = vmatprep.subr.bf16.mxu0 %v4689
    %4785 = vmatpush1.bf16.msra.mxu0 %v4688
    %4786 = vmatprep.subr.bf16.mxu0 %v4691
    %4787 = vmatpush1.bf16.msra.mxu0 %v4690
    %4788 = vmatprep.subr.bf16.mxu0 %v4693
    %4789 = vmatpush1.bf16.msra.mxu0 %v4692
    %4790 = vmatprep.subr.bf16.mxu0 %v4695
    %4791 = vmatpush1.bf16.msra.mxu0 %v4694
    %4792 = vmatprep.subr.bf16.mxu0 %v4697
    %4793 = vmatpush1.bf16.msra.mxu0 %v4696
    %4794 = vmatprep.subr.bf16.mxu0 %v4699
    %4795 = vmatpush1.bf16.msra.mxu0 %v4698
    %4796 = vmatprep.subr.bf16.mxu0 %v4701
    %4797 = vmatpush1.bf16.msra.mxu0 %v4700
    %4798 = vmatprep.subr.bf16.mxu0 %v4703
    %4799 = vmatpush1.bf16.msra.mxu0 %v4702
    %4800 = vmatprep.subr.bf16.mxu0 %v4705
    %4801 = vmatpush1.bf16.msra.mxu0 %v4704
    %4802 = vmatprep.mubr.bf16.mxu0 %v3334
    %4803 = vmatmul.mubr.bf16.gmra.mrb[0].mxu0 %v3333
    %v4804 = vpop.f32.mrb[0].mxu0
    %v4805 = vadd.f32 0.0, %v4804
    %v4806 = vpop.f32.mrb[0].mxu0
    %v4807 = vadd.f32 0.0, %v4806
    %v4808 = vpop.f32.mrb[0].mxu0
    %v4809 = vpop.f32.mrb[0].mxu0
    %4810 = vdwg.mxu0
    %4811 = vmatprep.subr.bf16.mxu0 %v4707
    %4812 = vmatpush1.bf16.msra.mxu0 %v4706
    %4813 = vmatprep.subr.bf16.mxu0 %v4709
    %4814 = vmatpush1.bf16.msra.mxu0 %v4708
    %4815 = vmatprep.subr.bf16.mxu0 %v4711
    %4816 = vmatpush1.bf16.msra.mxu0 %v4710
    %4817 = vmatprep.subr.bf16.mxu0 %v4713
    %4818 = vmatpush1.bf16.msra.mxu0 %v4712
    %4819 = vmatprep.subr.bf16.mxu0 %v4715
    %4820 = vmatpush1.bf16.msra.mxu0 %v4714
    %4821 = vmatprep.subr.bf16.mxu0 %v4717
    %4822 = vmatpush1.bf16.msra.mxu0 %v4716
    %4823 = vmatprep.subr.bf16.mxu0 %v4719
    %4824 = vmatpush1.bf16.msra.mxu0 %v4718
    %4825 = vmatprep.subr.bf16.mxu0 %v4721
    %4826 = vmatpush1.bf16.msra.mxu0 %v4720
    %4827 = vmatprep.subr.bf16.mxu0 0
    %4828 = vmatpush1.bf16.msra.mxu0 0
    %4829 = vmatprep.subr.bf16.mxu0 0
    %4830 = vmatpush1.bf16.msra.mxu0 0
    %4831 = vmatprep.subr.bf16.mxu0 0
    %4832 = vmatpush1.bf16.msra.mxu0 0
    %4833 = vmatprep.subr.bf16.mxu0 0
    %4834 = vmatpush1.bf16.msra.mxu0 0
    %4835 = vmatprep.subr.bf16.mxu0 0
    %4836 = vmatpush1.bf16.msra.mxu0 0
    %4837 = vmatprep.subr.bf16.mxu0 0
    %4838 = vmatpush1.bf16.msra.mxu0 0
    %4839 = vmatprep.subr.bf16.mxu0 0
    %4840 = vmatpush1.bf16.msra.mxu0 0
    %4841 = vmatprep.subr.bf16.mxu0 0
    %4842 = vmatpush1.bf16.msra.mxu0 0
    %4843 = vmatprep.mubr.bf16.mxu0 0
    %4844 = vmatmul.mubr.bf16.gmra.mrb[0].mxu0 %v3335
    %v4845 = vpop.f32.mrb[0].mxu0
    %v4846 = vadd.f32 %v4805, %v4845
    %v4847 = vpop.f32.mrb[0].mxu0
    %v4848 = vadd.f32 %v4807, %v4847
    %v4849 = vpop.f32.mrb[0].mxu0
    %v4850 = vpop.f32.mrb[0].mxu0
    %4851 = vdwg.mxu0
    %4853 = vrot.lane.b32.xlu0 %v4846, 64
    %v4854 = vpop.permute.xlu0 %4853
    %v4856 = vmax.f32 %v4846, %v4854
    %4858 = vrot.lane.b32.xlu0 %v4848, 64
    %v4859 = vpop.permute.xlu0 %4858
    %v4861 = vmax.f32 %v4848, %v4859
    %v4862 = vmax.f32 %v4856, %v4861
    %4864 = vrot.lane.b32.xlu0 %v4098, 64
    %v4865 = vpop.permute.xlu0 %4864
    %4868 = vrot.lane.b32.xlu0 %v4862, 64
    %v4869 = vpop.permute.xlu0 %4868
    %v4871 = vsel %vm3277, %v3716, %v4865
    %v4872 = vsel %vm3277, %v4480, %v4869
    %v4873 = vld [vmem:[#allocation10] sm:$0x3]
    %v4875 = vlaneseq
    %v4876 = vshrl.u32 %v4875, 7
    %v4877 = vsub.s32 0, %v4876
    %v4878 = vrot.slane %v4873, %v4877
    %v4879 = vlaneseq
    %v4880 = vshrl.u32 %v4879, 7
    %v4881 = vsub.s32 1, %v4880
    %v4882 = vrot.slane %v4873, %v4881
    %v4885 = vadd.f32 %v4871, %v4878
    %v4886 = vadd.f32 %v4872, %v4882
    %vm4887 = vcmp.gt.f32.partialorder %v4885, 0.0
    %vm4888 = vcmp.gt.f32.partialorder %v4886, 0.0
    %v4889 = vmin.f32 %v4885, 0.0
    %v4890 = vmin.f32 %v4886, 0.0
    %v4891 = vmul.f32 %v4889, 1.442695
    %v4892 = vpow.pop %v4891
    %v4893 = vmul.f32 %v4890, 1.442695
    %v4894 = vpow.pop %v4893
    %v4895 = vsub.f32 %v4892, 1.0
    %v4896 = vsub.f32 %v4894, 1.0
    %v4897 = vsel %vm4887, %v4885, %v4895
    %v4898 = vsel %vm4888, %v4886, %v4896
    %v4899 = vpack.c.bf16 %v4897, %v4897
    %v4900 = vpack.c.bf16 %v4898, %v4898
    %v4901 = vld [vmem:[#allocation11] sm:$0xff]
    %v4902 = vld [vmem:[#allocation11 + $0x8] sm:$0xff]
    %v4903 = vld [vmem:[#allocation11 + $0x10] sm:$0xff]
    %v4904 = vld [vmem:[#allocation11 + $0x18] sm:$0xff]
    %v4905 = vld [vmem:[#allocation11 + $0x20] sm:$0xff]
    %v4906 = vld [vmem:[#allocation11 + $0x28] sm:$0xff]
    %v4907 = vld [vmem:[#allocation11 + $0x30] sm:$0xff]
    %v4908 = vld [vmem:[#allocation11 + $0x38] sm:$0xff]
    %v4909 = vld [vmem:[#allocation11 + $0x40] sm:$0xff]
    %v4910 = vld [vmem:[#allocation11 + $0x48] sm:$0xff]
    %v4911 = vld [vmem:[#allocation11 + $0x50] sm:$0xff]
    %v4912 = vld [vmem:[#allocation11 + $0x58] sm:$0xff]
    %v4913 = vld [vmem:[#allocation11 + $0x60] sm:$0xff]
    %v4914 = vld [vmem:[#allocation11 + $0x68] sm:$0xff]
    %v4915 = vld [vmem:[#allocation11 + $0x70] sm:$0xff]
    %v4916 = vld [vmem:[#allocation11 + $0x78] sm:$0xff]
    %v4917 = vld [vmem:[#allocation11 + $0x80] sm:$0xff]
    %v4918 = vld [vmem:[#allocation11 + $0x88] sm:$0xff]
    %v4919 = vld [vmem:[#allocation11 + $0x90] sm:$0xff]
    %v4920 = vld [vmem:[#allocation11 + $0x98] sm:$0xff]
    %v4921 = vld [vmem:[#allocation11 + $0xa0] sm:$0xff]
    %v4922 = vld [vmem:[#allocation11 + $0xa8] sm:$0xff]
    %v4923 = vld [vmem:[#allocation11 + $0xb0] sm:$0xff]
    %v4924 = vld [vmem:[#allocation11 + $0xb8] sm:$0xff]
    %v4925 = vld [vmem:[#allocation11 + $0xc0] sm:$0xff]
    %v4926 = vld [vmem:[#allocation11 + $0xc8] sm:$0xff]
    %v4927 = vld [vmem:[#allocation11 + $0xd0] sm:$0xff]
    %v4928 = vld [vmem:[#allocation11 + $0xd8] sm:$0xff]
    %v4929 = vld [vmem:[#allocation11 + $0xe0] sm:$0xff]
    %v4930 = vld [vmem:[#allocation11 + $0xe8] sm:$0xff]
    %v4931 = vld [vmem:[#allocation11 + $0xf0] sm:$0xff]
    %v4932 = vld [vmem:[#allocation11 + $0xf8] sm:$0xff]
    %v4965 = vunpack.c.l.b16 %v4901
    %v4966 = vunpack.c.h.b16 %v4901
    %v4967 = vunpack.c.l.b16 %v4902
    %v4968 = vunpack.c.h.b16 %v4902
    %v4969 = vunpack.c.l.b16 %v4903
    %v4970 = vunpack.c.h.b16 %v4903
    %v4971 = vunpack.c.l.b16 %v4904
    %v4972 = vunpack.c.h.b16 %v4904
    %v4973 = vunpack.c.l.b16 %v4905
    %v4974 = vunpack.c.h.b16 %v4905
    %v4975 = vunpack.c.l.b16 %v4906
    %v4976 = vunpack.c.h.b16 %v4906
    %v4977 = vunpack.c.l.b16 %v4907
    %v4978 = vunpack.c.h.b16 %v4907
    %v4979 = vunpack.c.l.b16 %v4908
    %v4980 = vunpack.c.h.b16 %v4908
    %v4981 = vunpack.c.l.b16 %v4909
    %v4982 = vunpack.c.h.b16 %v4909
    %v4983 = vunpack.c.l.b16 %v4910
    %v4984 = vunpack.c.h.b16 %v4910
    %v4985 = vunpack.c.l.b16 %v4911
    %v4986 = vunpack.c.h.b16 %v4911
    %v4987 = vunpack.c.l.b16 %v4912
    %v4988 = vunpack.c.h.b16 %v4912
    %v4989 = vunpack.c.l.b16 %v4913
    %v4990 = vunpack.c.h.b16 %v4913
    %v4991 = vunpack.c.l.b16 %v4914
    %v4992 = vunpack.c.h.b16 %v4914
    %v4993 = vunpack.c.l.b16 %v4915
    %v4994 = vunpack.c.h.b16 %v4915
    %v4995 = vunpack.c.l.b16 %v4916
    %v4996 = vunpack.c.h.b16 %v4916
    %v4997 = vunpack.c.l.b16 %v4917
    %v4998 = vunpack.c.h.b16 %v4917
    %v4999 = vunpack.c.l.b16 %v4918
    %v5000 = vunpack.c.h.b16 %v4918
    %v5001 = vunpack.c.l.b16 %v4919
    %v5002 = vunpack.c.h.b16 %v4919
    %v5003 = vunpack.c.l.b16 %v4920
    %v5004 = vunpack.c.h.b16 %v4920
    %v5005 = vunpack.c.l.b16 %v4921
    %v5006 = vunpack.c.h.b16 %v4921
    %v5007 = vunpack.c.l.b16 %v4922
    %v5008 = vunpack.c.h.b16 %v4922
    %v5009 = vunpack.c.l.b16 %v4923
    %v5010 = vunpack.c.h.b16 %v4923
    %v5011 = vunpack.c.l.b16 %v4924
    %v5012 = vunpack.c.h.b16 %v4924
    %v5013 = vunpack.c.l.b16 %v4925
    %v5014 = vunpack.c.h.b16 %v4925
    %v5015 = vunpack.c.l.b16 %v4926
    %v5016 = vunpack.c.h.b16 %v4926
    %v5017 = vunpack.c.l.b16 %v4927
    %v5018 = vunpack.c.h.b16 %v4927
    %v5019 = vunpack.c.l.b16 %v4928
    %v5020 = vunpack.c.h.b16 %v4928
    %v5021 = vunpack.c.l.b16 %v4929
    %v5022 = vunpack.c.h.b16 %v4929
    %v5023 = vunpack.c.l.b16 %v4930
    %v5024 = vunpack.c.h.b16 %v4930
    %v5025 = vunpack.c.l.b16 %v4931
    %v5026 = vunpack.c.h.b16 %v4931
    %v5027 = vunpack.c.l.b16 %v4932
    %v5028 = vunpack.c.h.b16 %v4932
    %v5029 = vpack.c.b16 %v4967, %v4965
    %v5030 = vpack.c.b16 %v4968, %v4966
    %v5031 = vpack.c.b16 %v4971, %v4969
    %v5032 = vpack.c.b16 %v4972, %v4970
    %v5033 = vpack.c.b16 %v4975, %v4973
    %v5034 = vpack.c.b16 %v4976, %v4974
    %v5035 = vpack.c.b16 %v4979, %v4977
    %v5036 = vpack.c.b16 %v4980, %v4978
    %v5037 = vpack.c.b16 %v4983, %v4981
    %v5038 = vpack.c.b16 %v4984, %v4982
    %v5039 = vpack.c.b16 %v4987, %v4985
    %v5040 = vpack.c.b16 %v4988, %v4986
    %v5041 = vpack.c.b16 %v4991, %v4989
    %v5042 = vpack.c.b16 %v4992, %v4990
    %v5043 = vpack.c.b16 %v4995, %v4993
    %v5044 = vpack.c.b16 %v4996, %v4994
    %v5045 = vpack.c.b16 %v4999, %v4997
    %v5046 = vpack.c.b16 %v5000, %v4998
    %v5047 = vpack.c.b16 %v5003, %v5001
    %v5048 = vpack.c.b16 %v5004, %v5002
    %v5049 = vpack.c.b16 %v5007, %v5005
    %v5050 = vpack.c.b16 %v5008, %v5006
    %v5051 = vpack.c.b16 %v5011, %v5009
    %v5052 = vpack.c.b16 %v5012, %v5010
    %v5053 = vpack.c.b16 %v5015, %v5013
    %v5054 = vpack.c.b16 %v5016, %v5014
    %v5055 = vpack.c.b16 %v5019, %v5017
    %v5056 = vpack.c.b16 %v5020, %v5018
    %v5057 = vpack.c.b16 %v5023, %v5021
    %v5058 = vpack.c.b16 %v5024, %v5022
    %v5059 = vpack.c.b16 %v5027, %v5025
    %v5060 = vpack.c.b16 %v5028, %v5026
    %5093 = vmatprep.subr.bf16.mxu0 %v5030
    %5094 = vmatpush1.bf16.msra.mxu0 %v5029
    %5095 = vmatprep.subr.bf16.mxu0 %v5032
    %5096 = vmatpush1.bf16.msra.mxu0 %v5031
    %5097 = vmatprep.subr.bf16.mxu0 %v5034
    %5098 = vmatpush1.bf16.msra.mxu0 %v5033
    %5099 = vmatprep.subr.bf16.mxu0 %v5036
    %5100 = vmatpush1.bf16.msra.mxu0 %v5035
    %5101 = vmatprep.subr.bf16.mxu0 %v5038
    %5102 = vmatpush1.bf16.msra.mxu0 %v5037
    %5103 = vmatprep.subr.bf16.mxu0 %v5040
    %5104 = vmatpush1.bf16.msra.mxu0 %v5039
    %5105 = vmatprep.subr.bf16.mxu0 %v5042
    %5106 = vmatpush1.bf16.msra.mxu0 %v5041
    %5107 = vmatprep.subr.bf16.mxu0 %v5044
    %5108 = vmatpush1.bf16.msra.mxu0 %v5043
    %5109 = vmatprep.subr.bf16.mxu0 %v5046
    %5110 = vmatpush1.bf16.msra.mxu0 %v5045
    %5111 = vmatprep.subr.bf16.mxu0 %v5048
    %5112 = vmatpush1.bf16.msra.mxu0 %v5047
    %5113 = vmatprep.subr.bf16.mxu0 %v5050
    %5114 = vmatpush1.bf16.msra.mxu0 %v5049
    %5115 = vmatprep.subr.bf16.mxu0 %v5052
    %5116 = vmatpush1.bf16.msra.mxu0 %v5051
    %5117 = vmatprep.subr.bf16.mxu0 %v5054
    %5118 = vmatpush1.bf16.msra.mxu0 %v5053
    %5119 = vmatprep.subr.bf16.mxu0 %v5056
    %5120 = vmatpush1.bf16.msra.mxu0 %v5055
    %5121 = vmatprep.subr.bf16.mxu0 %v5058
    %5122 = vmatpush1.bf16.msra.mxu0 %v5057
    %5123 = vmatprep.subr.bf16.mxu0 %v5060
    %5124 = vmatpush1.bf16.msra.mxu0 %v5059
    %5125 = vmatprep.mubr.bf16.mxu0 %v4900
    %5126 = vmatmul.mubr.bf16.gmra.mrb[0].mxu0 %v4899
    %v5127 = vpop.f32.mrb[0].mxu0
    %v5128 = vadd.f32 0.0, %v5127
    %v5129 = vpop.f32.mrb[0].mxu0
    %v5130 = vadd.f32 0.0, %v5129
    %v5131 = vpop.f32.mrb[0].mxu0
    %v5132 = vpop.f32.mrb[0].mxu0
    %5133 = vdwg.mxu0
    %5135 = vrot.lane.b32.xlu0 %v5128, 64
    %v5136 = vpop.permute.xlu0 %5135
    %v5138 = vmax.f32 %v5128, %v5136
    %5140 = vrot.lane.b32.xlu0 %v5130, 64
    %v5141 = vpop.permute.xlu0 %5140
    %v5143 = vmax.f32 %v5130, %v5141
    %v5144 = vmax.f32 %v5138, %v5143
    %s5145 = scalar_lea.vmem [#allocation11], 256
    %v5146 = vld [vmem:[%s5145] sm:$0xff]
    %v5147 = vld [vmem:[%s5145 + $0x8] sm:$0xff]
    %v5148 = vld [vmem:[%s5145 + $0x10] sm:$0xff]
    %v5149 = vld [vmem:[%s5145 + $0x18] sm:$0xff]
    %v5150 = vld [vmem:[%s5145 + $0x20] sm:$0xff]
    %v5151 = vld [vmem:[%s5145 + $0x28] sm:$0xff]
    %v5152 = vld [vmem:[%s5145 + $0x30] sm:$0xff]
    %v5153 = vld [vmem:[%s5145 + $0x38] sm:$0xff]
    %v5154 = vld [vmem:[%s5145 + $0x40] sm:$0xff]
    %v5155 = vld [vmem:[%s5145 + $0x48] sm:$0xff]
    %v5156 = vld [vmem:[%s5145 + $0x50] sm:$0xff]
    %v5157 = vld [vmem:[%s5145 + $0x58] sm:$0xff]
    %v5158 = vld [vmem:[%s5145 + $0x60] sm:$0xff]
    %v5159 = vld [vmem:[%s5145 + $0x68] sm:$0xff]
    %v5160 = vld [vmem:[%s5145 + $0x70] sm:$0xff]
    %v5161 = vld [vmem:[%s5145 + $0x78] sm:$0xff]
    %v5162 = vld [vmem:[%s5145 + $0x80] sm:$0xff]
    %v5163 = vld [vmem:[%s5145 + $0x88] sm:$0xff]
    %v5164 = vld [vmem:[%s5145 + $0x90] sm:$0xff]
    %v5165 = vld [vmem:[%s5145 + $0x98] sm:$0xff]
    %v5166 = vld [vmem:[%s5145 + $0xa0] sm:$0xff]
    %v5167 = vld [vmem:[%s5145 + $0xa8] sm:$0xff]
    %v5168 = vld [vmem:[%s5145 + $0xb0] sm:$0xff]
    %v5169 = vld [vmem:[%s5145 + $0xb8] sm:$0xff]
    %v5170 = vld [vmem:[%s5145 + $0xc0] sm:$0xff]
    %v5171 = vld [vmem:[%s5145 + $0xc8] sm:$0xff]
    %v5172 = vld [vmem:[%s5145 + $0xd0] sm:$0xff]
    %v5173 = vld [vmem:[%s5145 + $0xd8] sm:$0xff]
    %v5174 = vld [vmem:[%s5145 + $0xe0] sm:$0xff]
    %v5175 = vld [vmem:[%s5145 + $0xe8] sm:$0xff]
    %v5176 = vld [vmem:[%s5145 + $0xf0] sm:$0xff]
    %v5177 = vld [vmem:[%s5145 + $0xf8] sm:$0xff]
    %v5210 = vunpack.c.l.b16 %v5146
    %v5211 = vunpack.c.h.b16 %v5146
    %v5212 = vunpack.c.l.b16 %v5147
    %v5213 = vunpack.c.h.b16 %v5147
    %v5214 = vunpack.c.l.b16 %v5148
    %v5215 = vunpack.c.h.b16 %v5148
    %v5216 = vunpack.c.l.b16 %v5149
    %v5217 = vunpack.c.h.b16 %v5149
    %v5218 = vunpack.c.l.b16 %v5150
    %v5219 = vunpack.c.h.b16 %v5150
    %v5220 = vunpack.c.l.b16 %v5151
    %v5221 = vunpack.c.h.b16 %v5151
    %v5222 = vunpack.c.l.b16 %v5152
    %v5223 = vunpack.c.h.b16 %v5152
    %v5224 = vunpack.c.l.b16 %v5153
    %v5225 = vunpack.c.h.b16 %v5153
    %v5226 = vunpack.c.l.b16 %v5154
    %v5227 = vunpack.c.h.b16 %v5154
    %v5228 = vunpack.c.l.b16 %v5155
    %v5229 = vunpack.c.h.b16 %v5155
    %v5230 = vunpack.c.l.b16 %v5156
    %v5231 = vunpack.c.h.b16 %v5156
    %v5232 = vunpack.c.l.b16 %v5157
    %v5233 = vunpack.c.h.b16 %v5157
    %v5234 = vunpack.c.l.b16 %v5158
    %v5235 = vunpack.c.h.b16 %v5158
    %v5236 = vunpack.c.l.b16 %v5159
    %v5237 = vunpack.c.h.b16 %v5159
    %v5238 = vunpack.c.l.b16 %v5160
    %v5239 = vunpack.c.h.b16 %v5160
    %v5240 = vunpack.c.l.b16 %v5161
    %v5241 = vunpack.c.h.b16 %v5161
    %v5242 = vunpack.c.l.b16 %v5162
    %v5243 = vunpack.c.h.b16 %v5162
    %v5244 = vunpack.c.l.b16 %v5163
    %v5245 = vunpack.c.h.b16 %v5163
    %v5246 = vunpack.c.l.b16 %v5164
    %v5247 = vunpack.c.h.b16 %v5164
    %v5248 = vunpack.c.l.b16 %v5165
    %v5249 = vunpack.c.h.b16 %v5165
    %v5250 = vunpack.c.l.b16 %v5166
    %v5251 = vunpack.c.h.b16 %v5166
    %v5252 = vunpack.c.l.b16 %v5167
    %v5253 = vunpack.c.h.b16 %v5167
    %v5254 = vunpack.c.l.b16 %v5168
    %v5255 = vunpack.c.h.b16 %v5168
    %v5256 = vunpack.c.l.b16 %v5169
    %v5257 = vunpack.c.h.b16 %v5169
    %v5258 = vunpack.c.l.b16 %v5170
    %v5259 = vunpack.c.h.b16 %v5170
    %v5260 = vunpack.c.l.b16 %v5171
    %v5261 = vunpack.c.h.b16 %v5171
    %v5262 = vunpack.c.l.b16 %v5172
    %v5263 = vunpack.c.h.b16 %v5172
    %v5264 = vunpack.c.l.b16 %v5173
    %v5265 = vunpack.c.h.b16 %v5173
    %v5266 = vunpack.c.l.b16 %v5174
    %v5267 = vunpack.c.h.b16 %v5174
    %v5268 = vunpack.c.l.b16 %v5175
    %v5269 = vunpack.c.h.b16 %v5175
    %v5270 = vunpack.c.l.b16 %v5176
    %v5271 = vunpack.c.h.b16 %v5176
    %v5272 = vunpack.c.l.b16 %v5177
    %v5273 = vunpack.c.h.b16 %v5177
    %v5274 = vpack.c.b16 %v5212, %v5210
    %v5275 = vpack.c.b16 %v5213, %v5211
    %v5276 = vpack.c.b16 %v5216, %v5214
    %v5277 = vpack.c.b16 %v5217, %v5215
    %v5278 = vpack.c.b16 %v5220, %v5218
    %v5279 = vpack.c.b16 %v5221, %v5219
    %v5280 = vpack.c.b16 %v5224, %v5222
    %v5281 = vpack.c.b16 %v5225, %v5223
    %v5282 = vpack.c.b16 %v5228, %v5226
    %v5283 = vpack.c.b16 %v5229, %v5227
    %v5284 = vpack.c.b16 %v5232, %v5230
    %v5285 = vpack.c.b16 %v5233, %v5231
    %v5286 = vpack.c.b16 %v5236, %v5234
    %v5287 = vpack.c.b16 %v5237, %v5235
    %v5288 = vpack.c.b16 %v5240, %v5238
    %v5289 = vpack.c.b16 %v5241, %v5239
    %v5290 = vpack.c.b16 %v5244, %v5242
    %v5291 = vpack.c.b16 %v5245, %v5243
    %v5292 = vpack.c.b16 %v5248, %v5246
    %v5293 = vpack.c.b16 %v5249, %v5247
    %v5294 = vpack.c.b16 %v5252, %v5250
    %v5295 = vpack.c.b16 %v5253, %v5251
    %v5296 = vpack.c.b16 %v5256, %v5254
    %v5297 = vpack.c.b16 %v5257, %v5255
    %v5298 = vpack.c.b16 %v5260, %v5258
    %v5299 = vpack.c.b16 %v5261, %v5259
    %v5300 = vpack.c.b16 %v5264, %v5262
    %v5301 = vpack.c.b16 %v5265, %v5263
    %v5302 = vpack.c.b16 %v5268, %v5266
    %v5303 = vpack.c.b16 %v5269, %v5267
    %v5304 = vpack.c.b16 %v5272, %v5270
    %v5305 = vpack.c.b16 %v5273, %v5271
    %5338 = vmatprep.subr.bf16.mxu0 %v5275
    %5339 = vmatpush1.bf16.msra.mxu0 %v5274
    %5340 = vmatprep.subr.bf16.mxu0 %v5277
    %5341 = vmatpush1.bf16.msra.mxu0 %v5276
    %5342 = vmatprep.subr.bf16.mxu0 %v5279
    %5343 = vmatpush1.bf16.msra.mxu0 %v5278
    %5344 = vmatprep.subr.bf16.mxu0 %v5281
    %5345 = vmatpush1.bf16.msra.mxu0 %v5280
    %5346 = vmatprep.subr.bf16.mxu0 %v5283
    %5347 = vmatpush1.bf16.msra.mxu0 %v5282
    %5348 = vmatprep.subr.bf16.mxu0 %v5285
    %5349 = vmatpush1.bf16.msra.mxu0 %v5284
    %5350 = vmatprep.subr.bf16.mxu0 %v5287
    %5351 = vmatpush1.bf16.msra.mxu0 %v5286
    %5352 = vmatprep.subr.bf16.mxu0 %v5289
    %5353 = vmatpush1.bf16.msra.mxu0 %v5288
    %5354 = vmatprep.subr.bf16.mxu0 %v5291
    %5355 = vmatpush1.bf16.msra.mxu0 %v5290
    %5356 = vmatprep.subr.bf16.mxu0 %v5293
    %5357 = vmatpush1.bf16.msra.mxu0 %v5292
    %5358 = vmatprep.subr.bf16.mxu0 %v5295
    %5359 = vmatpush1.bf16.msra.mxu0 %v5294
    %5360 = vmatprep.subr.bf16.mxu0 %v5297
    %5361 = vmatpush1.bf16.msra.mxu0 %v5296
    %5362 = vmatprep.subr.bf16.mxu0 %v5299
    %5363 = vmatpush1.bf16.msra.mxu0 %v5298
    %5364 = vmatprep.subr.bf16.mxu0 %v5301
    %5365 = vmatpush1.bf16.msra.mxu0 %v5300
    %5366 = vmatprep.subr.bf16.mxu0 %v5303
    %5367 = vmatpush1.bf16.msra.mxu0 %v5302
    %5368 = vmatprep.subr.bf16.mxu0 %v5305
    %5369 = vmatpush1.bf16.msra.mxu0 %v5304
    %5370 = vmatprep.mubr.bf16.mxu0 %v4900
    %5371 = vmatmul.mubr.bf16.gmra.mrb[0].mxu0 %v4899
    %v5372 = vpop.f32.mrb[0].mxu0
    %v5373 = vadd.f32 0.0, %v5372
    %v5374 = vpop.f32.mrb[0].mxu0
    %v5375 = vadd.f32 0.0, %v5374
    %v5376 = vpop.f32.mrb[0].mxu0
    %v5377 = vpop.f32.mrb[0].mxu0
    %5378 = vdwg.mxu0
    %5380 = vrot.lane.b32.xlu0 %v5373, 64
    %v5381 = vpop.permute.xlu0 %5380
    %v5383 = vmax.f32 %v5373, %v5381
    %5385 = vrot.lane.b32.xlu0 %v5375, 64
    %v5386 = vpop.permute.xlu0 %5385
    %v5388 = vmax.f32 %v5375, %v5386
    %v5389 = vmax.f32 %v5383, %v5388
    %5391 = vrot.lane.b32.xlu0 %v5389, 64
    %v5392 = vpop.permute.xlu0 %5391
    %v5394 = vsel %vm3277, %v5144, %v5392
    %v5395 = vld [vmem:[#allocation13] sm:$0x1]
    %v5397 = vlaneseq
    %v5398 = vshrl.u32 %v5397, 7
    %v5399 = vsub.s32 0, %v5398
    %v5400 = vrot.slane %v5395, %v5399
    %v5402 = vadd.f32 %v5394, %v5400
    %vm5403 = vcmp.gt.f32.partialorder %v5402, 0.0
    %v5404 = vmin.f32 %v5402, 0.0
    %v5405 = vmul.f32 %v5404, 1.442695
    %v5406 = vpow.pop %v5405
    %v5407 = vsub.f32 %v5406, 1.0
    %v5408 = vsel %vm5403, %v5402, %v5407
    %v5409 = vpack.c.bf16 %v5408, %v5408
    %v5410 = vld [vmem:[%s7] sm:$0xf]
    %v5411 = vld [vmem:[%s7 + $0x4] sm:$0xf]
    %v5412 = vld [vmem:[%s7 + $0x8] sm:$0xf]
    %v5413 = vld [vmem:[%s7 + $0xc] sm:$0xf]
    %v5414 = vld [vmem:[%s7 + $0x10] sm:$0xf]
    %v5415 = vld [vmem:[%s7 + $0x14] sm:$0xf]
    %v5416 = vld [vmem:[%s7 + $0x18] sm:$0xf]
    %v5417 = vld [vmem:[%s7 + $0x1c] sm:$0xf]
    %v5418 = vld [vmem:[%s7 + $0x20] sm:$0xf]
    %v5419 = vld [vmem:[%s7 + $0x24] sm:$0xf]
    %v5420 = vld [vmem:[%s7 + $0x28] sm:$0xf]
    %v5421 = vld [vmem:[%s7 + $0x2c] sm:$0xf]
    %v5422 = vld [vmem:[%s7 + $0x30] sm:$0xf]
    %v5423 = vld [vmem:[%s7 + $0x34] sm:$0xf]
    %v5424 = vld [vmem:[%s7 + $0x38] sm:$0xf]
    %v5425 = vld [vmem:[%s7 + $0x3c] sm:$0xf]
    %v5426 = vld [vmem:[#allocation14] sm:$0x1]
    %v5428 = vlaneseq
    %v5429 = vshrl.u32 %v5428, 7
    %v5430 = vsub.s32 0, %v5429
    %v5431 = vrot.slane %v5426, %v5430
    %v5449 = vunpack.c.l.b16 %v5410
    %v5450 = vunpack.c.l.b16 %v5411
    %v5451 = vunpack.c.l.b16 %v5412
    %v5452 = vunpack.c.l.b16 %v5413
    %v5453 = vunpack.c.l.b16 %v5414
    %v5454 = vunpack.c.l.b16 %v5415
    %v5455 = vunpack.c.l.b16 %v5416
    %v5456 = vunpack.c.l.b16 %v5417
    %v5457 = vunpack.c.l.b16 %v5418
    %v5458 = vunpack.c.l.b16 %v5419
    %v5459 = vunpack.c.l.b16 %v5420
    %v5460 = vunpack.c.l.b16 %v5421
    %v5461 = vunpack.c.l.b16 %v5422
    %v5462 = vunpack.c.l.b16 %v5423
    %v5463 = vunpack.c.l.b16 %v5424
    %v5464 = vunpack.c.l.b16 %v5425
    %v5465 = vpack.c.b16 %v5450, %v5449
    %v5466 = vpack.c.b16 %v5452, %v5451
    %v5467 = vpack.c.b16 %v5454, %v5453
    %v5468 = vpack.c.b16 %v5456, %v5455
    %v5469 = vpack.c.b16 %v5458, %v5457
    %v5470 = vpack.c.b16 %v5460, %v5459
    %v5471 = vpack.c.b16 %v5462, %v5461
    %v5472 = vpack.c.b16 %v5464, %v5463
    %5481 = vmatprep.subr.bf16.mxu0 0
    %5482 = vmatpush1.bf16.msra.mxu0 %v5465
    %5483 = vmatprep.subr.bf16.mxu0 0
    %5484 = vmatpush1.bf16.msra.mxu0 %v5466
    %5485 = vmatprep.subr.bf16.mxu0 0
    %5486 = vmatpush1.bf16.msra.mxu0 %v5467
    %5487 = vmatprep.subr.bf16.mxu0 0
    %5488 = vmatpush1.bf16.msra.mxu0 %v5468
    %5489 = vmatprep.subr.bf16.mxu0 0
    %5490 = vmatpush1.bf16.msra.mxu0 %v5469
    %5491 = vmatprep.subr.bf16.mxu0 0
    %5492 = vmatpush1.bf16.msra.mxu0 %v5470
    %5493 = vmatprep.subr.bf16.mxu0 0
    %5494 = vmatpush1.bf16.msra.mxu0 %v5471
    %5495 = vmatprep.subr.bf16.mxu0 0
    %5496 = vmatpush1.bf16.msra.mxu0 %v5472
    %5497 = vmatprep.subr.bf16.mxu0 0
    %5498 = vmatpush1.bf16.msra.mxu0 0
    %5499 = vmatprep.subr.bf16.mxu0 0
    %5500 = vmatpush1.bf16.msra.mxu0 0
    %5501 = vmatprep.subr.bf16.mxu0 0
    %5502 = vmatpush1.bf16.msra.mxu0 0
    %5503 = vmatprep.subr.bf16.mxu0 0
    %5504 = vmatpush1.bf16.msra.mxu0 0
    %5505 = vmatprep.subr.bf16.mxu0 0
    %5506 = vmatpush1.bf16.msra.mxu0 0
    %5507 = vmatprep.subr.bf16.mxu0 0
    %5508 = vmatpush1.bf16.msra.mxu0 0
    %5509 = vmatprep.subr.bf16.mxu0 0
    %5510 = vmatpush1.bf16.msra.mxu0 0
    %5511 = vmatprep.subr.bf16.mxu0 0
    %5512 = vmatpush1.bf16.msra.mxu0 0
    %5513 = vmatprep.mubr.bf16.mxu0 0
    %5514 = vmatmul.mubr.bf16.gmra.mrb[0].mxu0 %v5409
    %v5515 = vpop.f32.mrb[0].mxu0
    %v5516 = vadd.f32 %v5431, %v5515
    %v5517 = vpop.f32.mrb[0].mxu0
    %v5518 = vpop.f32.mrb[0].mxu0
    %v5519 = vpop.f32.mrb[0].mxu0
    %5520 = vdwg.mxu0
    %v5521 = vld [vmem:[#allocation16] sm:$0x3]
    %v5522 = vmul.f32 %v5516, 0.5
    %v5523 = vmul.f32 %v5522, 1.442695
    %v5524 = vpow.pop %v5523
    %5526 = vrot.lane.b32.xlu0 %v5524, 96
    %v5527 = vpop.permute.xlu0 %5526
    %v5529 = vmul.f32 %v5521, %v5527
    %v5530 = vadd.f32 %v5516, %v5529
    %5532 = vrot.lane.b32.xlu0 %v5530, 64
    %v5533 = vpop.permute.xlu0 %5532
    %v5535 = vsel %vm3277, %v5516, %v5533
    %vm5536 = vcmask 785408
    %v5537 = vsel %vm5536, %v5535, 0.0
    %5538 = vst [vmem:[#allocation17] sm:$0x3] %v5537
    // Predicated region
    $region78: #{tpu_custom_call.1} parent=1 // pred_check
      _
    $region79: #{tpu_custom_call.1} parent=1 // pred_check_branch
      %5540 = sbr.rel (0) target = $region81
    $region80: #{tpu_custom_call.1} parent=1 // pred_region
      %s5542 = ssub.s32 32, 32
      %5543 = vsyncadd [#allocation4], %s5542
      %s5545 = sshll.u32 [#allocation17], 4
      %s5546 = int_to_ptr.vmem [resolvable:$true] %s5545
      %5548 = dma.vmem_to_hbm [thread:$0]  %s5546, 32, %s10, [#allocation4]
    $region81: #{tpu_custom_call.1} parent=1 // pred_fallthru
      _
    // Predicated region
    $region82: #{tpu_custom_call.1} parent=1 // pred_check
      _
    $region83: #{tpu_custom_call.1} parent=1 // pred_check_branch
      %5550 = sbr.rel (0) target = $region85
    $region84: #{tpu_custom_call.1} parent=1 // pred_region
      %5551 = dma.done [#allocation4], 32
    $region85: #{tpu_custom_call.1} parent=1 // pred_fallthru
      _
    %5552 = vsyncpa [#allocation3], 1
    %5553 = vsyncpa [#allocation6], 1
    %5554 = vsyncpa [#allocation9], 1
    %5555 = vsyncpa [#allocation12], 1
    %5556 = vsyncpa [#allocation15], 1
    %5557 = vsyncpa [#allocation4], 1

</llo_original>
